<compile_context>
chip_gen: v6e
topology: v6e:2x2x1
jax: 0.10.0
libtpu: 0.0.40
codegen_flags: <defaults>
</compile_context>

<pallas_src>
import functools

import jax
import jax.numpy as jnp
import numpy as np
from jax.experimental import pallas as pl
from jax.experimental.pallas import tpu as pltpu

_EPS = 1e-5
_LANE = 128


# ----------------------------- small helpers ------------------------------ #
def _round_up(x, m):
    return (x + m - 1) // m * m


def _pick_tile(n, cap):
    """Largest divisor of n that is <= cap and a multiple of 8 (or n itself)."""
    for t in range(min(cap, n), 0, -1):
        if n % t == 0 and (t % 8 == 0 or t == n):
            return t
    return n


def _cparams():
    return pltpu.CompilerParams(
        # Row tiles are independent -> shard across TensorCores on v7x.
        dimension_semantics=("parallel",),
        # Explicit VMEM budget (v7x has only 64 MiB physical).
        vmem_limit_bytes=32 * 1024 * 1024)


def _pad_cols(m, to):
    return m if m.shape[1] == to else jnp.pad(m, ((0, 0), (0, to - m.shape[1])))


def _pad_vec(v, to):
    return v if v.shape[0] == to else jnp.pad(v, (0, to - v.shape[0]))


def _im2col_3x3(x_nhwc):
    n, h, w, c = x_nhwc.shape
    xp = jnp.pad(x_nhwc, ((0, 0), (1, 1), (1, 1), (0, 0)))
    cols = [xp[:, dh:dh + h, dw:dw + w, :] for dh in range(3) for dw in range(3)]
    return jnp.concatenate(cols, axis=-1).reshape(n * h * w, 9 * c)


def _bn_coeffs(sum_, sumsq, count, gamma, beta):
    """Training-mode BN (biased variance) folded into y*a + b."""
    mean = sum_ / count
    var = jnp.maximum(sumsq / count - mean * mean, 0.0)
    a = gamma * jax.lax.rsqrt(var + _EPS)
    return a, beta - mean * a


# ------------------------------- kernels ----------------------------------- #
def _conv_stats_kernel(p_ref, w_ref, y_ref, st_ref):
    # bf16 x bf16 GEMM with f32 accumulation + per-tile channel sum / sumsq.
    y = jnp.dot(p_ref[...], w_ref[...], preferred_element_type=jnp.float32)
    y_ref[...] = y
    st_ref[...] = jnp.concatenate(
        [jnp.sum(y, axis=0, keepdims=True),
         jnp.sum(y * y, axis=0, keepdims=True)], axis=0)[None]


def _conv_proj_stats_kernel(p_ref, w_ref, xs_ref, wf_ref, y_ref, s_ref, st_ref):
    # conv2 GEMM + 1x1 shortcut GEMM + per-tile stats for both branches.
    y = jnp.dot(p_ref[...], w_ref[...], preferred_element_type=jnp.float32)
    s = jnp.dot(xs_ref[...], wf_ref[...], preferred_element_type=jnp.float32)
    y_ref[...] = y
    s_ref[...] = s
    st_ref[...] = jnp.concatenate(
        [jnp.sum(y, axis=0, keepdims=True),
         jnp.sum(y * y, axis=0, keepdims=True),
         jnp.sum(s, axis=0, keepdims=True),
         jnp.sum(s * s, axis=0, keepdims=True)], axis=0)[None]


def _affine_relu_kernel(y_ref, a_ref, b_ref, o_ref):
    o_ref[...] = jnp.maximum(y_ref[...] * a_ref[...] + b_ref[...],
                             0.0).astype(o_ref.dtype)


def _tail_id_kernel(y_ref, x_ref, a_ref, b_ref, o_ref):
    o_ref[...] = jnp.maximum(y_ref[...] * a_ref[...] + b_ref[...] + x_ref[...], 0.0)


def _tail_proj_kernel(y_ref, s_ref, a_ref, b_ref, af_ref, bf_ref, o_ref):
    o = (y_ref[...] * a_ref[...] + b_ref[...]
         + s_ref[...] * af_ref[...] + bf_ref[...])
    o_ref[...] = jnp.maximum(o, 0.0)


def _pool2x2(o, cp):
    # o: (tb, 2, W/2, 2*cp) -- H-pair on a major dim, W-pair folded into lanes.
    m = jnp.maximum(o[:, 0], o[:, 1])                   # pool over H pair
    return jnp.maximum(m[:, :, :cp], m[:, :, cp:])      # pool over W pair


def _tail_id_pool_kernel(y_ref, x_ref, a_ref, b_ref, o_ref):
    o = jnp.maximum(y_ref[...] * a_ref[...] + b_ref[...] + x_ref[...], 0.0)
    o_ref[...] = _pool2x2(o, o_ref.shape[-1])


def _tail_proj_pool_kernel(y_ref, s_ref, a_ref, b_ref, af_ref, bf_ref, o_ref):
    o = jnp.maximum(y_ref[...] * a_ref[...] + b_ref[...]
                    + s_ref[...] * af_ref[...] + bf_ref[...], 0.0)
    o_ref[...] = _pool2x2(o, o_ref.shape[-1])


# ------------------------------ pallas calls -------------------------------- #
def _gemm_stats(p, wmat, tm):
    r, k = p.shape
    cp = wmat.shape[1]
    nt = r // tm
    cost = pl.CostEstimate(
        flops=2 * r * k * cp, transcendentals=0,
        bytes_accessed=int(p.size * p.dtype.itemsize + wmat.size * 2
                           + r * cp * 4 + nt * 2 * cp * 4))
    return pl.pallas_call(
        _conv_stats_kernel,
        grid=(nt,),
        in_specs=[pl.BlockSpec((tm, k), lambda i: (i, 0)),
                  pl.BlockSpec((k, cp), lambda i: (0, 0))],
        out_specs=[pl.BlockSpec((tm, cp), lambda i: (i, 0)),
                   pl.BlockSpec((1, 2, cp), lambda i: (i, 0, 0))],
        out_shape=[jax.ShapeDtypeStruct((r, cp), jnp.float32),
                   jax.ShapeDtypeStruct((nt, 2, cp), jnp.float32)],
        compiler_params=_cparams(),
        cost_estimate=cost,
    )(p, wmat)


def _gemm_proj_stats(p, wmat, xs, wf, tm):
    r, k = p.shape
    kf = xs.shape[1]
    cp = wmat.shape[1]
    nt = r // tm
    cost = pl.CostEstimate(
        flops=2 * r * (k + kf) * cp, transcendentals=0,
        bytes_accessed=int((p.size + xs.size + wmat.size + wf.size) * 2
                           + 2 * r * cp * 4 + nt * 4 * cp * 4))
    return pl.pallas_call(
        _conv_proj_stats_kernel,
        grid=(nt,),
        in_specs=[pl.BlockSpec((tm, k), lambda i: (i, 0)),
                  pl.BlockSpec((k, cp), lambda i: (0, 0)),
                  pl.BlockSpec((tm, kf), lambda i: (i, 0)),
                  pl.BlockSpec((kf, cp), lambda i: (0, 0))],
        out_specs=[pl.BlockSpec((tm, cp), lambda i: (i, 0)),
                   pl.BlockSpec((tm, cp), lambda i: (i, 0)),
                   pl.BlockSpec((1, 4, cp), lambda i: (i, 0, 0))],
        out_shape=[jax.ShapeDtypeStruct((r, cp), jnp.float32),
                   jax.ShapeDtypeStruct((r, cp), jnp.float32),
                   jax.ShapeDtypeStruct((nt, 4, cp), jnp.float32)],
        compiler_params=_cparams(),
        cost_estimate=cost,
    )(p, wmat, xs, wf)


def _affine_relu(y, a, b, tm, out_dtype):
    r, cp = y.shape
    vec = pl.BlockSpec((1, cp), lambda i: (0, 0))
    return pl.pallas_call(
        _affine_relu_kernel,
        grid=(r // tm,),
        in_specs=[pl.BlockSpec((tm, cp), lambda i: (i, 0)), vec, vec],
        out_specs=pl.BlockSpec((tm, cp), lambda i: (i, 0)),
        out_shape=jax.ShapeDtypeStruct((r, cp), out_dtype),
        compiler_params=_cparams(),
    )(y, a.reshape(1, cp), b.reshape(1, cp))


def _tail_flat(y2, short, a2, b2, af, bf, tm):
    r, cp = y2.shape
    row = pl.BlockSpec((tm, cp), lambda i: (i, 0))
    vec = pl.BlockSpec((1, cp), lambda i: (0, 0))
    if af is None:
        kernel = _tail_id_kernel
        args = (y2, short, a2.reshape(1, cp), b2.reshape(1, cp))
        specs = [row, row, vec, vec]
    else:
        kernel = _tail_proj_kernel
        args = (y2, short, a2.reshape(1, cp), b2.reshape(1, cp),
                af.reshape(1, cp), bf.reshape(1, cp))
        specs = [row, row, vec, vec, vec, vec]
    return pl.pallas_call(
        kernel, grid=(r // tm,), in_specs=specs,
        out_specs=row,
        out_shape=jax.ShapeDtypeStruct((r, cp), jnp.float32),
        compiler_params=_cparams(),
    )(*args)


def _tail_pool(y2, short, a2, b2, af, bf, n, h, w, cp):
    nh2, wh = n * h // 2, w // 2
    tb = _pick_tile(nh2, 64)
    # Free (contiguous) reshape: (N*H*W, Cp) -> (N*H/2, 2, W/2, 2*Cp).
    y4 = y2.reshape(nh2, 2, wh, 2 * cp)
    s4 = short.reshape(nh2, 2, wh, 2 * cp)
    blk = pl.BlockSpec((tb, 2, wh, 2 * cp), lambda i: (i, 0, 0, 0))
    vec = pl.BlockSpec((1, 2 * cp), lambda i: (0, 0))
    a2t = jnp.tile(a2, 2).reshape(1, 2 * cp)
    b2t = jnp.tile(b2, 2).reshape(1, 2 * cp)
    if af is None:
        kernel = _tail_id_pool_kernel
        args = (y4, s4, a2t, b2t)
        specs = [blk, blk, vec, vec]
    else:
        kernel = _tail_proj_pool_kernel
        args = (y4, s4, a2t, b2t,
                jnp.tile(af, 2).reshape(1, 2 * cp),
                jnp.tile(bf, 2).reshape(1, 2 * cp))
        specs = [blk, blk, vec, vec, vec, vec]
    out = pl.pallas_call(
        kernel, grid=(nh2 // tb,), in_specs=specs,
        out_specs=pl.BlockSpec((tb, wh, cp), lambda i: (i, 0, 0)),
        out_shape=jax.ShapeDtypeStruct((nh2, wh, cp), jnp.float32),
        compiler_params=_cparams(),
    )(*args)
    return out.reshape(n, h // 2, wh, cp)


# ------------------------------- forward ----------------------------------- #
def basic_block_forward(x_nchw, params, *, if_maxpooling=False):
    n, cin, h, w = x_nchw.shape
    cout = params["w1"].shape[0]
    cp = _round_up(cout, _LANE)           # lane-dense conv-output channels
    k1 = _round_up(9 * cin, _LANE)        # conv1 contraction (padded)
    kf = _round_up(cin, _LANE)            # 1x1 shortcut contraction (padded)
    r = n * h * w
    tm = _pick_tile(r, 256)               # row tile (use >=512 at prod sizes)

    x_nhwc = jnp.transpose(x_nchw, (0, 2, 3, 1)).astype(jnp.float32)

    # PyTorch conv weights (Cout, Cin, kh, kw) -> bf16 (K_pad, Cp) GEMM matrices.
    w1m = jnp.transpose(params["w1"], (2, 3, 1, 0)).reshape(9 * cin, cout)
    w1m = jnp.pad(w1m, ((0, k1 - 9 * cin), (0, cp - cout))).astype(jnp.bfloat16)

    w2m = jnp.transpose(params["w2"], (2, 3, 1, 0))            # (3,3,cout,cout)
    w2m = jnp.pad(w2m, ((0, 0), (0, 0), (0, cp - cout), (0, cp - cout)))
    w2m = w2m.reshape(9 * cp, cp).astype(jnp.bfloat16)

    g1p = _pad_vec(params["g1"], cp)
    b1p = _pad_vec(params["b1"], cp)
    g2p = _pad_vec(params["g2"], cp)
    b2p = _pad_vec(params["b2"], cp)

    # ---- stage 1: conv1 GEMM (+ partial BN stats), then bn1 + relu pass ----
    p1 = _pad_cols(_im2col_3x3(x_nhwc), k1).astype(jnp.bfloat16)     # (r, k1)
    y1, st1 = _gemm_stats(p1, w1m, tm)
    a1, c1 = _bn_coeffs(st1[:, 0].sum(0), st1[:, 1].sum(0), r, g1p, b1p)
    relu1 = _affine_relu(y1, a1, c1, tm, jnp.bfloat16)               # (r, cp) bf16

    # ---- stage 2: conv2 GEMM (+ 1x1 shortcut conv if projecting) + stats ---
    p2 = _im2col_3x3(relu1.reshape(n, h, w, cp))                     # (r, 9*cp) bf16
    if cin != cout:
        wfm = jnp.transpose(params["wf"].reshape(cout, cin), (1, 0))
        wfm = jnp.pad(wfm, ((0, kf - cin), (0, cp - cout))).astype(jnp.bfloat16)
        xs = _pad_cols(x_nhwc.reshape(r, cin), kf).astype(jnp.bfloat16)
        y2, s2, st2 = _gemm_proj_stats(p2, w2m, xs, wfm, tm)
        a2, c2 = _bn_coeffs(st2[:, 0].sum(0), st2[:, 1].sum(0), r, g2p, b2p)
        gfp = _pad_vec(params["gf"], cp)
        bfp = _pad_vec(params["bf"], cp)
        af, cf = _bn_coeffs(st2[:, 2].sum(0), st2[:, 3].sum(0), r, gfp, bfp)
        short = s2
    else:
        y2, st2 = _gemm_stats(p2, w2m, tm)
        a2, c2 = _bn_coeffs(st2[:, 0].sum(0), st2[:, 1].sum(0), r, g2p, b2p)
        af = cf = None
        short = _pad_cols(x_nhwc.reshape(r, cin), cp)                # identity shortcut

    # ---- stage 3: bn2 + shortcut add + relu (+ fused 2x2 maxpool) ----------
    if if_maxpooling:
        assert h % 2 == 0 and w % 2 == 0, "2x2 maxpool requires even H, W"
        out = _tail_pool(y2, short, a2, c2, af, cf, n, h, w, cp)     # (n,h/2,w/2,cp)
    else:
        out = _tail_flat(y2, short, a2, c2, af, cf, tm).reshape(n, h, w, cp)

    return jnp.transpose(out[..., :cout], (0, 3, 1, 2))              # NCHW, drop pad


# --------------------------- pure-JAX reference ----------------------------- #
def _ref_bn(x, gamma, beta):
    mean = x.mean(axis=(0, 2, 3), keepdims=True)
    var = jnp.square(x - mean).mean(axis=(0, 2, 3), keepdims=True)
    return ((x - mean) * jax.lax.rsqrt(var + _EPS) * gamma.reshape(1, -1, 1, 1)
            + beta.reshape(1, -1, 1, 1))


def _ref_conv(x, wt, padding):
    # Same mixed precision as the kernels: bf16 operands, f32 accumulation.
    return jax.lax.conv_general_dilated(
        x.astype(jnp.bfloat16), wt.astype(jnp.bfloat16),
        window_strides=(1, 1), padding=padding,
        dimension_numbers=("NCHW", "OIHW", "NCHW"),
        preferred_element_type=jnp.float32)


def ref_forward(x, params, *, if_maxpooling=False):
    out = jax.nn.relu(_ref_bn(_ref_conv(x, params["w1"], ((1, 1), (1, 1))),
                              params["g1"], params["b1"]))
    out = _ref_bn(_ref_conv(out, params["w2"], ((1, 1), (1, 1))),
                  params["g2"], params["b2"])
    cin, cout = x.shape[1], params["w1"].shape[0]
    if cin != cout:
        sc = _ref_bn(_ref_conv(x, params["wf"], ((0, 0), (0, 0))),
                     params["gf"], params["bf"])
    else:
        sc = x
    out = jax.nn.relu(out + sc)
    if if_maxpooling:
        nn_, cc, hh, ww = out.shape
        out = out.reshape(nn_, cc, hh // 2, 2, ww // 2, 2).max(axis=(3, 5))
    return out


# ----------------------------------- test ----------------------------------- #
if __name__ == "__main__":
    def make_params(key, cin, cout):
        ks = jax.random.split(key, 9)
        p = {
            "w1": 0.2 * jax.random.normal(ks[0], (cout, cin, 3, 3), jnp.float32),
            "g1": 1.0 + 0.1 * jax.random.normal(ks[1], (cout,), jnp.float32),
            "b1": 0.1 * jax.random.normal(ks[2], (cout,), jnp.float32),
            "w2": 0.2 * jax.random.normal(ks[3], (cout, cout, 3, 3), jnp.float32),
            "g2": 1.0 + 0.1 * jax.random.normal(ks[4], (cout,), jnp.float32),
            "b2": 0.1 * jax.random.normal(ks[5], (cout,), jnp.float32),
        }
        if cin != cout:
            p["wf"] = 0.2 * jax.random.normal(ks[6], (cout, cin, 1, 1), jnp.float32)
            p["gf"] = 1.0 + 0.1 * jax.random.normal(ks[7], (cout,), jnp.float32)
            p["bf"] = 0.1 * jax.random.normal(ks[8], (cout,), jnp.float32)
        return p

    ka, kb, kc, kd = jax.random.split(jax.random.PRNGKey(0), 4)

    # Config 1: BasicBlock(4, 8, if_maxpooling=True) -> projection + fused pool.
    params_a = make_params(ka, 4, 8)
    xa = jax.random.normal(kb, (2, 4, 16, 16), jnp.float32)
    fwd_a = jax.jit(functools.partial(basic_block_forward, if_maxpooling=True))
    out_a = jax.block_until_ready(fwd_a(xa, params_a))
    ref_a = ref_forward(xa, params_a, if_maxpooling=True)
    assert out_a.shape == ref_a.shape, (out_a.shape, ref_a.shape)
    np.testing.assert_allclose(np.asarray(out_a), np.asarray(ref_a),
                               atol=5e-3, rtol=5e-3)

    # Config 2: BasicBlock(8, 8) -> identity shortcut, no pooling.
    params_b = make_params(kc, 8, 8)
    xb = jax.random.normal(kd, (2, 8, 16, 16), jnp.float32)
    fwd_b = jax.jit(functools.partial(basic_block_forward, if_maxpooling=False))
    out_b = jax.block_until_ready(fwd_b(xb, params_b))
    ref_b = ref_forward(xb, params_b, if_maxpooling=False)
    assert out_b.shape == ref_b.shape, (out_b.shape, ref_b.shape)
    np.testing.assert_allclose(np.asarray(out_b), np.asarray(ref_b),
                               atol=5e-3, rtol=5e-3)

    print("KERNEL_OK")
</pallas_src>

<mosaic_0001>
module attributes {stable_mosaic.version = 11 : i64} {
  func.func @_conv_stats_kernel(%arg0: i32, %arg1: memref<256x128xbf16, #tpu.memory_space<vmem>>, %arg2: memref<128x128xbf16, #tpu.memory_space<vmem>>, %arg3: memref<256x128xf32, #tpu.memory_space<vmem>>, %arg4: memref<1x2x128xf32, #tpu.memory_space<vmem>>) attributes {dimension_semantics = [#tpu.dimension_semantics<parallel>], iteration_bounds = array<i64: 2>, scalar_prefetch = 0 : i64, scratch_operands = 0 : i64, tpu.core_type = #tpu.core_type<tc>, window_params = [{transform_indices = @transform_0, window_bounds = array<i64: 256, 128>}, {pipeline_mode = #tpu.pipeline_mode<synchronous>, transform_indices = @transform_1, window_bounds = array<i64: 128, 128>}, {transform_indices = @transform_2, window_bounds = array<i64: 256, 128>}, {transform_indices = @transform_3, window_bounds = array<i64: 1, 2, 128>}]} {
    %c0 = arith.constant 0 : index
    %c0_0 = arith.constant 0 : index
    %0 = vector.load %arg1[%c0, %c0_0] : memref<256x128xbf16, #tpu.memory_space<vmem>>, vector<256x128xbf16>
    %c0_1 = arith.constant 0 : index
    %c0_2 = arith.constant 0 : index
    %1 = vector.load %arg2[%c0_1, %c0_2] : memref<128x128xbf16, #tpu.memory_space<vmem>>, vector<128x128xbf16>
    %cst = arith.constant dense<0.000000e+00> : vector<256x128xf32>
    %2 = tpu.matmul %0, %1, %cst {dimension_numbers = #tpu.dot_dimension_numbers<[1], [0], [0], [1], [0, 0, 1, 1], [], []>} : vector<256x128xbf16>, vector<128x128xbf16>, vector<256x128xf32> -> vector<256x128xf32>
    %c0_3 = arith.constant 0 : index
    %c0_4 = arith.constant 0 : index
    %3 = vector.load %arg3[%c0_3, %c0_4] : memref<256x128xf32, #tpu.memory_space<vmem>>, vector<256x128xf32>
    tpu.vector_store %arg3[%c0_3, %c0_4], %2 {strides = array<i32>} : memref<256x128xf32, #tpu.memory_space<vmem>>, vector<256x128xf32>,
    %cst_5 = arith.constant dense<0.000000e+00> : vector<128xf32>
    %4 = vector.multi_reduction <add>, %2, %cst_5 [0] : vector<256x128xf32> to vector<128xf32>
    %5 = vector.shape_cast %4 : vector<128xf32> to vector<1x128xf32>
    %6 = arith.mulf %2, %2 : vector<256x128xf32>
    %cst_6 = arith.constant dense<0.000000e+00> : vector<128xf32>
    %7 = vector.multi_reduction <add>, %6, %cst_6 [0] : vector<256x128xf32> to vector<128xf32>
    %8 = vector.shape_cast %7 : vector<128xf32> to vector<1x128xf32>
    %9 = tpu.concatenate %5, %8 in 0 : vector<1x128xf32>, vector<1x128xf32> -> vector<2x128xf32>
    %10 = vector.shape_cast %9 : vector<2x128xf32> to vector<1x2x128xf32>
    %c0_7 = arith.constant 0 : index
    %c0_8 = arith.constant 0 : index
    %c0_9 = arith.constant 0 : index
    %11 = vector.load %arg4[%c0_7, %c0_8, %c0_9] : memref<1x2x128xf32, #tpu.memory_space<vmem>>, vector<1x2x128xf32>
    tpu.vector_store %arg4[%c0_7, %c0_8, %c0_9], %10 {strides = array<i32>} : memref<1x2x128xf32, #tpu.memory_space<vmem>>, vector<1x2x128xf32>,
    return
  }
  func.func @transform_0(%arg0: i32) -> (i32, i32) {
    %c0_i32 = arith.constant 0 : i32
    %c0_i32_0 = arith.constant 0 : i32
    return %arg0, %c0_i32 : i32, i32
  }
  func.func @transform_1(%arg0: i32) -> (i32, i32) {
    %c0_i32 = arith.constant 0 : i32
    %c0_i32_0 = arith.constant 0 : i32
    %c0_i32_1 = arith.constant 0 : i32
    return %c0_i32, %c0_i32_0 : i32, i32
  }
  func.func @transform_2(%arg0: i32) -> (i32, i32) {
    %c0_i32 = arith.constant 0 : i32
    %c0_i32_0 = arith.constant 0 : i32
    return %arg0, %c0_i32 : i32, i32
  }
  func.func @transform_3(%arg0: i32) -> (i32, i32, i32) {
    %c0_i32 = arith.constant 0 : i32
    %c0_i32_0 = arith.constant 0 : i32
    %c0_i32_1 = arith.constant 0 : i32
    return %arg0, %c0_i32, %c0_i32_0 : i32, i32, i32
  }
}

module attributes {stable_mosaic.version = 11 : i64} {
  func.func @_affine_relu_kernel(%arg0: i32, %arg1: memref<256x128xf32, #tpu.memory_space<vmem>>, %arg2: memref<1x128xf32, #tpu.memory_space<vmem>>, %arg3: memref<1x128xf32, #tpu.memory_space<vmem>>, %arg4: memref<256x128xbf16, #tpu.memory_space<vmem>>) attributes {dimension_semantics = [#tpu.dimension_semantics<parallel>], iteration_bounds = array<i64: 2>, scalar_prefetch = 0 : i64, scratch_operands = 0 : i64, tpu.core_type = #tpu.core_type<tc>, window_params = [{transform_indices = @transform_0, window_bounds = array<i64: 256, 128>}, {pipeline_mode = #tpu.pipeline_mode<synchronous>, transform_indices = @transform_1, window_bounds = array<i64: 1, 128>}, {pipeline_mode = #tpu.pipeline_mode<synchronous>, transform_indices = @transform_2, window_bounds = array<i64: 1, 128>}, {transform_indices = @transform_3, window_bounds = array<i64: 256, 128>}]} {
    %c0 = arith.constant 0 : index
    %c0_0 = arith.constant 0 : index
    %0 = vector.load %arg1[%c0, %c0_0] : memref<256x128xf32, #tpu.memory_space<vmem>>, vector<256x128xf32>
    %c0_1 = arith.constant 0 : index
    %c0_2 = arith.constant 0 : index
    %1 = vector.load %arg2[%c0_1, %c0_2] : memref<1x128xf32, #tpu.memory_space<vmem>>, vector<1x128xf32>
    %2 = vector.broadcast %1 : vector<1x128xf32> to vector<256x128xf32>
    %3 = arith.mulf %0, %2 : vector<256x128xf32>
    %c0_3 = arith.constant 0 : index
    %c0_4 = arith.constant 0 : index
    %4 = vector.load %arg3[%c0_3, %c0_4] : memref<1x128xf32, #tpu.memory_space<vmem>>, vector<1x128xf32>
    %5 = vector.broadcast %4 : vector<1x128xf32> to vector<256x128xf32>
    %6 = arith.addf %3, %5 : vector<256x128xf32>
    %cst = arith.constant 0.000000e+00 : f32
    %7 = vector.broadcast %cst : f32 to vector<256x128xf32>
    %8 = arith.maximumf %6, %7 : vector<256x128xf32>
    %9 = arith.truncf %8 : vector<256x128xf32> to vector<256x128xbf16>
    %c0_5 = arith.constant 0 : index
    %c0_6 = arith.constant 0 : index
    %10 = vector.load %arg4[%c0_5, %c0_6] : memref<256x128xbf16, #tpu.memory_space<vmem>>, vector<256x128xbf16>
    tpu.vector_store %arg4[%c0_5, %c0_6], %9 {strides = array<i32>} : memref<256x128xbf16, #tpu.memory_space<vmem>>, vector<256x128xbf16>,
    return
  }
  func.func @transform_0(%arg0: i32) -> (i32, i32) {
    %c0_i32 = arith.constant 0 : i32
    %c0_i32_0 = arith.constant 0 : i32
    return %arg0, %c0_i32 : i32, i32
  }
  func.func @transform_1(%arg0: i32) -> (i32, i32) {
    %c0_i32 = arith.constant 0 : i32
    %c0_i32_0 = arith.constant 0 : i32
    %c0_i32_1 = arith.constant 0 : i32
    return %c0_i32, %c0_i32_0 : i32, i32
  }
  func.func @transform_2(%arg0: i32) -> (i32, i32) {
    %c0_i32 = arith.constant 0 : i32
    %c0_i32_0 = arith.constant 0 : i32
    %c0_i32_1 = arith.constant 0 : i32
    return %c0_i32, %c0_i32_0 : i32, i32
  }
  func.func @transform_3(%arg0: i32) -> (i32, i32) {
    %c0_i32 = arith.constant 0 : i32
    %c0_i32_0 = arith.constant 0 : i32
    return %arg0, %c0_i32 : i32, i32
  }
}

module attributes {stable_mosaic.version = 11 : i64} {
  func.func @_conv_proj_stats_kernel(%arg0: i32, %arg1: memref<256x1152xbf16, #tpu.memory_space<vmem>>, %arg2: memref<1152x128xbf16, #tpu.memory_space<vmem>>, %arg3: memref<256x128xbf16, #tpu.memory_space<vmem>>, %arg4: memref<128x128xbf16, #tpu.memory_space<vmem>>, %arg5: memref<256x128xf32, #tpu.memory_space<vmem>>, %arg6: memref<256x128xf32, #tpu.memory_space<vmem>>, %arg7: memref<1x4x128xf32, #tpu.memory_space<vmem>>) attributes {dimension_semantics = [#tpu.dimension_semantics<parallel>], iteration_bounds = array<i64: 2>, scalar_prefetch = 0 : i64, scratch_operands = 0 : i64, tpu.core_type = #tpu.core_type<tc>, window_params = [{transform_indices = @transform_0, window_bounds = array<i64: 256, 1152>}, {pipeline_mode = #tpu.pipeline_mode<synchronous>, transform_indices = @transform_1, window_bounds = array<i64: 1152, 128>}, {transform_indices = @transform_2, window_bounds = array<i64: 256, 128>}, {pipeline_mode = #tpu.pipeline_mode<synchronous>, transform_indices = @transform_3, window_bounds = array<i64: 128, 128>}, {transform_indices = @transform_4, window_bounds = array<i64: 256, 128>}, {transform_indices = @transform_5, window_bounds = array<i64: 256, 128>}, {transform_indices = @transform_6, window_bounds = array<i64: 1, 4, 128>}]} {
    %c0 = arith.constant 0 : index
    %c0_0 = arith.constant 0 : index
    %0 = vector.load %arg1[%c0, %c0_0] : memref<256x1152xbf16, #tpu.memory_space<vmem>>, vector<256x1152xbf16>
    %c0_1 = arith.constant 0 : index
    %c0_2 = arith.constant 0 : index
    %1 = vector.load %arg2[%c0_1, %c0_2] : memref<1152x128xbf16, #tpu.memory_space<vmem>>, vector<1152x128xbf16>
    %cst = arith.constant dense<0.000000e+00> : vector<256x128xf32>
    %2 = tpu.matmul %0, %1, %cst {dimension_numbers = #tpu.dot_dimension_numbers<[1], [0], [0], [1], [0, 0, 1, 1], [], []>} : vector<256x1152xbf16>, vector<1152x128xbf16>, vector<256x128xf32> -> vector<256x128xf32>
    %c0_3 = arith.constant 0 : index
    %c0_4 = arith.constant 0 : index
    %3 = vector.load %arg3[%c0_3, %c0_4] : memref<256x128xbf16, #tpu.memory_space<vmem>>, vector<256x128xbf16>
    %c0_5 = arith.constant 0 : index
    %c0_6 = arith.constant 0 : index
    %4 = vector.load %arg4[%c0_5, %c0_6] : memref<128x128xbf16, #tpu.memory_space<vmem>>, vector<128x128xbf16>
    %cst_7 = arith.constant dense<0.000000e+00> : vector<256x128xf32>
    %5 = tpu.matmul %3, %4, %cst_7 {dimension_numbers = #tpu.dot_dimension_numbers<[1], [0], [0], [1], [0, 0, 1, 1], [], []>} : vector<256x128xbf16>, vector<128x128xbf16>, vector<256x128xf32> -> vector<256x128xf32>
    %c0_8 = arith.constant 0 : index
    %c0_9 = arith.constant 0 : index
    %6 = vector.load %arg5[%c0_8, %c0_9] : memref<256x128xf32, #tpu.memory_space<vmem>>, vector<256x128xf32>
    tpu.vector_store %arg5[%c0_8, %c0_9], %2 {strides = array<i32>} : memref<256x128xf32, #tpu.memory_space<vmem>>, vector<256x128xf32>,
    %c0_10 = arith.constant 0 : index
    %c0_11 = arith.constant 0 : index
    %7 = vector.load %arg6[%c0_10, %c0_11] : memref<256x128xf32, #tpu.memory_space<vmem>>, vector<256x128xf32>
    tpu.vector_store %arg6[%c0_10, %c0_11], %5 {strides = array<i32>} : memref<256x128xf32, #tpu.memory_space<vmem>>, vector<256x128xf32>,
    %cst_12 = arith.constant dense<0.000000e+00> : vector<128xf32>
    %8 = vector.multi_reduction <add>, %2, %cst_12 [0] : vector<256x128xf32> to vector<128xf32>
    %9 = vector.shape_cast %8 : vector<128xf32> to vector<1x128xf32>
    %10 = arith.mulf %2, %2 : vector<256x128xf32>
    %cst_13 = arith.constant dense<0.000000e+00> : vector<128xf32>
    %11 = vector.multi_reduction <add>, %10, %cst_13 [0] : vector<256x128xf32> to vector<128xf32>
    %12 = vector.shape_cast %11 : vector<128xf32> to vector<1x128xf32>
    %cst_14 = arith.constant dense<0.000000e+00> : vector<128xf32>
    %13 = vector.multi_reduction <add>, %5, %cst_14 [0] : vector<256x128xf32> to vector<128xf32>
    %14 = vector.shape_cast %13 : vector<128xf32> to vector<1x128xf32>
    %15 = arith.mulf %5, %5 : vector<256x128xf32>
    %cst_15 = arith.constant dense<0.000000e+00> : vector<128xf32>
    %16 = vector.multi_reduction <add>, %15, %cst_15 [0] : vector<256x128xf32> to vector<128xf32>
    %17 = vector.shape_cast %16 : vector<128xf32> to vector<1x128xf32>
    %18 = tpu.concatenate %9, %12, %14, %17 in 0 : vector<1x128xf32>, vector<1x128xf32>, vector<1x128xf32>, vector<1x128xf32> -> vector<4x128xf32>
    %19 = vector.shape_cast %18 : vector<4x128xf32> to vector<1x4x128xf32>
    %c0_16 = arith.constant 0 : index
    %c0_17 = arith.constant 0 : index
    %c0_18 = arith.constant 0 : index
    %20 = vector.load %arg7[%c0_16, %c0_17, %c0_18] : memref<1x4x128xf32, #tpu.memory_space<vmem>>, vector<1x4x128xf32>
    tpu.vector_store %arg7[%c0_16, %c0_17, %c0_18], %19 {strides = array<i32>} : memref<1x4x128xf32, #tpu.memory_space<vmem>>, vector<1x4x128xf32>,
    return
  }
  func.func @transform_0(%arg0: i32) -> (i32, i32) {
    %c0_i32 = arith.constant 0 : i32
    %c0_i32_0 = arith.constant 0 : i32
    return %arg0, %c0_i32 : i32, i32
  }
  func.func @transform_1(%arg0: i32) -> (i32, i32) {
    %c0_i32 = arith.constant 0 : i32
    %c0_i32_0 = arith.constant 0 : i32
    %c0_i32_1 = arith.constant 0 : i32
    return %c0_i32, %c0_i32_0 : i32, i32
  }
  func.func @transform_2(%arg0: i32) -> (i32, i32) {
    %c0_i32 = arith.constant 0 : i32
    %c0_i32_0 = arith.constant 0 : i32
    return %arg0, %c0_i32 : i32, i32
  }
  func.func @transform_3(%arg0: i32) -> (i32, i32) {
    %c0_i32 = arith.constant 0 : i32
    %c0_i32_0 = arith.constant 0 : i32
    %c0_i32_1 = arith.constant 0 : i32
    return %c0_i32, %c0_i32_0 : i32, i32
  }
  func.func @transform_4(%arg0: i32) -> (i32, i32) {
    %c0_i32 = arith.constant 0 : i32
    %c0_i32_0 = arith.constant 0 : i32
    return %arg0, %c0_i32 : i32, i32
  }
  func.func @transform_5(%arg0: i32) -> (i32, i32) {
    %c0_i32 = arith.constant 0 : i32
    %c0_i32_0 = arith.constant 0 : i32
    return %arg0, %c0_i32 : i32, i32
  }
  func.func @transform_6(%arg0: i32) -> (i32, i32, i32) {
    %c0_i32 = arith.constant 0 : i32
    %c0_i32_0 = arith.constant 0 : i32
    %c0_i32_1 = arith.constant 0 : i32
    return %arg0, %c0_i32, %c0_i32_0 : i32, i32, i32
  }
}

module attributes {stable_mosaic.version = 11 : i64} {
  func.func @_tail_proj_pool_kernel(%arg0: i32, %arg1: memref<16x2x8x256xf32, #tpu.memory_space<vmem>>, %arg2: memref<16x2x8x256xf32, #tpu.memory_space<vmem>>, %arg3: memref<1x256xf32, #tpu.memory_space<vmem>>, %arg4: memref<1x256xf32, #tpu.memory_space<vmem>>, %arg5: memref<1x256xf32, #tpu.memory_space<vmem>>, %arg6: memref<1x256xf32, #tpu.memory_space<vmem>>, %arg7: memref<16x8x128xf32, #tpu.memory_space<vmem>>) attributes {dimension_semantics = [#tpu.dimension_semantics<parallel>], iteration_bounds = array<i64: 1>, scalar_prefetch = 0 : i64, scratch_operands = 0 : i64, tpu.core_type = #tpu.core_type<tc>, window_params = [{transform_indices = @transform_0, window_bounds = array<i64: 16, 2, 8, 256>}, {transform_indices = @transform_1, window_bounds = array<i64: 16, 2, 8, 256>}, {pipeline_mode = #tpu.pipeline_mode<synchronous>, transform_indices = @transform_2, window_bounds = array<i64: 1, 256>}, {pipeline_mode = #tpu.pipeline_mode<synchronous>, transform_indices = @transform_3, window_bounds = array<i64: 1, 256>}, {pipeline_mode = #tpu.pipeline_mode<synchronous>, transform_indices = @transform_4, window_bounds = array<i64: 1, 256>}, {pipeline_mode = #tpu.pipeline_mode<synchronous>, transform_indices = @transform_5, window_bounds = array<i64: 1, 256>}, {transform_indices = @transform_6, window_bounds = array<i64: 16, 8, 128>}]} {
    %c0 = arith.constant 0 : index
    %c0_0 = arith.constant 0 : index
    %c0_1 = arith.constant 0 : index
    %c0_2 = arith.constant 0 : index
    %0 = vector.load %arg1[%c0, %c0_0, %c0_1, %c0_2] : memref<16x2x8x256xf32, #tpu.memory_space<vmem>>, vector<16x2x8x256xf32>
    %c0_3 = arith.constant 0 : index
    %c0_4 = arith.constant 0 : index
    %1 = vector.load %arg3[%c0_3, %c0_4] : memref<1x256xf32, #tpu.memory_space<vmem>>, vector<1x256xf32>
    %2 = vector.shape_cast %1 : vector<1x256xf32> to vector<1x1x1x256xf32>
    %3 = vector.broadcast %2 : vector<1x1x1x256xf32> to vector<16x2x8x256xf32>
    %4 = arith.mulf %0, %3 : vector<16x2x8x256xf32>
    %c0_5 = arith.constant 0 : index
    %c0_6 = arith.constant 0 : index
    %5 = vector.load %arg4[%c0_5, %c0_6] : memref<1x256xf32, #tpu.memory_space<vmem>>, vector<1x256xf32>
    %6 = vector.shape_cast %5 : vector<1x256xf32> to vector<1x1x1x256xf32>
    %7 = vector.broadcast %6 : vector<1x1x1x256xf32> to vector<16x2x8x256xf32>
    %8 = arith.addf %4, %7 : vector<16x2x8x256xf32>
    %c0_7 = arith.constant 0 : index
    %c0_8 = arith.constant 0 : index
    %c0_9 = arith.constant 0 : index
    %c0_10 = arith.constant 0 : index
    %9 = vector.load %arg2[%c0_7, %c0_8, %c0_9, %c0_10] : memref<16x2x8x256xf32, #tpu.memory_space<vmem>>, vector<16x2x8x256xf32>
    %c0_11 = arith.constant 0 : index
    %c0_12 = arith.constant 0 : index
    %10 = vector.load %arg5[%c0_11, %c0_12] : memref<1x256xf32, #tpu.memory_space<vmem>>, vector<1x256xf32>
    %11 = vector.shape_cast %10 : vector<1x256xf32> to vector<1x1x1x256xf32>
    %12 = vector.broadcast %11 : vector<1x1x1x256xf32> to vector<16x2x8x256xf32>
    %13 = arith.mulf %9, %12 : vector<16x2x8x256xf32>
    %14 = arith.addf %8, %13 : vector<16x2x8x256xf32>
    %c0_13 = arith.constant 0 : index
    %c0_14 = arith.constant 0 : index
    %15 = vector.load %arg6[%c0_13, %c0_14] : memref<1x256xf32, #tpu.memory_space<vmem>>, vector<1x256xf32>
    %16 = vector.shape_cast %15 : vector<1x256xf32> to vector<1x1x1x256xf32>
    %17 = vector.broadcast %16 : vector<1x1x1x256xf32> to vector<16x2x8x256xf32>
    %18 = arith.addf %14, %17 : vector<16x2x8x256xf32>
    %cst = arith.constant 0.000000e+00 : f32
    %19 = vector.broadcast %cst : f32 to vector<16x2x8x256xf32>
    %20 = arith.maximumf %18, %19 : vector<16x2x8x256xf32>
    %21 = vector.extract_strided_slice %20 {offsets = [0, 0, 0, 0], sizes = [16, 1, 8, 256], strides = [1, 1, 1, 1]} : vector<16x2x8x256xf32> to vector<16x1x8x256xf32>
    %22 = vector.shape_cast %21 : vector<16x1x8x256xf32> to vector<16x8x256xf32>
    %23 = vector.extract_strided_slice %20 {offsets = [0, 1, 0, 0], sizes = [16, 1, 8, 256], strides = [1, 1, 1, 1]} : vector<16x2x8x256xf32> to vector<16x1x8x256xf32>
    %24 = vector.shape_cast %23 : vector<16x1x8x256xf32> to vector<16x8x256xf32>
    %25 = arith.maximumf %22, %24 : vector<16x8x256xf32>
    %26 = vector.extract_strided_slice %25 {offsets = [0, 0, 0], sizes = [16, 8, 128], strides = [1, 1, 1]} : vector<16x8x256xf32> to vector<16x8x128xf32>
    %27 = vector.extract_strided_slice %25 {offsets = [0, 0, 128], sizes = [16, 8, 128], strides = [1, 1, 1]} : vector<16x8x256xf32> to vector<16x8x128xf32>
    %28 = arith.maximumf %26, %27 : vector<16x8x128xf32>
    %c0_15 = arith.constant 0 : index
    %c0_16 = arith.constant 0 : index
    %c0_17 = arith.constant 0 : index
    %29 = vector.load %arg7[%c0_15, %c0_16, %c0_17] : memref<16x8x128xf32, #tpu.memory_space<vmem>>, vector<16x8x128xf32>
    tpu.vector_store %arg7[%c0_15, %c0_16, %c0_17], %28 {strides = array<i32>} : memref<16x8x128xf32, #tpu.memory_space<vmem>>, vector<16x8x128xf32>,
    return
  }
  func.func @transform_0(%arg0: i32) -> (i32, i32, i32, i32) {
    %c0_i32 = arith.constant 0 : i32
    %c0_i32_0 = arith.constant 0 : i32
    %c0_i32_1 = arith.constant 0 : i32
    %c0_i32_2 = arith.constant 0 : i32
    return %arg0, %c0_i32, %c0_i32_0, %c0_i32_1 : i32, i32, i32, i32
  }
  func.func @transform_1(%arg0: i32) -> (i32, i32, i32, i32) {
    %c0_i32 = arith.constant 0 : i32
    %c0_i32_0 = arith.constant 0 : i32
    %c0_i32_1 = arith.constant 0 : i32
    %c0_i32_2 = arith.constant 0 : i32
    return %arg0, %c0_i32, %c0_i32_0, %c0_i32_1 : i32, i32, i32, i32
  }
  func.func @transform_2(%arg0: i32) -> (i32, i32) {
    %c0_i32 = arith.constant 0 : i32
    %c0_i32_0 = arith.constant 0 : i32
    %c0_i32_1 = arith.constant 0 : i32
    return %c0_i32, %c0_i32_0 : i32, i32
  }
  func.func @transform_3(%arg0: i32) -> (i32, i32) {
    %c0_i32 = arith.constant 0 : i32
    %c0_i32_0 = arith.constant 0 : i32
    %c0_i32_1 = arith.constant 0 : i32
    return %c0_i32, %c0_i32_0 : i32, i32
  }
  func.func @transform_4(%arg0: i32) -> (i32, i32) {
    %c0_i32 = arith.constant 0 : i32
    %c0_i32_0 = arith.constant 0 : i32
    %c0_i32_1 = arith.constant 0 : i32
    return %c0_i32, %c0_i32_0 : i32, i32
  }
  func.func @transform_5(%arg0: i32) -> (i32, i32) {
    %c0_i32 = arith.constant 0 : i32
    %c0_i32_0 = arith.constant 0 : i32
    %c0_i32_1 = arith.constant 0 : i32
    return %c0_i32, %c0_i32_0 : i32, i32
  }
  func.func @transform_6(%arg0: i32) -> (i32, i32, i32) {
    %c0_i32 = arith.constant 0 : i32
    %c0_i32_0 = arith.constant 0 : i32
    %c0_i32_1 = arith.constant 0 : i32
    return %arg0, %c0_i32, %c0_i32_0 : i32, i32, i32
  }
}

</mosaic_0001>

<llo_original>
// kernel: basic_block_forward.5
$region0: #{basic_block_forward.5}
  #allocation0 [shape = 'u32[]', space=smem, size = 0x4, offset = 0x4, fixed_abs, tag = 'smem constant byte address 0x4 - core index']
  #allocation1 [shape = 'u32[144,128]{1,0:T(1,128)}', space=vmem, size = 0x12000, scoped, tag = 'internal scratch']
  %s0 = inlined_call_operand.vmem [shape: f32[512,128], index: 0, kind: input, shape index: {}]
  %s1 = inlined_call_operand.vmem [shape: f32[1,128], index: 1, kind: input, shape index: {}]
  %s2 = inlined_call_operand.vmem [shape: f32[1,128], index: 2, kind: input, shape index: {}]
  %s3 = inlined_call_operand.vmem [shape: bf16[512,128], index: 3, kind: output, shape index: {}]
  %s4 = sld [smem:[#allocation0]]
  $region45: #{basic_block_forward.5} parent=0
    _
  %s6 = ssub.s32 1, %s4
  %s7 = scalar_select 0, %s6, %s4
  loop: start=0, step=1, limit=4
  $region2: #{basic_block_forward.5} parent=0 // loop_pre_header
    _
  $region3: #{basic_block_forward.5} parent=0 // loop_header
    %s9 = sphi 0, %s13
    %p10 = scmp.ge.s32.totalorder %s9, 4
    %s19 = sphi 0, %s21
    %s22 = sphi 0, %s19
    %s23 = sphi 0, %s22
    %s39 = sphi 0, %s23
    %s43 = sphi 0, %s43
    %s45 = sphi 0, %s43
    %s46 = sphi 0, %s45
    %s60 = sphi 0, %s46
    %s64 = sphi 0, %s64
    %s66 = sphi 0, %s64
    %s67 = sphi 0, %s66
    %s81 = sphi 0, %s67
    %s87 = sphi 0, %s89
    %s90 = sphi 0, %s87
    %s91 = sphi 0, %s90
    %s107 = sphi 0, %s91
  $region4: #{basic_block_forward.5} parent=0 // loop_header_branch
    %12 = sbr.rel (%p10) target = $region8
  $region5: #{basic_block_forward.5} parent=0 // loop_body
    %s14 = ssub.s32 %s9, 1
    %s15 = ssub.s32 %s9, 2
    %s16 = sadd.s32 %s9, 1
    %s17 = ssub.s32 %s9, %s16
    %p18 = scmp.eq.s32.totalorder %s17, 0
    %s20 = sadd.s32 %s19, 1
    %s21 = scalar_select %p18, %s19, %s20
    %p24 = pneg %p18
    %p25 = scmp.eq.s32.totalorder %s9, 1
    %p26 = por %p24, %p25
    %p27 = scmp.ne.s32.totalorder %s19, %s22
    %p28 = scmp.eq.s32.totalorder %s9, 0
    %p29 = por %p27, %p28
    %p30 = scmp.ne.s32.totalorder %s19, %s22
    %p31 = scmp.eq.s32.totalorder %s14, 1
    %p32 = por %p30, %p31
    %p33 = scmp.ne.s32.totalorder %s22, %s23
    %p34 = scmp.eq.s32.totalorder %s14, 0
    %p35 = por %p33, %p34
    %p36 = scmp.ne.s32.totalorder %s22, %s23
    %p37 = scmp.eq.s32.totalorder %s15, 1
    %p38 = por %p36, %p37
    %p40 = scmp.ne.s32.totalorder %s23, %s39
    %p41 = scmp.eq.s32.totalorder %s15, 0
    %p42 = por %p40, %p41
    %s44 = sadd.s32 %s43, 1
    %p47 = scmp.eq.s32.totalorder %s9, 1
    %p48 = scmp.ne.s32.totalorder %s43, %s45
    %p49 = scmp.eq.s32.totalorder %s9, 0
    %p50 = por %p48, %p49
    %p51 = scmp.ne.s32.totalorder %s43, %s45
    %p52 = scmp.eq.s32.totalorder %s14, 1
    %p53 = por %p51, %p52
    %p54 = scmp.ne.s32.totalorder %s45, %s46
    %p55 = scmp.eq.s32.totalorder %s14, 0
    %p56 = por %p54, %p55
    %p57 = scmp.ne.s32.totalorder %s45, %s46
    %p58 = scmp.eq.s32.totalorder %s15, 1
    %p59 = por %p57, %p58
    %p61 = scmp.ne.s32.totalorder %s46, %s60
    %p62 = scmp.eq.s32.totalorder %s15, 0
    %p63 = por %p61, %p62
    %s65 = sadd.s32 %s64, 1
    %p68 = scmp.eq.s32.totalorder %s9, 1
    %p69 = scmp.ne.s32.totalorder %s64, %s66
    %p70 = scmp.eq.s32.totalorder %s9, 0
    %p71 = por %p69, %p70
    %p72 = scmp.ne.s32.totalorder %s64, %s66
    %p73 = scmp.eq.s32.totalorder %s14, 1
    %p74 = por %p72, %p73
    %p75 = scmp.ne.s32.totalorder %s66, %s67
    %p76 = scmp.eq.s32.totalorder %s14, 0
    %p77 = por %p75, %p76
    %p78 = scmp.ne.s32.totalorder %s66, %s67
    %p79 = scmp.eq.s32.totalorder %s15, 1
    %p80 = por %p78, %p79
    %p82 = scmp.ne.s32.totalorder %s67, %s81
    %p83 = scmp.eq.s32.totalorder %s15, 0
    %p84 = por %p82, %p83
    %s85 = ssub.s32 %s9, %s16
    %p86 = scmp.eq.s32.totalorder %s85, 0
    %s88 = sadd.s32 %s87, 1
    %s89 = scalar_select %p86, %s87, %s88
    %p92 = pneg %p86
    %p93 = scmp.eq.s32.totalorder %s9, 1
    %p94 = por %p92, %p93
    %p95 = scmp.ne.s32.totalorder %s87, %s90
    %p96 = scmp.eq.s32.totalorder %s9, 0
    %p97 = por %p95, %p96
    %p98 = scmp.ne.s32.totalorder %s87, %s90
    %p99 = scmp.eq.s32.totalorder %s14, 1
    %p100 = por %p98, %p99
    %p101 = scmp.ne.s32.totalorder %s90, %s91
    %p102 = scmp.eq.s32.totalorder %s14, 0
    %p103 = por %p101, %p102
    %p104 = scmp.ne.s32.totalorder %s90, %s91
    %p105 = scmp.eq.s32.totalorder %s15, 1
    %p106 = por %p104, %p105
    %p108 = scmp.ne.s32.totalorder %s91, %s107
    %p109 = scmp.eq.s32.totalorder %s15, 0
    %p110 = por %p108, %p109
    %p111 = scmp.le.s32.totalorder 1, %s9
    %p112 = scmp.lt.s32.totalorder %s9, 3
    %p113 = pnand %p111, %p112
    %p114 = pneg %p113
    // Predicated region
    $region9: #{basic_block_forward.5} parent=5 // pred_check
      _
    $region10: #{basic_block_forward.5} parent=5 // pred_check_branch
      %116 = sbr.rel (%p113) target = $region12
    $region11: #{basic_block_forward.5} parent=5 // pred_region
      %s117 = ssub.s32 %s9, 1
      // Predicated region
      $region13: #{basic_block_forward.5} parent=11 // pred_check
        %p118 = pneg %p56
      $region14: #{basic_block_forward.5} parent=11 // pred_check_branch
        %120 = sbr.rel (%p118) target = $region16
      $region15: #{basic_block_forward.5} parent=11 // pred_region
        _
      $region16: #{basic_block_forward.5} parent=11 // pred_fallthru
        _
      // Predicated region
      $region17: #{basic_block_forward.5} parent=11 // pred_check
        %p121 = pneg %p77
      $region18: #{basic_block_forward.5} parent=11 // pred_check_branch
        %123 = sbr.rel (%p121) target = $region20
      $region19: #{basic_block_forward.5} parent=11 // pred_region
        _
      $region20: #{basic_block_forward.5} parent=11 // pred_fallthru
        _
    $region12: #{basic_block_forward.5} parent=5 // pred_fallthru
      _
    %p124 = scmp.lt.s32.totalorder %s9, 2
    // Predicated region
    $region21: #{basic_block_forward.5} parent=5 // pred_check
      %p125 = pneg %p124
    $region22: #{basic_block_forward.5} parent=5 // pred_check_branch
      %127 = sbr.rel (%p125) target = $region24
    $region23: #{basic_block_forward.5} parent=5 // pred_region
      // Predicated region
      $region25: #{basic_block_forward.5} parent=23 // pred_check
        %p128 = pneg %p29
      $region26: #{basic_block_forward.5} parent=23 // pred_check_branch
        %130 = sbr.rel (%p128) target = $region28
      $region27: #{basic_block_forward.5} parent=23 // pred_region
        %s131 = smul.u32 32, %s9
        %p132 = scmp.lt.s32.totalorder %s131, 63
        %s133 = scalar_select %p132, %s131, 63
        %s134 = smul.addr %s133, 8
        %s135 = scalar_lea.vmem %s0, %s134
        %s136 = smul.u32 32, %s9
      $region28: #{basic_block_forward.5} parent=23 // pred_fallthru
        _
    $region24: #{basic_block_forward.5} parent=5 // pred_fallthru
      _
    %p137 = scmp.le.s32.totalorder 1, %s9
    %p138 = scmp.lt.s32.totalorder %s9, 3
    %p139 = pnand %p137, %p138
    %p140 = pneg %p139
    // Predicated region
    $region29: #{basic_block_forward.5} parent=5 // pred_check
      _
    $region30: #{basic_block_forward.5} parent=5 // pred_check_branch
      %142 = sbr.rel (%p139) target = $region32
    $region31: #{basic_block_forward.5} parent=5 // pred_region
      %s143 = ssub.s32 %s9, 1
      %s144 = smul.u32 32, %s14
      %p145 = scmp.lt.s32.totalorder %s144, 63
      %s146 = scalar_select %p145, %s144, 63
      %s147 = smul.addr %s146, 8
      %s148 = scalar_lea.vmem %s0, %s147
      %p149 = pneg %p35
      %p150 = pneg %p32
      %p151 = pneg %p56
      %p152 = pneg %p53
      %p153 = pneg %p77
      %p154 = pneg %p74
      %p155 = pneg %p103
      %p156 = pneg %p100
      %s157 = smul.u32 32, %s14
      %p158 = scmp.lt.s32.totalorder %s157, 63
      %s159 = scalar_select %p158, %s157, 63
      %s160 = smul.addr %s159, 4
      %s161 = scalar_lea.vmem %s3, %s160
      %s162 = smul.u32 32, %s14
      %p163 = scmp.lt.s32.totalorder %s162, 63
      %s164 = scalar_select %p163, %s162, 63
      %s165 = smul.addr %s164, 8
      %s166 = scalar_lea.vmem %s0, %s165
      %s167 = smul.u32 32, %s14
      %s168 = smul.u32 32, %s14
      %p169 = scmp.lt.s32.totalorder %s168, 63
      %s170 = scalar_select %p169, %s168, 63
      %s171 = smul.addr %s170, 4
      %s172 = scalar_lea.vmem %s3, %s171
      %s173 = smul.u32 32, %s14
      %v174 = vld [vmem:[%s166] sm:$0xff]
      %v175 = vld [vmem:[%s166 + $0x8] sm:$0xff]
      %v176 = vld [vmem:[%s166 + $0x10] sm:$0xff]
      %v177 = vld [vmem:[%s166 + $0x18] sm:$0xff]
      %v178 = vld [vmem:[%s166 + $0x20] sm:$0xff]
      %v179 = vld [vmem:[%s166 + $0x28] sm:$0xff]
      %v180 = vld [vmem:[%s166 + $0x30] sm:$0xff]
      %v181 = vld [vmem:[%s166 + $0x38] sm:$0xff]
      %v182 = vld [vmem:[%s166 + $0x40] sm:$0xff]
      %v183 = vld [vmem:[%s166 + $0x48] sm:$0xff]
      %v184 = vld [vmem:[%s166 + $0x50] sm:$0xff]
      %v185 = vld [vmem:[%s166 + $0x58] sm:$0xff]
      %v186 = vld [vmem:[%s166 + $0x60] sm:$0xff]
      %v187 = vld [vmem:[%s166 + $0x68] sm:$0xff]
      %v188 = vld [vmem:[%s166 + $0x70] sm:$0xff]
      %v189 = vld [vmem:[%s166 + $0x78] sm:$0xff]
      %v190 = vld [vmem:[%s166 + $0x80] sm:$0xff]
      %v191 = vld [vmem:[%s166 + $0x88] sm:$0xff]
      %v192 = vld [vmem:[%s166 + $0x90] sm:$0xff]
      %v193 = vld [vmem:[%s166 + $0x98] sm:$0xff]
      %v194 = vld [vmem:[%s166 + $0xa0] sm:$0xff]
      %v195 = vld [vmem:[%s166 + $0xa8] sm:$0xff]
      %v196 = vld [vmem:[%s166 + $0xb0] sm:$0xff]
      %v197 = vld [vmem:[%s166 + $0xb8] sm:$0xff]
      %v198 = vld [vmem:[%s166 + $0xc0] sm:$0xff]
      %v199 = vld [vmem:[%s166 + $0xc8] sm:$0xff]
      %v200 = vld [vmem:[%s166 + $0xd0] sm:$0xff]
      %v201 = vld [vmem:[%s166 + $0xd8] sm:$0xff]
      %v202 = vld [vmem:[%s166 + $0xe0] sm:$0xff]
      %v203 = vld [vmem:[%s166 + $0xe8] sm:$0xff]
      %v204 = vld [vmem:[%s166 + $0xf0] sm:$0xff]
      %v205 = vld [vmem:[%s166 + $0xf8] sm:$0xff]
      %v206 = vld [vmem:[%s1] sm:$0x1]
      %v208 = vlaneseq
      %v209 = vshrl.u32 %v208, 7
      %v210 = vsub.s32 0, %v209
      %v211 = vrot.slane %v206, %v210
      %v213 = vmul.f32 %v174, %v211
      %v214 = vmul.f32 %v175, %v211
      %v215 = vmul.f32 %v176, %v211
      %v216 = vmul.f32 %v177, %v211
      %v217 = vmul.f32 %v178, %v211
      %v218 = vmul.f32 %v179, %v211
      %v219 = vmul.f32 %v180, %v211
      %v220 = vmul.f32 %v181, %v211
      %v221 = vmul.f32 %v182, %v211
      %v222 = vmul.f32 %v183, %v211
      %v223 = vmul.f32 %v184, %v211
      %v224 = vmul.f32 %v185, %v211
      %v225 = vmul.f32 %v186, %v211
      %v226 = vmul.f32 %v187, %v211
      %v227 = vmul.f32 %v188, %v211
      %v228 = vmul.f32 %v189, %v211
      %v229 = vmul.f32 %v190, %v211
      %v230 = vmul.f32 %v191, %v211
      %v231 = vmul.f32 %v192, %v211
      %v232 = vmul.f32 %v193, %v211
      %v233 = vmul.f32 %v194, %v211
      %v234 = vmul.f32 %v195, %v211
      %v235 = vmul.f32 %v196, %v211
      %v236 = vmul.f32 %v197, %v211
      %v237 = vmul.f32 %v198, %v211
      %v238 = vmul.f32 %v199, %v211
      %v239 = vmul.f32 %v200, %v211
      %v240 = vmul.f32 %v201, %v211
      %v241 = vmul.f32 %v202, %v211
      %v242 = vmul.f32 %v203, %v211
      %v243 = vmul.f32 %v204, %v211
      %v244 = vmul.f32 %v205, %v211
      %v245 = vld [vmem:[%s2] sm:$0x1]
      %v247 = vlaneseq
      %v248 = vshrl.u32 %v247, 7
      %v249 = vsub.s32 0, %v248
      %v250 = vrot.slane %v245, %v249
      %v252 = vadd.f32 %v213, %v250
      %v253 = vadd.f32 %v214, %v250
      %v254 = vadd.f32 %v215, %v250
      %v255 = vadd.f32 %v216, %v250
      %v256 = vadd.f32 %v217, %v250
      %v257 = vadd.f32 %v218, %v250
      %v258 = vadd.f32 %v219, %v250
      %v259 = vadd.f32 %v220, %v250
      %v260 = vadd.f32 %v221, %v250
      %v261 = vadd.f32 %v222, %v250
      %v262 = vadd.f32 %v223, %v250
      %v263 = vadd.f32 %v224, %v250
      %v264 = vadd.f32 %v225, %v250
      %v265 = vadd.f32 %v226, %v250
      %v266 = vadd.f32 %v227, %v250
      %v267 = vadd.f32 %v228, %v250
      %v268 = vadd.f32 %v229, %v250
      %v269 = vadd.f32 %v230, %v250
      %v270 = vadd.f32 %v231, %v250
      %v271 = vadd.f32 %v232, %v250
      %v272 = vadd.f32 %v233, %v250
      %v273 = vadd.f32 %v234, %v250
      %v274 = vadd.f32 %v235, %v250
      %v275 = vadd.f32 %v236, %v250
      %v276 = vadd.f32 %v237, %v250
      %v277 = vadd.f32 %v238, %v250
      %v278 = vadd.f32 %v239, %v250
      %v279 = vadd.f32 %v240, %v250
      %v280 = vadd.f32 %v241, %v250
      %v281 = vadd.f32 %v242, %v250
      %v282 = vadd.f32 %v243, %v250
      %v283 = vadd.f32 %v244, %v250
      %v284 = vmax.f32 %v252, 0.0
      %v285 = vmax.f32 %v253, 0.0
      %v286 = vmax.f32 %v254, 0.0
      %v287 = vmax.f32 %v255, 0.0
      %v288 = vmax.f32 %v256, 0.0
      %v289 = vmax.f32 %v257, 0.0
      %v290 = vmax.f32 %v258, 0.0
      %v291 = vmax.f32 %v259, 0.0
      %v292 = vmax.f32 %v260, 0.0
      %v293 = vmax.f32 %v261, 0.0
      %v294 = vmax.f32 %v262, 0.0
      %v295 = vmax.f32 %v263, 0.0
      %v296 = vmax.f32 %v264, 0.0
      %v297 = vmax.f32 %v265, 0.0
      %v298 = vmax.f32 %v266, 0.0
      %v299 = vmax.f32 %v267, 0.0
      %v300 = vmax.f32 %v268, 0.0
      %v301 = vmax.f32 %v269, 0.0
      %v302 = vmax.f32 %v270, 0.0
      %v303 = vmax.f32 %v271, 0.0
      %v304 = vmax.f32 %v272, 0.0
      %v305 = vmax.f32 %v273, 0.0
      %v306 = vmax.f32 %v274, 0.0
      %v307 = vmax.f32 %v275, 0.0
      %v308 = vmax.f32 %v276, 0.0
      %v309 = vmax.f32 %v277, 0.0
      %v310 = vmax.f32 %v278, 0.0
      %v311 = vmax.f32 %v279, 0.0
      %v312 = vmax.f32 %v280, 0.0
      %v313 = vmax.f32 %v281, 0.0
      %v314 = vmax.f32 %v282, 0.0
      %v315 = vmax.f32 %v283, 0.0
      %v316 = vpack.c.bf16 %v285, %v284
      %v317 = vpack.c.bf16 %v287, %v286
      %v318 = vpack.c.bf16 %v289, %v288
      %v319 = vpack.c.bf16 %v291, %v290
      %v320 = vpack.c.bf16 %v293, %v292
      %v321 = vpack.c.bf16 %v295, %v294
      %v322 = vpack.c.bf16 %v297, %v296
      %v323 = vpack.c.bf16 %v299, %v298
      %v324 = vpack.c.bf16 %v301, %v300
      %v325 = vpack.c.bf16 %v303, %v302
      %v326 = vpack.c.bf16 %v305, %v304
      %v327 = vpack.c.bf16 %v307, %v306
      %v328 = vpack.c.bf16 %v309, %v308
      %v329 = vpack.c.bf16 %v311, %v310
      %v330 = vpack.c.bf16 %v313, %v312
      %v331 = vpack.c.bf16 %v315, %v314
      %v348 = vunpack.c.l.b16 %v316
      %v349 = vunpack.c.h.b16 %v316
      %v350 = vunpack.c.l.b16 %v317
      %v351 = vunpack.c.h.b16 %v317
      %v352 = vunpack.c.l.b16 %v318
      %v353 = vunpack.c.h.b16 %v318
      %v354 = vunpack.c.l.b16 %v319
      %v355 = vunpack.c.h.b16 %v319
      %v356 = vunpack.c.l.b16 %v320
      %v357 = vunpack.c.h.b16 %v320
      %v358 = vunpack.c.l.b16 %v321
      %v359 = vunpack.c.h.b16 %v321
      %v360 = vunpack.c.l.b16 %v322
      %v361 = vunpack.c.h.b16 %v322
      %v362 = vunpack.c.l.b16 %v323
      %v363 = vunpack.c.h.b16 %v323
      %v364 = vunpack.c.l.b16 %v324
      %v365 = vunpack.c.h.b16 %v324
      %v366 = vunpack.c.l.b16 %v325
      %v367 = vunpack.c.h.b16 %v325
      %v368 = vunpack.c.l.b16 %v326
      %v369 = vunpack.c.h.b16 %v326
      %v370 = vunpack.c.l.b16 %v327
      %v371 = vunpack.c.h.b16 %v327
      %v372 = vunpack.c.l.b16 %v328
      %v373 = vunpack.c.h.b16 %v328
      %v374 = vunpack.c.l.b16 %v329
      %v375 = vunpack.c.h.b16 %v329
      %v376 = vunpack.c.l.b16 %v330
      %v377 = vunpack.c.h.b16 %v330
      %v378 = vunpack.c.l.b16 %v331
      %v379 = vunpack.c.h.b16 %v331
      %v380 = vpack.c.b16 %v348, %v348
      %v381 = vpack.c.b16 %v349, %v349
      %v382 = vpack.c.b16 %v350, %v350
      %v383 = vpack.c.b16 %v351, %v351
      %v384 = vpack.c.b16 %v352, %v352
      %v385 = vpack.c.b16 %v353, %v353
      %v386 = vpack.c.b16 %v354, %v354
      %v387 = vpack.c.b16 %v355, %v355
      %v388 = vpack.c.b16 %v356, %v356
      %v389 = vpack.c.b16 %v357, %v357
      %v390 = vpack.c.b16 %v358, %v358
      %v391 = vpack.c.b16 %v359, %v359
      %v392 = vpack.c.b16 %v360, %v360
      %v393 = vpack.c.b16 %v361, %v361
      %v394 = vpack.c.b16 %v362, %v362
      %v395 = vpack.c.b16 %v363, %v363
      %v396 = vpack.c.b16 %v364, %v364
      %v397 = vpack.c.b16 %v365, %v365
      %v398 = vpack.c.b16 %v366, %v366
      %v399 = vpack.c.b16 %v367, %v367
      %v400 = vpack.c.b16 %v368, %v368
      %v401 = vpack.c.b16 %v369, %v369
      %v402 = vpack.c.b16 %v370, %v370
      %v403 = vpack.c.b16 %v371, %v371
      %v404 = vpack.c.b16 %v372, %v372
      %v405 = vpack.c.b16 %v373, %v373
      %v406 = vpack.c.b16 %v374, %v374
      %v407 = vpack.c.b16 %v375, %v375
      %v408 = vpack.c.b16 %v376, %v376
      %v409 = vpack.c.b16 %v377, %v377
      %v410 = vpack.c.b16 %v378, %v378
      %v411 = vpack.c.b16 %v379, %v379
      %444 = vst [vmem:[%s172] sm:$0xf] %v380
      %445 = vst [vmem:[%s172 + $0x4] sm:$0xf] %v381
      %446 = vst [vmem:[%s172 + $0x8] sm:$0xf] %v382
      %447 = vst [vmem:[%s172 + $0xc] sm:$0xf] %v383
      %448 = vst [vmem:[%s172 + $0x10] sm:$0xf] %v384
      %449 = vst [vmem:[%s172 + $0x14] sm:$0xf] %v385
      %450 = vst [vmem:[%s172 + $0x18] sm:$0xf] %v386
      %451 = vst [vmem:[%s172 + $0x1c] sm:$0xf] %v387
      %452 = vst [vmem:[%s172 + $0x20] sm:$0xf] %v388
      %453 = vst [vmem:[%s172 + $0x24] sm:$0xf] %v389
      %454 = vst [vmem:[%s172 + $0x28] sm:$0xf] %v390
      %455 = vst [vmem:[%s172 + $0x2c] sm:$0xf] %v391
      %456 = vst [vmem:[%s172 + $0x30] sm:$0xf] %v392
      %457 = vst [vmem:[%s172 + $0x34] sm:$0xf] %v393
      %458 = vst [vmem:[%s172 + $0x38] sm:$0xf] %v394
      %459 = vst [vmem:[%s172 + $0x3c] sm:$0xf] %v395
      %460 = vst [vmem:[%s172 + $0x40] sm:$0xf] %v396
      %461 = vst [vmem:[%s172 + $0x44] sm:$0xf] %v397
      %462 = vst [vmem:[%s172 + $0x48] sm:$0xf] %v398
      %463 = vst [vmem:[%s172 + $0x4c] sm:$0xf] %v399
      %464 = vst [vmem:[%s172 + $0x50] sm:$0xf] %v400
      %465 = vst [vmem:[%s172 + $0x54] sm:$0xf] %v401
      %466 = vst [vmem:[%s172 + $0x58] sm:$0xf] %v402
      %467 = vst [vmem:[%s172 + $0x5c] sm:$0xf] %v403
      %468 = vst [vmem:[%s172 + $0x60] sm:$0xf] %v404
      %469 = vst [vmem:[%s172 + $0x64] sm:$0xf] %v405
      %470 = vst [vmem:[%s172 + $0x68] sm:$0xf] %v406
      %471 = vst [vmem:[%s172 + $0x6c] sm:$0xf] %v407
      %472 = vst [vmem:[%s172 + $0x70] sm:$0xf] %v408
      %473 = vst [vmem:[%s172 + $0x74] sm:$0xf] %v409
      %474 = vst [vmem:[%s172 + $0x78] sm:$0xf] %v410
      %475 = vst [vmem:[%s172 + $0x7c] sm:$0xf] %v411
      %s476 = smul.u32 32, %s14
      %p477 = scmp.lt.s32.totalorder %s476, 63
      %s478 = scalar_select %p477, %s476, 63
      %s479 = smul.addr %s478, 4
      %s480 = scalar_lea.vmem %s3, %s479
      // Predicated region
      $region33: #{basic_block_forward.5} parent=31 // pred_check
        %p481 = pneg %p100
      $region34: #{basic_block_forward.5} parent=31 // pred_check_branch
        %483 = sbr.rel (%p481) target = $region36
      $region35: #{basic_block_forward.5} parent=31 // pred_region
        %s484 = smul.u32 32, %s14
      $region36: #{basic_block_forward.5} parent=31 // pred_fallthru
        _
    $region32: #{basic_block_forward.5} parent=5 // pred_fallthru
      _
    %p485 = scmp.le.s32.totalorder 2, %s9
    // Predicated region
    $region37: #{basic_block_forward.5} parent=5 // pred_check
      %p486 = pneg %p485
    $region38: #{basic_block_forward.5} parent=5 // pred_check_branch
      %488 = sbr.rel (%p486) target = $region40
    $region39: #{basic_block_forward.5} parent=5 // pred_region
      %s489 = ssub.s32 %s9, 2
      // Predicated region
      $region41: #{basic_block_forward.5} parent=39 // pred_check
        %p490 = pneg %p106
      $region42: #{basic_block_forward.5} parent=39 // pred_check_branch
        %492 = sbr.rel (%p490) target = $region44
      $region43: #{basic_block_forward.5} parent=39 // pred_region
        %s493 = smul.u32 32, %s15
        %p494 = scmp.lt.s32.totalorder %s493, 63
        %s495 = scalar_select %p494, %s493, 63
        %s496 = smul.addr %s495, 4
        %s497 = scalar_lea.vmem %s3, %s496
      $region44: #{basic_block_forward.5} parent=39 // pred_fallthru
        _
    $region40: #{basic_block_forward.5} parent=5 // pred_fallthru
      _
  $region6: #{basic_block_forward.5} parent=0 // loop_footer
    %s13 = sadd.s32 1, %s9
  $region7: #{basic_block_forward.5} parent=0 // loop_footer_branch
    %8 = sbr.rel target = $region3
  $region8: #{basic_block_forward.5} parent=0 // loop_exit
    _

// kernel: basic_block_forward.4
$region0: #{basic_block_forward.4}
  #allocation0 [shape = 'u32[]', space=smem, size = 0x4, offset = 0x4, fixed_abs, tag = 'smem constant byte address 0x4 - core index']
  #allocation1 [shape = 'u32[144,128]{1,0:T(1,128)}', space=vmem, size = 0x12000, scoped, tag = 'internal scratch']
  %s0 = inlined_call_operand.vmem [shape: bf16[512,128], index: 0, kind: input, shape index: {}]
  %s1 = inlined_call_operand.vmem [shape: bf16[128,128], index: 1, kind: input, shape index: {}]
  %s2 = inlined_call_operand.vmem [shape: f32[512,128], index: 2, kind: output, shape index: {0}]
  %s3 = inlined_call_operand.vmem [shape: f32[2,2,128], index: 3, kind: output, shape index: {1}]
  %4 = xla_tuple %s2, %s3
  %s5 = sld [smem:[#allocation0]]
  $region49: #{basic_block_forward.4} parent=0
    _
  %s7 = ssub.s32 1, %s5
  %s8 = scalar_select 0, %s7, %s5
  loop: start=0, step=1, limit=4
  $region2: #{basic_block_forward.4} parent=0 // loop_pre_header
    _
  $region3: #{basic_block_forward.4} parent=0 // loop_header
    %s10 = sphi 0, %s14
    %p11 = scmp.ge.s32.totalorder %s10, 4
    %s20 = sphi 0, %s22
    %s23 = sphi 0, %s20
    %s24 = sphi 0, %s23
    %s40 = sphi 0, %s24
    %s44 = sphi 0, %s44
    %s46 = sphi 0, %s44
    %s47 = sphi 0, %s46
    %s61 = sphi 0, %s47
    %s67 = sphi 0, %s69
    %s70 = sphi 0, %s67
    %s71 = sphi 0, %s70
    %s87 = sphi 0, %s71
    %s93 = sphi 0, %s95
    %s96 = sphi 0, %s93
    %s97 = sphi 0, %s96
    %s113 = sphi 0, %s97
  $region4: #{basic_block_forward.4} parent=0 // loop_header_branch
    %13 = sbr.rel (%p11) target = $region8
  $region5: #{basic_block_forward.4} parent=0 // loop_body
    %s15 = ssub.s32 %s10, 1
    %s16 = ssub.s32 %s10, 2
    %s17 = sadd.s32 %s10, 1
    %s18 = ssub.s32 %s10, %s17
    %p19 = scmp.eq.s32.totalorder %s18, 0
    %s21 = sadd.s32 %s20, 1
    %s22 = scalar_select %p19, %s20, %s21
    %p25 = pneg %p19
    %p26 = scmp.eq.s32.totalorder %s10, 1
    %p27 = por %p25, %p26
    %p28 = scmp.ne.s32.totalorder %s20, %s23
    %p29 = scmp.eq.s32.totalorder %s10, 0
    %p30 = por %p28, %p29
    %p31 = scmp.ne.s32.totalorder %s20, %s23
    %p32 = scmp.eq.s32.totalorder %s15, 1
    %p33 = por %p31, %p32
    %p34 = scmp.ne.s32.totalorder %s23, %s24
    %p35 = scmp.eq.s32.totalorder %s15, 0
    %p36 = por %p34, %p35
    %p37 = scmp.ne.s32.totalorder %s23, %s24
    %p38 = scmp.eq.s32.totalorder %s16, 1
    %p39 = por %p37, %p38
    %p41 = scmp.ne.s32.totalorder %s24, %s40
    %p42 = scmp.eq.s32.totalorder %s16, 0
    %p43 = por %p41, %p42
    %s45 = sadd.s32 %s44, 1
    %p48 = scmp.eq.s32.totalorder %s10, 1
    %p49 = scmp.ne.s32.totalorder %s44, %s46
    %p50 = scmp.eq.s32.totalorder %s10, 0
    %p51 = por %p49, %p50
    %p52 = scmp.ne.s32.totalorder %s44, %s46
    %p53 = scmp.eq.s32.totalorder %s15, 1
    %p54 = por %p52, %p53
    %p55 = scmp.ne.s32.totalorder %s46, %s47
    %p56 = scmp.eq.s32.totalorder %s15, 0
    %p57 = por %p55, %p56
    %p58 = scmp.ne.s32.totalorder %s46, %s47
    %p59 = scmp.eq.s32.totalorder %s16, 1
    %p60 = por %p58, %p59
    %p62 = scmp.ne.s32.totalorder %s47, %s61
    %p63 = scmp.eq.s32.totalorder %s16, 0
    %p64 = por %p62, %p63
    %s65 = ssub.s32 %s10, %s17
    %p66 = scmp.eq.s32.totalorder %s65, 0
    %s68 = sadd.s32 %s67, 1
    %s69 = scalar_select %p66, %s67, %s68
    %p72 = pneg %p66
    %p73 = scmp.eq.s32.totalorder %s10, 1
    %p74 = por %p72, %p73
    %p75 = scmp.ne.s32.totalorder %s67, %s70
    %p76 = scmp.eq.s32.totalorder %s10, 0
    %p77 = por %p75, %p76
    %p78 = scmp.ne.s32.totalorder %s67, %s70
    %p79 = scmp.eq.s32.totalorder %s15, 1
    %p80 = por %p78, %p79
    %p81 = scmp.ne.s32.totalorder %s70, %s71
    %p82 = scmp.eq.s32.totalorder %s15, 0
    %p83 = por %p81, %p82
    %p84 = scmp.ne.s32.totalorder %s70, %s71
    %p85 = scmp.eq.s32.totalorder %s16, 1
    %p86 = por %p84, %p85
    %p88 = scmp.ne.s32.totalorder %s71, %s87
    %p89 = scmp.eq.s32.totalorder %s16, 0
    %p90 = por %p88, %p89
    %s91 = ssub.s32 %s10, %s17
    %p92 = scmp.eq.s32.totalorder %s91, 0
    %s94 = sadd.s32 %s93, 1
    %s95 = scalar_select %p92, %s93, %s94
    %p98 = pneg %p92
    %p99 = scmp.eq.s32.totalorder %s10, 1
    %p100 = por %p98, %p99
    %p101 = scmp.ne.s32.totalorder %s93, %s96
    %p102 = scmp.eq.s32.totalorder %s10, 0
    %p103 = por %p101, %p102
    %p104 = scmp.ne.s32.totalorder %s93, %s96
    %p105 = scmp.eq.s32.totalorder %s15, 1
    %p106 = por %p104, %p105
    %p107 = scmp.ne.s32.totalorder %s96, %s97
    %p108 = scmp.eq.s32.totalorder %s15, 0
    %p109 = por %p107, %p108
    %p110 = scmp.ne.s32.totalorder %s96, %s97
    %p111 = scmp.eq.s32.totalorder %s16, 1
    %p112 = por %p110, %p111
    %p114 = scmp.ne.s32.totalorder %s97, %s113
    %p115 = scmp.eq.s32.totalorder %s16, 0
    %p116 = por %p114, %p115
    %p117 = scmp.le.s32.totalorder 1, %s10
    %p118 = scmp.lt.s32.totalorder %s10, 3
    %p119 = pnand %p117, %p118
    %p120 = pneg %p119
    // Predicated region
    $region9: #{basic_block_forward.4} parent=5 // pred_check
      _
    $region10: #{basic_block_forward.4} parent=5 // pred_check_branch
      %122 = sbr.rel (%p119) target = $region12
    $region11: #{basic_block_forward.4} parent=5 // pred_region
      %s123 = ssub.s32 %s10, 1
      // Predicated region
      $region13: #{basic_block_forward.4} parent=11 // pred_check
        %p124 = pneg %p57
      $region14: #{basic_block_forward.4} parent=11 // pred_check_branch
        %126 = sbr.rel (%p124) target = $region16
      $region15: #{basic_block_forward.4} parent=11 // pred_region
        _
      $region16: #{basic_block_forward.4} parent=11 // pred_fallthru
        _
    $region12: #{basic_block_forward.4} parent=5 // pred_fallthru
      _
    %p127 = scmp.lt.s32.totalorder %s10, 2
    // Predicated region
    $region17: #{basic_block_forward.4} parent=5 // pred_check
      %p128 = pneg %p127
    $region18: #{basic_block_forward.4} parent=5 // pred_check_branch
      %130 = sbr.rel (%p128) target = $region20
    $region19: #{basic_block_forward.4} parent=5 // pred_region
      // Predicated region
      $region21: #{basic_block_forward.4} parent=19 // pred_check
        %p131 = pneg %p30
      $region22: #{basic_block_forward.4} parent=19 // pred_check_branch
        %133 = sbr.rel (%p131) target = $region24
      $region23: #{basic_block_forward.4} parent=19 // pred_region
        %s134 = smul.u32 32, %s10
        %p135 = scmp.lt.s32.totalorder %s134, 63
        %s136 = scalar_select %p135, %s134, 63
        %s137 = smul.addr %s136, 4
        %s138 = scalar_lea.vmem %s0, %s137
        %s139 = smul.u32 32, %s10
      $region24: #{basic_block_forward.4} parent=19 // pred_fallthru
        _
    $region20: #{basic_block_forward.4} parent=5 // pred_fallthru
      _
    %p140 = scmp.le.s32.totalorder 1, %s10
    %p141 = scmp.lt.s32.totalorder %s10, 3
    %p142 = pnand %p140, %p141
    %p143 = pneg %p142
    // Predicated region
    $region25: #{basic_block_forward.4} parent=5 // pred_check
      _
    $region26: #{basic_block_forward.4} parent=5 // pred_check_branch
      %145 = sbr.rel (%p142) target = $region28
    $region27: #{basic_block_forward.4} parent=5 // pred_region
      %s146 = ssub.s32 %s10, 1
      %s147 = smul.u32 32, %s15
      %p148 = scmp.lt.s32.totalorder %s147, 63
      %s149 = scalar_select %p148, %s147, 63
      %s150 = smul.addr %s149, 4
      %s151 = scalar_lea.vmem %s0, %s150
      %p152 = pneg %p36
      %p153 = pneg %p33
      %p154 = pneg %p57
      %p155 = pneg %p54
      %p156 = pneg %p83
      %p157 = pneg %p80
      %s158 = smul.u32 32, %s15
      %p159 = scmp.lt.s32.totalorder %s158, 63
      %s160 = scalar_select %p159, %s158, 63
      %s161 = smul.addr %s160, 8
      %s162 = scalar_lea.vmem %s2, %s161
      %p163 = pneg %p109
      %p164 = pneg %p106
      %p165 = scmp.lt.s32.totalorder %s15, 1
      %s166 = scalar_select %p165, %s15, 1
      %s167 = smul.addr %s166, 2
      %s168 = scalar_lea.vmem %s3, %s167
      %s169 = smul.u32 32, %s15
      %p170 = scmp.lt.s32.totalorder %s169, 63
      %s171 = scalar_select %p170, %s169, 63
      %s172 = smul.addr %s171, 4
      %s173 = scalar_lea.vmem %s0, %s172
      %s174 = smul.u32 32, %s15
      %s175 = smul.u32 32, %s15
      %p176 = scmp.lt.s32.totalorder %s175, 63
      %s177 = scalar_select %p176, %s175, 63
      %s178 = smul.addr %s177, 8
      %s179 = scalar_lea.vmem %s2, %s178
      %s180 = smul.u32 32, %s15
      %p181 = scmp.lt.s32.totalorder %s15, 1
      %s182 = scalar_select %p181, %s15, 1
      %s183 = smul.addr %s182, 2
      %s184 = scalar_lea.vmem %s3, %s183
      %v186 = vld [vmem:[%s173] sm:$0xf]
      %v187 = vld [vmem:[%s173 + $0x4] sm:$0xf]
      %v188 = vld [vmem:[%s173 + $0x8] sm:$0xf]
      %v189 = vld [vmem:[%s173 + $0xc] sm:$0xf]
      %v190 = vld [vmem:[%s173 + $0x10] sm:$0xf]
      %v191 = vld [vmem:[%s173 + $0x14] sm:$0xf]
      %v192 = vld [vmem:[%s173 + $0x18] sm:$0xf]
      %v193 = vld [vmem:[%s173 + $0x1c] sm:$0xf]
      %v194 = vld [vmem:[%s173 + $0x20] sm:$0xf]
      %v195 = vld [vmem:[%s173 + $0x24] sm:$0xf]
      %v196 = vld [vmem:[%s173 + $0x28] sm:$0xf]
      %v197 = vld [vmem:[%s173 + $0x2c] sm:$0xf]
      %v198 = vld [vmem:[%s173 + $0x30] sm:$0xf]
      %v199 = vld [vmem:[%s173 + $0x34] sm:$0xf]
      %v200 = vld [vmem:[%s173 + $0x38] sm:$0xf]
      %v201 = vld [vmem:[%s173 + $0x3c] sm:$0xf]
      %v202 = vld [vmem:[%s173 + $0x40] sm:$0xf]
      %v203 = vld [vmem:[%s173 + $0x44] sm:$0xf]
      %v204 = vld [vmem:[%s173 + $0x48] sm:$0xf]
      %v205 = vld [vmem:[%s173 + $0x4c] sm:$0xf]
      %v206 = vld [vmem:[%s173 + $0x50] sm:$0xf]
      %v207 = vld [vmem:[%s173 + $0x54] sm:$0xf]
      %v208 = vld [vmem:[%s173 + $0x58] sm:$0xf]
      %v209 = vld [vmem:[%s173 + $0x5c] sm:$0xf]
      %v210 = vld [vmem:[%s173 + $0x60] sm:$0xf]
      %v211 = vld [vmem:[%s173 + $0x64] sm:$0xf]
      %v212 = vld [vmem:[%s173 + $0x68] sm:$0xf]
      %v213 = vld [vmem:[%s173 + $0x6c] sm:$0xf]
      %v214 = vld [vmem:[%s173 + $0x70] sm:$0xf]
      %v215 = vld [vmem:[%s173 + $0x74] sm:$0xf]
      %v216 = vld [vmem:[%s173 + $0x78] sm:$0xf]
      %v217 = vld [vmem:[%s173 + $0x7c] sm:$0xf]
      %v218 = vld [vmem:[%s1] sm:$0xf]
      %v219 = vld [vmem:[%s1 + $0x4] sm:$0xf]
      %v220 = vld [vmem:[%s1 + $0x8] sm:$0xf]
      %v221 = vld [vmem:[%s1 + $0xc] sm:$0xf]
      %v222 = vld [vmem:[%s1 + $0x10] sm:$0xf]
      %v223 = vld [vmem:[%s1 + $0x14] sm:$0xf]
      %v224 = vld [vmem:[%s1 + $0x18] sm:$0xf]
      %v225 = vld [vmem:[%s1 + $0x1c] sm:$0xf]
      %v226 = vld [vmem:[%s1 + $0x20] sm:$0xf]
      %v227 = vld [vmem:[%s1 + $0x24] sm:$0xf]
      %v228 = vld [vmem:[%s1 + $0x28] sm:$0xf]
      %v229 = vld [vmem:[%s1 + $0x2c] sm:$0xf]
      %v230 = vld [vmem:[%s1 + $0x30] sm:$0xf]
      %v231 = vld [vmem:[%s1 + $0x34] sm:$0xf]
      %v232 = vld [vmem:[%s1 + $0x38] sm:$0xf]
      %v233 = vld [vmem:[%s1 + $0x3c] sm:$0xf]
      %v266 = vunpack.c.l.b16 %v186
      %v267 = vunpack.c.l.b16 %v187
      %v268 = vunpack.c.l.b16 %v188
      %v269 = vunpack.c.l.b16 %v189
      %v270 = vunpack.c.l.b16 %v190
      %v271 = vunpack.c.l.b16 %v191
      %v272 = vunpack.c.l.b16 %v192
      %v273 = vunpack.c.l.b16 %v193
      %v274 = vunpack.c.l.b16 %v194
      %v275 = vunpack.c.l.b16 %v195
      %v276 = vunpack.c.l.b16 %v196
      %v277 = vunpack.c.l.b16 %v197
      %v278 = vunpack.c.l.b16 %v198
      %v279 = vunpack.c.l.b16 %v199
      %v280 = vunpack.c.l.b16 %v200
      %v281 = vunpack.c.l.b16 %v201
      %v282 = vunpack.c.l.b16 %v202
      %v283 = vunpack.c.l.b16 %v203
      %v284 = vunpack.c.l.b16 %v204
      %v285 = vunpack.c.l.b16 %v205
      %v286 = vunpack.c.l.b16 %v206
      %v287 = vunpack.c.l.b16 %v207
      %v288 = vunpack.c.l.b16 %v208
      %v289 = vunpack.c.l.b16 %v209
      %v290 = vunpack.c.l.b16 %v210
      %v291 = vunpack.c.l.b16 %v211
      %v292 = vunpack.c.l.b16 %v212
      %v293 = vunpack.c.l.b16 %v213
      %v294 = vunpack.c.l.b16 %v214
      %v295 = vunpack.c.l.b16 %v215
      %v296 = vunpack.c.l.b16 %v216
      %v297 = vunpack.c.l.b16 %v217
      %v298 = vpack.c.b16 %v267, %v266
      %v299 = vpack.c.b16 %v269, %v268
      %v300 = vpack.c.b16 %v271, %v270
      %v301 = vpack.c.b16 %v273, %v272
      %v302 = vpack.c.b16 %v275, %v274
      %v303 = vpack.c.b16 %v277, %v276
      %v304 = vpack.c.b16 %v279, %v278
      %v305 = vpack.c.b16 %v281, %v280
      %v306 = vpack.c.b16 %v283, %v282
      %v307 = vpack.c.b16 %v285, %v284
      %v308 = vpack.c.b16 %v287, %v286
      %v309 = vpack.c.b16 %v289, %v288
      %v310 = vpack.c.b16 %v291, %v290
      %v311 = vpack.c.b16 %v293, %v292
      %v312 = vpack.c.b16 %v295, %v294
      %v313 = vpack.c.b16 %v297, %v296
      %v346 = vunpack.c.l.b16 %v218
      %v347 = vunpack.c.l.b16 %v219
      %v348 = vunpack.c.l.b16 %v220
      %v349 = vunpack.c.l.b16 %v221
      %v350 = vunpack.c.l.b16 %v222
      %v351 = vunpack.c.l.b16 %v223
      %v352 = vunpack.c.l.b16 %v224
      %v353 = vunpack.c.l.b16 %v225
      %v354 = vunpack.c.l.b16 %v226
      %v355 = vunpack.c.l.b16 %v227
      %v356 = vunpack.c.l.b16 %v228
      %v357 = vunpack.c.l.b16 %v229
      %v358 = vunpack.c.l.b16 %v230
      %v359 = vunpack.c.l.b16 %v231
      %v360 = vunpack.c.l.b16 %v232
      %v361 = vunpack.c.l.b16 %v233
      %v362 = vpack.c.b16 %v347, %v346
      %v363 = vpack.c.b16 %v349, %v348
      %v364 = vpack.c.b16 %v351, %v350
      %v365 = vpack.c.b16 %v353, %v352
      %v366 = vpack.c.b16 %v355, %v354
      %v367 = vpack.c.b16 %v357, %v356
      %v368 = vpack.c.b16 %v359, %v358
      %v369 = vpack.c.b16 %v361, %v360
      %378 = vmatprep.subr.bf16.mxu0 0
      %379 = vmatpush1.bf16.msra.mxu0 %v369
      %380 = vmatprep.subr.bf16.mxu0 0
      %381 = vmatpush1.bf16.msra.mxu0 %v368
      %382 = vmatprep.subr.bf16.mxu0 0
      %383 = vmatpush1.bf16.msra.mxu0 %v367
      %384 = vmatprep.subr.bf16.mxu0 0
      %385 = vmatpush1.bf16.msra.mxu0 %v366
      %386 = vmatprep.subr.bf16.mxu0 0
      %387 = vmatpush1.bf16.msra.mxu0 %v365
      %388 = vmatprep.subr.bf16.mxu0 0
      %389 = vmatpush1.bf16.msra.mxu0 %v364
      %390 = vmatprep.subr.bf16.mxu0 0
      %391 = vmatpush1.bf16.msra.mxu0 %v363
      %392 = vmatprep.subr.bf16.mxu0 0
      %393 = vmatpush1.bf16.msra.mxu0 %v362
      %394 = vmatprep.subr.bf16.mxu0 0
      %395 = vmatpush2.bf16.msra.mxu0 0
      %396 = vmatprep.subr.bf16.mxu0 0
      %397 = vmatpush2.bf16.msra.mxu0 0
      %398 = vmatprep.subr.bf16.mxu0 0
      %399 = vmatpush2.bf16.msra.mxu0 0
      %400 = vmatprep.subr.bf16.mxu0 0
      %401 = vmatpush2.bf16.msra.mxu0 0
      %402 = vmatprep.subr.bf16.mxu0 0
      %403 = vmatpush2.bf16.msra.mxu0 0
      %404 = vmatprep.subr.bf16.mxu0 0
      %405 = vmatpush2.bf16.msra.mxu0 0
      %406 = vmatprep.subr.bf16.mxu0 0
      %407 = vmatpush2.bf16.msra.mxu0 0
      %408 = vmatprep.subr.bf16.mxu0 0
      %409 = vmatpush2.bf16.msra.mxu0 0
      %410 = vmatprep.mubr.bf16.mxu0 0
      %411 = vmatmul.mubr.bf16.gmra.mxu0 %v298
      %v412 = vpop.f32.mrf.mxu0
      %v413 = vadd.f32 0.0, %v412
      %v414 = vpop.f32.mrf.mxu0
      %v415 = vpop.f32.mrf.mxu0
      %v416 = vadd.f32 0.0, %v415
      %v417 = vpop.f32.mrf.mxu0
      %418 = vmatprep.mubr.bf16.mxu0 0
      %419 = vmatmul.mubr.bf16.gmra.mxu0 %v299
      %v420 = vpop.f32.mrf.mxu0
      %v421 = vadd.f32 0.0, %v420
      %v422 = vpop.f32.mrf.mxu0
      %v423 = vpop.f32.mrf.mxu0
      %v424 = vadd.f32 0.0, %v423
      %v425 = vpop.f32.mrf.mxu0
      %426 = vmatprep.mubr.bf16.mxu0 0
      %427 = vmatmul.mubr.bf16.gmra.mxu0 %v300
      %v428 = vpop.f32.mrf.mxu0
      %v429 = vadd.f32 0.0, %v428
      %v430 = vpop.f32.mrf.mxu0
      %v431 = vpop.f32.mrf.mxu0
      %v432 = vadd.f32 0.0, %v431
      %v433 = vpop.f32.mrf.mxu0
      %434 = vmatprep.mubr.bf16.mxu0 0
      %435 = vmatmul.mubr.bf16.gmra.mxu0 %v301
      %v436 = vpop.f32.mrf.mxu0
      %v437 = vadd.f32 0.0, %v436
      %v438 = vpop.f32.mrf.mxu0
      %v439 = vpop.f32.mrf.mxu0
      %v440 = vadd.f32 0.0, %v439
      %v441 = vpop.f32.mrf.mxu0
      %442 = vmatprep.mubr.bf16.mxu0 0
      %443 = vmatmul.mubr.bf16.gmra.mxu0 %v302
      %v444 = vpop.f32.mrf.mxu0
      %v445 = vadd.f32 0.0, %v444
      %v446 = vpop.f32.mrf.mxu0
      %v447 = vpop.f32.mrf.mxu0
      %v448 = vadd.f32 0.0, %v447
      %v449 = vpop.f32.mrf.mxu0
      %450 = vmatprep.mubr.bf16.mxu0 0
      %451 = vmatmul.mubr.bf16.gmra.mxu0 %v303
      %v452 = vpop.f32.mrf.mxu0
      %v453 = vadd.f32 0.0, %v452
      %v454 = vpop.f32.mrf.mxu0
      %v455 = vpop.f32.mrf.mxu0
      %v456 = vadd.f32 0.0, %v455
      %v457 = vpop.f32.mrf.mxu0
      %458 = vmatprep.mubr.bf16.mxu0 0
      %459 = vmatmul.mubr.bf16.gmra.mxu0 %v304
      %v460 = vpop.f32.mrf.mxu0
      %v461 = vadd.f32 0.0, %v460
      %v462 = vpop.f32.mrf.mxu0
      %v463 = vpop.f32.mrf.mxu0
      %v464 = vadd.f32 0.0, %v463
      %v465 = vpop.f32.mrf.mxu0
      %466 = vmatprep.mubr.bf16.mxu0 0
      %467 = vmatmul.mubr.bf16.gmra.mxu0 %v305
      %v468 = vpop.f32.mrf.mxu0
      %v469 = vadd.f32 0.0, %v468
      %v470 = vpop.f32.mrf.mxu0
      %v471 = vpop.f32.mrf.mxu0
      %v472 = vadd.f32 0.0, %v471
      %v473 = vpop.f32.mrf.mxu0
      %474 = vmatprep.mubr.bf16.mxu0 0
      %475 = vmatmul.mubr.bf16.gmra.mxu0 %v306
      %v476 = vpop.f32.mrf.mxu0
      %v477 = vadd.f32 0.0, %v476
      %v478 = vpop.f32.mrf.mxu0
      %v479 = vpop.f32.mrf.mxu0
      %v480 = vadd.f32 0.0, %v479
      %v481 = vpop.f32.mrf.mxu0
      %482 = vmatprep.mubr.bf16.mxu0 0
      %483 = vmatmul.mubr.bf16.gmra.mxu0 %v307
      %v484 = vpop.f32.mrf.mxu0
      %v485 = vadd.f32 0.0, %v484
      %v486 = vpop.f32.mrf.mxu0
      %v487 = vpop.f32.mrf.mxu0
      %v488 = vadd.f32 0.0, %v487
      %v489 = vpop.f32.mrf.mxu0
      %490 = vmatprep.mubr.bf16.mxu0 0
      %491 = vmatmul.mubr.bf16.gmra.mxu0 %v308
      %v492 = vpop.f32.mrf.mxu0
      %v493 = vadd.f32 0.0, %v492
      %v494 = vpop.f32.mrf.mxu0
      %v495 = vpop.f32.mrf.mxu0
      %v496 = vadd.f32 0.0, %v495
      %v497 = vpop.f32.mrf.mxu0
      %498 = vmatprep.mubr.bf16.mxu0 0
      %499 = vmatmul.mubr.bf16.gmra.mxu0 %v309
      %v500 = vpop.f32.mrf.mxu0
      %v501 = vadd.f32 0.0, %v500
      %v502 = vpop.f32.mrf.mxu0
      %v503 = vpop.f32.mrf.mxu0
      %v504 = vadd.f32 0.0, %v503
      %v505 = vpop.f32.mrf.mxu0
      %506 = vmatprep.mubr.bf16.mxu0 0
      %507 = vmatmul.mubr.bf16.gmra.mxu0 %v310
      %v508 = vpop.f32.mrf.mxu0
      %v509 = vadd.f32 0.0, %v508
      %v510 = vpop.f32.mrf.mxu0
      %v511 = vpop.f32.mrf.mxu0
      %v512 = vadd.f32 0.0, %v511
      %v513 = vpop.f32.mrf.mxu0
      %514 = vmatprep.mubr.bf16.mxu0 0
      %515 = vmatmul.mubr.bf16.gmra.mxu0 %v311
      %v516 = vpop.f32.mrf.mxu0
      %v517 = vadd.f32 0.0, %v516
      %v518 = vpop.f32.mrf.mxu0
      %v519 = vpop.f32.mrf.mxu0
      %v520 = vadd.f32 0.0, %v519
      %v521 = vpop.f32.mrf.mxu0
      %522 = vmatprep.mubr.bf16.mxu0 0
      %523 = vmatmul.mubr.bf16.gmra.mxu0 %v312
      %v524 = vpop.f32.mrf.mxu0
      %v525 = vadd.f32 0.0, %v524
      %v526 = vpop.f32.mrf.mxu0
      %v527 = vpop.f32.mrf.mxu0
      %v528 = vadd.f32 0.0, %v527
      %v529 = vpop.f32.mrf.mxu0
      %530 = vmatprep.mubr.bf16.mxu0 0
      %531 = vmatmul.mubr.bf16.gmra.mxu0 %v313
      %v532 = vpop.f32.mrf.mxu0
      %v533 = vadd.f32 0.0, %v532
      %v534 = vpop.f32.mrf.mxu0
      %v535 = vpop.f32.mrf.mxu0
      %v536 = vadd.f32 0.0, %v535
      %v537 = vpop.f32.mrf.mxu0
      %538 = vdwg.mxu0
      %539 = vst [vmem:[%s179] sm:$0xff] %v413
      %540 = vst [vmem:[%s179 + $0x8] sm:$0xff] %v416
      %541 = vst [vmem:[%s179 + $0x10] sm:$0xff] %v421
      %542 = vst [vmem:[%s179 + $0x18] sm:$0xff] %v424
      %543 = vst [vmem:[%s179 + $0x20] sm:$0xff] %v429
      %544 = vst [vmem:[%s179 + $0x28] sm:$0xff] %v432
      %545 = vst [vmem:[%s179 + $0x30] sm:$0xff] %v437
      %546 = vst [vmem:[%s179 + $0x38] sm:$0xff] %v440
      %547 = vst [vmem:[%s179 + $0x40] sm:$0xff] %v445
      %548 = vst [vmem:[%s179 + $0x48] sm:$0xff] %v448
      %549 = vst [vmem:[%s179 + $0x50] sm:$0xff] %v453
      %550 = vst [vmem:[%s179 + $0x58] sm:$0xff] %v456
      %551 = vst [vmem:[%s179 + $0x60] sm:$0xff] %v461
      %552 = vst [vmem:[%s179 + $0x68] sm:$0xff] %v464
      %553 = vst [vmem:[%s179 + $0x70] sm:$0xff] %v469
      %554 = vst [vmem:[%s179 + $0x78] sm:$0xff] %v472
      %555 = vst [vmem:[%s179 + $0x80] sm:$0xff] %v477
      %556 = vst [vmem:[%s179 + $0x88] sm:$0xff] %v480
      %557 = vst [vmem:[%s179 + $0x90] sm:$0xff] %v485
      %558 = vst [vmem:[%s179 + $0x98] sm:$0xff] %v488
      %559 = vst [vmem:[%s179 + $0xa0] sm:$0xff] %v493
      %560 = vst [vmem:[%s179 + $0xa8] sm:$0xff] %v496
      %561 = vst [vmem:[%s179 + $0xb0] sm:$0xff] %v501
      %562 = vst [vmem:[%s179 + $0xb8] sm:$0xff] %v504
      %563 = vst [vmem:[%s179 + $0xc0] sm:$0xff] %v509
      %564 = vst [vmem:[%s179 + $0xc8] sm:$0xff] %v512
      %565 = vst [vmem:[%s179 + $0xd0] sm:$0xff] %v517
      %566 = vst [vmem:[%s179 + $0xd8] sm:$0xff] %v520
      %567 = vst [vmem:[%s179 + $0xe0] sm:$0xff] %v525
      %568 = vst [vmem:[%s179 + $0xe8] sm:$0xff] %v528
      %569 = vst [vmem:[%s179 + $0xf0] sm:$0xff] %v533
      %570 = vst [vmem:[%s179 + $0xf8] sm:$0xff] %v536
      %v571 = vadd.f32 %v413, %v416
      %v572 = vadd.f32 %v571, %v421
      %v573 = vadd.f32 %v572, %v424
      %v574 = vadd.f32 %v573, %v429
      %v575 = vadd.f32 %v574, %v432
      %v576 = vadd.f32 %v575, %v437
      %v577 = vadd.f32 %v576, %v440
      %v578 = vadd.f32 %v577, %v445
      %v579 = vadd.f32 %v578, %v448
      %v580 = vadd.f32 %v579, %v453
      %v581 = vadd.f32 %v580, %v456
      %v582 = vadd.f32 %v581, %v461
      %v583 = vadd.f32 %v582, %v464
      %v584 = vadd.f32 %v583, %v469
      %v585 = vadd.f32 %v584, %v472
      %v586 = vadd.f32 %v585, %v477
      %v587 = vadd.f32 %v586, %v480
      %v588 = vadd.f32 %v587, %v485
      %v589 = vadd.f32 %v588, %v488
      %v590 = vadd.f32 %v589, %v493
      %v591 = vadd.f32 %v590, %v496
      %v592 = vadd.f32 %v591, %v501
      %v593 = vadd.f32 %v592, %v504
      %v594 = vadd.f32 %v593, %v509
      %v595 = vadd.f32 %v594, %v512
      %v596 = vadd.f32 %v595, %v517
      %v597 = vadd.f32 %v596, %v520
      %v598 = vadd.f32 %v597, %v525
      %v599 = vadd.f32 %v598, %v528
      %v600 = vadd.f32 %v599, %v533
      %v601 = vadd.f32 %v600, %v536
      %v602 = vrot.slane %v601, 4
      %v603 = vadd.f32 %v601, %v602
      %v604 = vrot.slane %v603, 2
      %v605 = vadd.f32 %v603, %v604
      %v606 = vrot.slane %v605, 1
      %v607 = vadd.f32 %v605, %v606
      %v608 = vmul.f32 %v413, %v413
      %v609 = vmul.f32 %v416, %v416
      %v610 = vmul.f32 %v421, %v421
      %v611 = vmul.f32 %v424, %v424
      %v612 = vmul.f32 %v429, %v429
      %v613 = vmul.f32 %v432, %v432
      %v614 = vmul.f32 %v437, %v437
      %v615 = vmul.f32 %v440, %v440
      %v616 = vmul.f32 %v445, %v445
      %v617 = vmul.f32 %v448, %v448
      %v618 = vmul.f32 %v453, %v453
      %v619 = vmul.f32 %v456, %v456
      %v620 = vmul.f32 %v461, %v461
      %v621 = vmul.f32 %v464, %v464
      %v622 = vmul.f32 %v469, %v469
      %v623 = vmul.f32 %v472, %v472
      %v624 = vmul.f32 %v477, %v477
      %v625 = vmul.f32 %v480, %v480
      %v626 = vmul.f32 %v485, %v485
      %v627 = vmul.f32 %v488, %v488
      %v628 = vmul.f32 %v493, %v493
      %v629 = vmul.f32 %v496, %v496
      %v630 = vmul.f32 %v501, %v501
      %v631 = vmul.f32 %v504, %v504
      %v632 = vmul.f32 %v509, %v509
      %v633 = vmul.f32 %v512, %v512
      %v634 = vmul.f32 %v517, %v517
      %v635 = vmul.f32 %v520, %v520
      %v636 = vmul.f32 %v525, %v525
      %v637 = vmul.f32 %v528, %v528
      %v638 = vmul.f32 %v533, %v533
      %v639 = vmul.f32 %v536, %v536
      %v640 = vadd.f32 %v608, %v609
      %v641 = vadd.f32 %v640, %v610
      %v642 = vadd.f32 %v641, %v611
      %v643 = vadd.f32 %v642, %v612
      %v644 = vadd.f32 %v643, %v613
      %v645 = vadd.f32 %v644, %v614
      %v646 = vadd.f32 %v645, %v615
      %v647 = vadd.f32 %v646, %v616
      %v648 = vadd.f32 %v647, %v617
      %v649 = vadd.f32 %v648, %v618
      %v650 = vadd.f32 %v649, %v619
      %v651 = vadd.f32 %v650, %v620
      %v652 = vadd.f32 %v651, %v621
      %v653 = vadd.f32 %v652, %v622
      %v654 = vadd.f32 %v653, %v623
      %v655 = vadd.f32 %v654, %v624
      %v656 = vadd.f32 %v655, %v625
      %v657 = vadd.f32 %v656, %v626
      %v658 = vadd.f32 %v657, %v627
      %v659 = vadd.f32 %v658, %v628
      %v660 = vadd.f32 %v659, %v629
      %v661 = vadd.f32 %v660, %v630
      %v662 = vadd.f32 %v661, %v631
      %v663 = vadd.f32 %v662, %v632
      %v664 = vadd.f32 %v663, %v633
      %v665 = vadd.f32 %v664, %v634
      %v666 = vadd.f32 %v665, %v635
      %v667 = vadd.f32 %v666, %v636
      %v668 = vadd.f32 %v667, %v637
      %v669 = vadd.f32 %v668, %v638
      %v670 = vadd.f32 %v669, %v639
      %v671 = vrot.slane %v670, 4
      %v672 = vadd.f32 %v670, %v671
      %v673 = vrot.slane %v672, 2
      %v674 = vadd.f32 %v672, %v673
      %v675 = vrot.slane %v674, 1
      %v676 = vadd.f32 %v674, %v675
      %vm677 = vcmask 1040384
      %v678 = vsel %vm677, %v607, %v676
      %679 = vst [vmem:[%s184] sm:$0x3] %v678
      %s680 = smul.u32 32, %s15
      %p681 = scmp.lt.s32.totalorder %s680, 63
      %s682 = scalar_select %p681, %s680, 63
      %s683 = smul.addr %s682, 8
      %s684 = scalar_lea.vmem %s2, %s683
      %p685 = scmp.lt.s32.totalorder %s15, 1
      %s686 = scalar_select %p685, %s15, 1
      %s687 = smul.addr %s686, 2
      %s688 = scalar_lea.vmem %s3, %s687
      // Predicated region
      $region29: #{basic_block_forward.4} parent=27 // pred_check
        %p689 = pneg %p80
      $region30: #{basic_block_forward.4} parent=27 // pred_check_branch
        %691 = sbr.rel (%p689) target = $region32
      $region31: #{basic_block_forward.4} parent=27 // pred_region
        %s692 = smul.u32 32, %s15
      $region32: #{basic_block_forward.4} parent=27 // pred_fallthru
        _
      // Predicated region
      $region33: #{basic_block_forward.4} parent=27 // pred_check
        %p693 = pneg %p106
      $region34: #{basic_block_forward.4} parent=27 // pred_check_branch
        %695 = sbr.rel (%p693) target = $region36
      $region35: #{basic_block_forward.4} parent=27 // pred_region
        _
      $region36: #{basic_block_forward.4} parent=27 // pred_fallthru
        _
    $region28: #{basic_block_forward.4} parent=5 // pred_fallthru
      _
    %p696 = scmp.le.s32.totalorder 2, %s10
    // Predicated region
    $region37: #{basic_block_forward.4} parent=5 // pred_check
      %p697 = pneg %p696
    $region38: #{basic_block_forward.4} parent=5 // pred_check_branch
      %699 = sbr.rel (%p697) target = $region40
    $region39: #{basic_block_forward.4} parent=5 // pred_region
      %s700 = ssub.s32 %s10, 2
      // Predicated region
      $region41: #{basic_block_forward.4} parent=39 // pred_check
        %p701 = pneg %p86
      $region42: #{basic_block_forward.4} parent=39 // pred_check_branch
        %703 = sbr.rel (%p701) target = $region44
      $region43: #{basic_block_forward.4} parent=39 // pred_region
        %s704 = smul.u32 32, %s16
        %p705 = scmp.lt.s32.totalorder %s704, 63
        %s706 = scalar_select %p705, %s704, 63
        %s707 = smul.addr %s706, 8
        %s708 = scalar_lea.vmem %s2, %s707
      $region44: #{basic_block_forward.4} parent=39 // pred_fallthru
        _
      // Predicated region
      $region45: #{basic_block_forward.4} parent=39 // pred_check
        %p709 = pneg %p112
      $region46: #{basic_block_forward.4} parent=39 // pred_check_branch
        %711 = sbr.rel (%p709) target = $region48
      $region47: #{basic_block_forward.4} parent=39 // pred_region
        %p712 = scmp.lt.s32.totalorder %s16, 1
        %s713 = scalar_select %p712, %s16, 1
        %s714 = smul.addr %s713, 2
        %s715 = scalar_lea.vmem %s3, %s714
      $region48: #{basic_block_forward.4} parent=39 // pred_fallthru
        _
    $region40: #{basic_block_forward.4} parent=5 // pred_fallthru
      _
  $region6: #{basic_block_forward.4} parent=0 // loop_footer
    %s14 = sadd.s32 1, %s10
  $region7: #{basic_block_forward.4} parent=0 // loop_footer_branch
    %9 = sbr.rel target = $region3
  $region8: #{basic_block_forward.4} parent=0 // loop_exit
    _

// kernel: tile.23
$region0: #{tile.23}
  #allocation0 [shape = 's32[1]{0}', space=sflag, size = 0x4, scoped, tag = 'scoped memory for tile.23']
  %s0 = inlined_call_operand.vmem [shape: f32[128], index: 0, kind: input, shape index: {}]
  %s1 = inlined_call_operand.vmem [shape: f32[2,128], index: 1, kind: output, shape index: {}]
  // Predicated region
  $region2: #{tile.23} parent=0 // pred_check
    _
  $region3: #{tile.23} parent=0 // pred_check_branch
    %3 = sbr.rel (0) target = $region5
  $region4: #{tile.23} parent=0 // pred_region
    _
  $region5: #{tile.23} parent=0 // pred_fallthru
    _
  %v4 = vld [vmem:[%s0] ss:$0 sm:$0xff]
  %5 = vst [vmem:[%s1] sm:$0x3] %v4

// kernel: basic_block_forward.7
$region0: #{basic_block_forward.7}
  #allocation0 [shape = 'u32[]', space=smem, size = 0x4, offset = 0x4, fixed_abs, tag = 'smem constant byte address 0x4 - core index']
  #allocation1 [shape = 'u32[144,128]{1,0:T(1,128)}', space=vmem, size = 0x12000, scoped, tag = 'internal scratch']
  %s0 = inlined_call_operand.vmem [shape: f32[16,2,8,256], index: 0, kind: input, shape index: {}]
  %s1 = inlined_call_operand.vmem [shape: f32[16,2,8,256], index: 1, kind: input, shape index: {}]
  %s2 = inlined_call_operand.vmem [shape: f32[1,256], index: 2, kind: input, shape index: {}]
  %s3 = inlined_call_operand.vmem [shape: f32[1,256], index: 3, kind: input, shape index: {}]
  %s4 = inlined_call_operand.vmem [shape: f32[1,256], index: 4, kind: input, shape index: {}]
  %s5 = inlined_call_operand.vmem [shape: f32[1,256], index: 5, kind: input, shape index: {}]
  %s6 = inlined_call_operand.vmem [shape: f32[16,8,128], index: 6, kind: output, shape index: {}]
  %s7 = sld [smem:[#allocation0]]
  $region34: #{basic_block_forward.7} parent=0
    _
  %s9 = ssub.s32 1, %s7
  %s10 = scalar_select 0, %s9, %s7
  // Predicated region
  $region2: #{basic_block_forward.7} parent=0 // pred_check
    _
  $region3: #{basic_block_forward.7} parent=0 // pred_check_branch
    %12 = sbr.rel (0) target = $region5
  $region4: #{basic_block_forward.7} parent=0 // pred_region
    _
  $region5: #{basic_block_forward.7} parent=0 // pred_fallthru
    _
  // Predicated region
  $region6: #{basic_block_forward.7} parent=0 // pred_check
    _
  $region7: #{basic_block_forward.7} parent=0 // pred_check_branch
    %14 = sbr.rel (0) target = $region9
  $region8: #{basic_block_forward.7} parent=0 // pred_region
    _
  $region9: #{basic_block_forward.7} parent=0 // pred_fallthru
    _
  // Predicated region
  $region10: #{basic_block_forward.7} parent=0 // pred_check
    _
  $region11: #{basic_block_forward.7} parent=0 // pred_check_branch
    %16 = sbr.rel (0) target = $region13
  $region12: #{basic_block_forward.7} parent=0 // pred_region
    _
  $region13: #{basic_block_forward.7} parent=0 // pred_fallthru
    _
  // Predicated region
  $region14: #{basic_block_forward.7} parent=0 // pred_check
    _
  $region15: #{basic_block_forward.7} parent=0 // pred_check_branch
    %18 = sbr.rel (0) target = $region17
  $region16: #{basic_block_forward.7} parent=0 // pred_region
    _
  $region17: #{basic_block_forward.7} parent=0 // pred_fallthru
    _
  // Predicated region
  $region18: #{basic_block_forward.7} parent=0 // pred_check
    _
  $region19: #{basic_block_forward.7} parent=0 // pred_check_branch
    %20 = sbr.rel (0) target = $region21
  $region20: #{basic_block_forward.7} parent=0 // pred_region
    _
  $region21: #{basic_block_forward.7} parent=0 // pred_fallthru
    _
  // Predicated region
  $region22: #{basic_block_forward.7} parent=0 // pred_check
    _
  $region23: #{basic_block_forward.7} parent=0 // pred_check_branch
    %22 = sbr.rel (0) target = $region25
  $region24: #{basic_block_forward.7} parent=0 // pred_region
    _
  $region25: #{basic_block_forward.7} parent=0 // pred_fallthru
    _
  %v23 = vld [vmem:[%s0] sm:$0xff]
  %v24 = vld [vmem:[%s0 + $0x8] sm:$0xff]
  %v25 = vld [vmem:[%s0 + $0x10] sm:$0xff]
  %v26 = vld [vmem:[%s0 + $0x18] sm:$0xff]
  %v27 = vld [vmem:[%s0 + $0x20] sm:$0xff]
  %v28 = vld [vmem:[%s0 + $0x28] sm:$0xff]
  %v29 = vld [vmem:[%s0 + $0x30] sm:$0xff]
  %v30 = vld [vmem:[%s0 + $0x38] sm:$0xff]
  %v31 = vld [vmem:[%s0 + $0x40] sm:$0xff]
  %v32 = vld [vmem:[%s0 + $0x48] sm:$0xff]
  %v33 = vld [vmem:[%s0 + $0x50] sm:$0xff]
  %v34 = vld [vmem:[%s0 + $0x58] sm:$0xff]
  %v35 = vld [vmem:[%s0 + $0x60] sm:$0xff]
  %v36 = vld [vmem:[%s0 + $0x68] sm:$0xff]
  %v37 = vld [vmem:[%s0 + $0x70] sm:$0xff]
  %v38 = vld [vmem:[%s0 + $0x78] sm:$0xff]
  %v39 = vld [vmem:[%s0 + $0x80] sm:$0xff]
  %v40 = vld [vmem:[%s0 + $0x88] sm:$0xff]
  %v41 = vld [vmem:[%s0 + $0x90] sm:$0xff]
  %v42 = vld [vmem:[%s0 + $0x98] sm:$0xff]
  %v43 = vld [vmem:[%s0 + $0xa0] sm:$0xff]
  %v44 = vld [vmem:[%s0 + $0xa8] sm:$0xff]
  %v45 = vld [vmem:[%s0 + $0xb0] sm:$0xff]
  %v46 = vld [vmem:[%s0 + $0xb8] sm:$0xff]
  %v47 = vld [vmem:[%s0 + $0xc0] sm:$0xff]
  %v48 = vld [vmem:[%s0 + $0xc8] sm:$0xff]
  %v49 = vld [vmem:[%s0 + $0xd0] sm:$0xff]
  %v50 = vld [vmem:[%s0 + $0xd8] sm:$0xff]
  %v51 = vld [vmem:[%s0 + $0xe0] sm:$0xff]
  %v52 = vld [vmem:[%s0 + $0xe8] sm:$0xff]
  %v53 = vld [vmem:[%s0 + $0xf0] sm:$0xff]
  %v54 = vld [vmem:[%s0 + $0xf8] sm:$0xff]
  %v55 = vld [vmem:[%s0 + $0x100] sm:$0xff]
  %v56 = vld [vmem:[%s0 + $0x108] sm:$0xff]
  %v57 = vld [vmem:[%s0 + $0x110] sm:$0xff]
  %v58 = vld [vmem:[%s0 + $0x118] sm:$0xff]
  %v59 = vld [vmem:[%s0 + $0x120] sm:$0xff]
  %v60 = vld [vmem:[%s0 + $0x128] sm:$0xff]
  %v61 = vld [vmem:[%s0 + $0x130] sm:$0xff]
  %v62 = vld [vmem:[%s0 + $0x138] sm:$0xff]
  %v63 = vld [vmem:[%s0 + $0x140] sm:$0xff]
  %v64 = vld [vmem:[%s0 + $0x148] sm:$0xff]
  %v65 = vld [vmem:[%s0 + $0x150] sm:$0xff]
  %v66 = vld [vmem:[%s0 + $0x158] sm:$0xff]
  %v67 = vld [vmem:[%s0 + $0x160] sm:$0xff]
  %v68 = vld [vmem:[%s0 + $0x168] sm:$0xff]
  %v69 = vld [vmem:[%s0 + $0x170] sm:$0xff]
  %v70 = vld [vmem:[%s0 + $0x178] sm:$0xff]
  %v71 = vld [vmem:[%s0 + $0x180] sm:$0xff]
  %v72 = vld [vmem:[%s0 + $0x188] sm:$0xff]
  %v73 = vld [vmem:[%s0 + $0x190] sm:$0xff]
  %v74 = vld [vmem:[%s0 + $0x198] sm:$0xff]
  %v75 = vld [vmem:[%s0 + $0x1a0] sm:$0xff]
  %v76 = vld [vmem:[%s0 + $0x1a8] sm:$0xff]
  %v77 = vld [vmem:[%s0 + $0x1b0] sm:$0xff]
  %v78 = vld [vmem:[%s0 + $0x1b8] sm:$0xff]
  %v79 = vld [vmem:[%s0 + $0x1c0] sm:$0xff]
  %v80 = vld [vmem:[%s0 + $0x1c8] sm:$0xff]
  %v81 = vld [vmem:[%s0 + $0x1d0] sm:$0xff]
  %v82 = vld [vmem:[%s0 + $0x1d8] sm:$0xff]
  %v83 = vld [vmem:[%s0 + $0x1e0] sm:$0xff]
  %v84 = vld [vmem:[%s0 + $0x1e8] sm:$0xff]
  %v85 = vld [vmem:[%s0 + $0x1f0] sm:$0xff]
  %v86 = vld [vmem:[%s0 + $0x1f8] sm:$0xff]
  %v87 = vld [vmem:[%s2] sm:$0x3]
  %v89 = vlaneseq
  %v90 = vshrl.u32 %v89, 7
  %v91 = vsub.s32 0, %v90
  %v92 = vrot.slane %v87, %v91
  %v93 = vlaneseq
  %v94 = vshrl.u32 %v93, 7
  %v95 = vsub.s32 1, %v94
  %v96 = vrot.slane %v87, %v95
  %v99 = vmul.f32 %v23, %v92
  %v100 = vmul.f32 %v24, %v96
  %v101 = vmul.f32 %v25, %v92
  %v102 = vmul.f32 %v26, %v96
  %v103 = vmul.f32 %v27, %v92
  %v104 = vmul.f32 %v28, %v96
  %v105 = vmul.f32 %v29, %v92
  %v106 = vmul.f32 %v30, %v96
  %v107 = vmul.f32 %v31, %v92
  %v108 = vmul.f32 %v32, %v96
  %v109 = vmul.f32 %v33, %v92
  %v110 = vmul.f32 %v34, %v96
  %v111 = vmul.f32 %v35, %v92
  %v112 = vmul.f32 %v36, %v96
  %v113 = vmul.f32 %v37, %v92
  %v114 = vmul.f32 %v38, %v96
  %v115 = vmul.f32 %v39, %v92
  %v116 = vmul.f32 %v40, %v96
  %v117 = vmul.f32 %v41, %v92
  %v118 = vmul.f32 %v42, %v96
  %v119 = vmul.f32 %v43, %v92
  %v120 = vmul.f32 %v44, %v96
  %v121 = vmul.f32 %v45, %v92
  %v122 = vmul.f32 %v46, %v96
  %v123 = vmul.f32 %v47, %v92
  %v124 = vmul.f32 %v48, %v96
  %v125 = vmul.f32 %v49, %v92
  %v126 = vmul.f32 %v50, %v96
  %v127 = vmul.f32 %v51, %v92
  %v128 = vmul.f32 %v52, %v96
  %v129 = vmul.f32 %v53, %v92
  %v130 = vmul.f32 %v54, %v96
  %v131 = vmul.f32 %v55, %v92
  %v132 = vmul.f32 %v56, %v96
  %v133 = vmul.f32 %v57, %v92
  %v134 = vmul.f32 %v58, %v96
  %v135 = vmul.f32 %v59, %v92
  %v136 = vmul.f32 %v60, %v96
  %v137 = vmul.f32 %v61, %v92
  %v138 = vmul.f32 %v62, %v96
  %v139 = vmul.f32 %v63, %v92
  %v140 = vmul.f32 %v64, %v96
  %v141 = vmul.f32 %v65, %v92
  %v142 = vmul.f32 %v66, %v96
  %v143 = vmul.f32 %v67, %v92
  %v144 = vmul.f32 %v68, %v96
  %v145 = vmul.f32 %v69, %v92
  %v146 = vmul.f32 %v70, %v96
  %v147 = vmul.f32 %v71, %v92
  %v148 = vmul.f32 %v72, %v96
  %v149 = vmul.f32 %v73, %v92
  %v150 = vmul.f32 %v74, %v96
  %v151 = vmul.f32 %v75, %v92
  %v152 = vmul.f32 %v76, %v96
  %v153 = vmul.f32 %v77, %v92
  %v154 = vmul.f32 %v78, %v96
  %v155 = vmul.f32 %v79, %v92
  %v156 = vmul.f32 %v80, %v96
  %v157 = vmul.f32 %v81, %v92
  %v158 = vmul.f32 %v82, %v96
  %v159 = vmul.f32 %v83, %v92
  %v160 = vmul.f32 %v84, %v96
  %v161 = vmul.f32 %v85, %v92
  %v162 = vmul.f32 %v86, %v96
  %v163 = vld [vmem:[%s3] sm:$0x3]
  %v165 = vlaneseq
  %v166 = vshrl.u32 %v165, 7
  %v167 = vsub.s32 0, %v166
  %v168 = vrot.slane %v163, %v167
  %v169 = vlaneseq
  %v170 = vshrl.u32 %v169, 7
  %v171 = vsub.s32 1, %v170
  %v172 = vrot.slane %v163, %v171
  %v175 = vadd.f32 %v99, %v168
  %v176 = vadd.f32 %v100, %v172
  %v177 = vadd.f32 %v101, %v168
  %v178 = vadd.f32 %v102, %v172
  %v179 = vadd.f32 %v103, %v168
  %v180 = vadd.f32 %v104, %v172
  %v181 = vadd.f32 %v105, %v168
  %v182 = vadd.f32 %v106, %v172
  %v183 = vadd.f32 %v107, %v168
  %v184 = vadd.f32 %v108, %v172
  %v185 = vadd.f32 %v109, %v168
  %v186 = vadd.f32 %v110, %v172
  %v187 = vadd.f32 %v111, %v168
  %v188 = vadd.f32 %v112, %v172
  %v189 = vadd.f32 %v113, %v168
  %v190 = vadd.f32 %v114, %v172
  %v191 = vadd.f32 %v115, %v168
  %v192 = vadd.f32 %v116, %v172
  %v193 = vadd.f32 %v117, %v168
  %v194 = vadd.f32 %v118, %v172
  %v195 = vadd.f32 %v119, %v168
  %v196 = vadd.f32 %v120, %v172
  %v197 = vadd.f32 %v121, %v168
  %v198 = vadd.f32 %v122, %v172
  %v199 = vadd.f32 %v123, %v168
  %v200 = vadd.f32 %v124, %v172
  %v201 = vadd.f32 %v125, %v168
  %v202 = vadd.f32 %v126, %v172
  %v203 = vadd.f32 %v127, %v168
  %v204 = vadd.f32 %v128, %v172
  %v205 = vadd.f32 %v129, %v168
  %v206 = vadd.f32 %v130, %v172
  %v207 = vadd.f32 %v131, %v168
  %v208 = vadd.f32 %v132, %v172
  %v209 = vadd.f32 %v133, %v168
  %v210 = vadd.f32 %v134, %v172
  %v211 = vadd.f32 %v135, %v168
  %v212 = vadd.f32 %v136, %v172
  %v213 = vadd.f32 %v137, %v168
  %v214 = vadd.f32 %v138, %v172
  %v215 = vadd.f32 %v139, %v168
  %v216 = vadd.f32 %v140, %v172
  %v217 = vadd.f32 %v141, %v168
  %v218 = vadd.f32 %v142, %v172
  %v219 = vadd.f32 %v143, %v168
  %v220 = vadd.f32 %v144, %v172
  %v221 = vadd.f32 %v145, %v168
  %v222 = vadd.f32 %v146, %v172
  %v223 = vadd.f32 %v147, %v168
  %v224 = vadd.f32 %v148, %v172
  %v225 = vadd.f32 %v149, %v168
  %v226 = vadd.f32 %v150, %v172
  %v227 = vadd.f32 %v151, %v168
  %v228 = vadd.f32 %v152, %v172
  %v229 = vadd.f32 %v153, %v168
  %v230 = vadd.f32 %v154, %v172
  %v231 = vadd.f32 %v155, %v168
  %v232 = vadd.f32 %v156, %v172
  %v233 = vadd.f32 %v157, %v168
  %v234 = vadd.f32 %v158, %v172
  %v235 = vadd.f32 %v159, %v168
  %v236 = vadd.f32 %v160, %v172
  %v237 = vadd.f32 %v161, %v168
  %v238 = vadd.f32 %v162, %v172
  %v239 = vld [vmem:[%s1] sm:$0xff]
  %v240 = vld [vmem:[%s1 + $0x8] sm:$0xff]
  %v241 = vld [vmem:[%s1 + $0x10] sm:$0xff]
  %v242 = vld [vmem:[%s1 + $0x18] sm:$0xff]
  %v243 = vld [vmem:[%s1 + $0x20] sm:$0xff]
  %v244 = vld [vmem:[%s1 + $0x28] sm:$0xff]
  %v245 = vld [vmem:[%s1 + $0x30] sm:$0xff]
  %v246 = vld [vmem:[%s1 + $0x38] sm:$0xff]
  %v247 = vld [vmem:[%s1 + $0x40] sm:$0xff]
  %v248 = vld [vmem:[%s1 + $0x48] sm:$0xff]
  %v249 = vld [vmem:[%s1 + $0x50] sm:$0xff]
  %v250 = vld [vmem:[%s1 + $0x58] sm:$0xff]
  %v251 = vld [vmem:[%s1 + $0x60] sm:$0xff]
  %v252 = vld [vmem:[%s1 + $0x68] sm:$0xff]
  %v253 = vld [vmem:[%s1 + $0x70] sm:$0xff]
  %v254 = vld [vmem:[%s1 + $0x78] sm:$0xff]
  %v255 = vld [vmem:[%s1 + $0x80] sm:$0xff]
  %v256 = vld [vmem:[%s1 + $0x88] sm:$0xff]
  %v257 = vld [vmem:[%s1 + $0x90] sm:$0xff]
  %v258 = vld [vmem:[%s1 + $0x98] sm:$0xff]
  %v259 = vld [vmem:[%s1 + $0xa0] sm:$0xff]
  %v260 = vld [vmem:[%s1 + $0xa8] sm:$0xff]
  %v261 = vld [vmem:[%s1 + $0xb0] sm:$0xff]
  %v262 = vld [vmem:[%s1 + $0xb8] sm:$0xff]
  %v263 = vld [vmem:[%s1 + $0xc0] sm:$0xff]
  %v264 = vld [vmem:[%s1 + $0xc8] sm:$0xff]
  %v265 = vld [vmem:[%s1 + $0xd0] sm:$0xff]
  %v266 = vld [vmem:[%s1 + $0xd8] sm:$0xff]
  %v267 = vld [vmem:[%s1 + $0xe0] sm:$0xff]
  %v268 = vld [vmem:[%s1 + $0xe8] sm:$0xff]
  %v269 = vld [vmem:[%s1 + $0xf0] sm:$0xff]
  %v270 = vld [vmem:[%s1 + $0xf8] sm:$0xff]
  %v271 = vld [vmem:[%s1 + $0x100] sm:$0xff]
  %v272 = vld [vmem:[%s1 + $0x108] sm:$0xff]
  %v273 = vld [vmem:[%s1 + $0x110] sm:$0xff]
  %v274 = vld [vmem:[%s1 + $0x118] sm:$0xff]
  %v275 = vld [vmem:[%s1 + $0x120] sm:$0xff]
  %v276 = vld [vmem:[%s1 + $0x128] sm:$0xff]
  %v277 = vld [vmem:[%s1 + $0x130] sm:$0xff]
  %v278 = vld [vmem:[%s1 + $0x138] sm:$0xff]
  %v279 = vld [vmem:[%s1 + $0x140] sm:$0xff]
  %v280 = vld [vmem:[%s1 + $0x148] sm:$0xff]
  %v281 = vld [vmem:[%s1 + $0x150] sm:$0xff]
  %v282 = vld [vmem:[%s1 + $0x158] sm:$0xff]
  %v283 = vld [vmem:[%s1 + $0x160] sm:$0xff]
  %v284 = vld [vmem:[%s1 + $0x168] sm:$0xff]
  %v285 = vld [vmem:[%s1 + $0x170] sm:$0xff]
  %v286 = vld [vmem:[%s1 + $0x178] sm:$0xff]
  %v287 = vld [vmem:[%s1 + $0x180] sm:$0xff]
  %v288 = vld [vmem:[%s1 + $0x188] sm:$0xff]
  %v289 = vld [vmem:[%s1 + $0x190] sm:$0xff]
  %v290 = vld [vmem:[%s1 + $0x198] sm:$0xff]
  %v291 = vld [vmem:[%s1 + $0x1a0] sm:$0xff]
  %v292 = vld [vmem:[%s1 + $0x1a8] sm:$0xff]
  %v293 = vld [vmem:[%s1 + $0x1b0] sm:$0xff]
  %v294 = vld [vmem:[%s1 + $0x1b8] sm:$0xff]
  %v295 = vld [vmem:[%s1 + $0x1c0] sm:$0xff]
  %v296 = vld [vmem:[%s1 + $0x1c8] sm:$0xff]
  %v297 = vld [vmem:[%s1 + $0x1d0] sm:$0xff]
  %v298 = vld [vmem:[%s1 + $0x1d8] sm:$0xff]
  %v299 = vld [vmem:[%s1 + $0x1e0] sm:$0xff]
  %v300 = vld [vmem:[%s1 + $0x1e8] sm:$0xff]
  %v301 = vld [vmem:[%s1 + $0x1f0] sm:$0xff]
  %v302 = vld [vmem:[%s1 + $0x1f8] sm:$0xff]
  %v303 = vld [vmem:[%s4] sm:$0x3]
  %v305 = vlaneseq
  %v306 = vshrl.u32 %v305, 7
  %v307 = vsub.s32 0, %v306
  %v308 = vrot.slane %v303, %v307
  %v309 = vlaneseq
  %v310 = vshrl.u32 %v309, 7
  %v311 = vsub.s32 1, %v310
  %v312 = vrot.slane %v303, %v311
  %v315 = vmul.f32 %v239, %v308
  %v316 = vmul.f32 %v240, %v312
  %v317 = vmul.f32 %v241, %v308
  %v318 = vmul.f32 %v242, %v312
  %v319 = vmul.f32 %v243, %v308
  %v320 = vmul.f32 %v244, %v312
  %v321 = vmul.f32 %v245, %v308
  %v322 = vmul.f32 %v246, %v312
  %v323 = vmul.f32 %v247, %v308
  %v324 = vmul.f32 %v248, %v312
  %v325 = vmul.f32 %v249, %v308
  %v326 = vmul.f32 %v250, %v312
  %v327 = vmul.f32 %v251, %v308
  %v328 = vmul.f32 %v252, %v312
  %v329 = vmul.f32 %v253, %v308
  %v330 = vmul.f32 %v254, %v312
  %v331 = vmul.f32 %v255, %v308
  %v332 = vmul.f32 %v256, %v312
  %v333 = vmul.f32 %v257, %v308
  %v334 = vmul.f32 %v258, %v312
  %v335 = vmul.f32 %v259, %v308
  %v336 = vmul.f32 %v260, %v312
  %v337 = vmul.f32 %v261, %v308
  %v338 = vmul.f32 %v262, %v312
  %v339 = vmul.f32 %v263, %v308
  %v340 = vmul.f32 %v264, %v312
  %v341 = vmul.f32 %v265, %v308
  %v342 = vmul.f32 %v266, %v312
  %v343 = vmul.f32 %v267, %v308
  %v344 = vmul.f32 %v268, %v312
  %v345 = vmul.f32 %v269, %v308
  %v346 = vmul.f32 %v270, %v312
  %v347 = vmul.f32 %v271, %v308
  %v348 = vmul.f32 %v272, %v312
  %v349 = vmul.f32 %v273, %v308
  %v350 = vmul.f32 %v274, %v312
  %v351 = vmul.f32 %v275, %v308
  %v352 = vmul.f32 %v276, %v312
  %v353 = vmul.f32 %v277, %v308
  %v354 = vmul.f32 %v278, %v312
  %v355 = vmul.f32 %v279, %v308
  %v356 = vmul.f32 %v280, %v312
  %v357 = vmul.f32 %v281, %v308
  %v358 = vmul.f32 %v282, %v312
  %v359 = vmul.f32 %v283, %v308
  %v360 = vmul.f32 %v284, %v312
  %v361 = vmul.f32 %v285, %v308
  %v362 = vmul.f32 %v286, %v312
  %v363 = vmul.f32 %v287, %v308
  %v364 = vmul.f32 %v288, %v312
  %v365 = vmul.f32 %v289, %v308
  %v366 = vmul.f32 %v290, %v312
  %v367 = vmul.f32 %v291, %v308
  %v368 = vmul.f32 %v292, %v312
  %v369 = vmul.f32 %v293, %v308
  %v370 = vmul.f32 %v294, %v312
  %v371 = vmul.f32 %v295, %v308
  %v372 = vmul.f32 %v296, %v312
  %v373 = vmul.f32 %v297, %v308
  %v374 = vmul.f32 %v298, %v312
  %v375 = vmul.f32 %v299, %v308
  %v376 = vmul.f32 %v300, %v312
  %v377 = vmul.f32 %v301, %v308
  %v378 = vmul.f32 %v302, %v312
  %v379 = vadd.f32 %v175, %v315
  %v380 = vadd.f32 %v176, %v316
  %v381 = vadd.f32 %v177, %v317
  %v382 = vadd.f32 %v178, %v318
  %v383 = vadd.f32 %v179, %v319
  %v384 = vadd.f32 %v180, %v320
  %v385 = vadd.f32 %v181, %v321
  %v386 = vadd.f32 %v182, %v322
  %v387 = vadd.f32 %v183, %v323
  %v388 = vadd.f32 %v184, %v324
  %v389 = vadd.f32 %v185, %v325
  %v390 = vadd.f32 %v186, %v326
  %v391 = vadd.f32 %v187, %v327
  %v392 = vadd.f32 %v188, %v328
  %v393 = vadd.f32 %v189, %v329
  %v394 = vadd.f32 %v190, %v330
  %v395 = vadd.f32 %v191, %v331
  %v396 = vadd.f32 %v192, %v332
  %v397 = vadd.f32 %v193, %v333
  %v398 = vadd.f32 %v194, %v334
  %v399 = vadd.f32 %v195, %v335
  %v400 = vadd.f32 %v196, %v336
  %v401 = vadd.f32 %v197, %v337
  %v402 = vadd.f32 %v198, %v338
  %v403 = vadd.f32 %v199, %v339
  %v404 = vadd.f32 %v200, %v340
  %v405 = vadd.f32 %v201, %v341
  %v406 = vadd.f32 %v202, %v342
  %v407 = vadd.f32 %v203, %v343
  %v408 = vadd.f32 %v204, %v344
  %v409 = vadd.f32 %v205, %v345
  %v410 = vadd.f32 %v206, %v346
  %v411 = vadd.f32 %v207, %v347
  %v412 = vadd.f32 %v208, %v348
  %v413 = vadd.f32 %v209, %v349
  %v414 = vadd.f32 %v210, %v350
  %v415 = vadd.f32 %v211, %v351
  %v416 = vadd.f32 %v212, %v352
  %v417 = vadd.f32 %v213, %v353
  %v418 = vadd.f32 %v214, %v354
  %v419 = vadd.f32 %v215, %v355
  %v420 = vadd.f32 %v216, %v356
  %v421 = vadd.f32 %v217, %v357
  %v422 = vadd.f32 %v218, %v358
  %v423 = vadd.f32 %v219, %v359
  %v424 = vadd.f32 %v220, %v360
  %v425 = vadd.f32 %v221, %v361
  %v426 = vadd.f32 %v222, %v362
  %v427 = vadd.f32 %v223, %v363
  %v428 = vadd.f32 %v224, %v364
  %v429 = vadd.f32 %v225, %v365
  %v430 = vadd.f32 %v226, %v366
  %v431 = vadd.f32 %v227, %v367
  %v432 = vadd.f32 %v228, %v368
  %v433 = vadd.f32 %v229, %v369
  %v434 = vadd.f32 %v230, %v370
  %v435 = vadd.f32 %v231, %v371
  %v436 = vadd.f32 %v232, %v372
  %v437 = vadd.f32 %v233, %v373
  %v438 = vadd.f32 %v234, %v374
  %v439 = vadd.f32 %v235, %v375
  %v440 = vadd.f32 %v236, %v376
  %v441 = vadd.f32 %v237, %v377
  %v442 = vadd.f32 %v238, %v378
  %v443 = vld [vmem:[%s5] sm:$0x3]
  %v445 = vlaneseq
  %v446 = vshrl.u32 %v445, 7
  %v447 = vsub.s32 0, %v446
  %v448 = vrot.slane %v443, %v447
  %v449 = vlaneseq
  %v450 = vshrl.u32 %v449, 7
  %v451 = vsub.s32 1, %v450
  %v452 = vrot.slane %v443, %v451
  %v455 = vadd.f32 %v379, %v448
  %v456 = vadd.f32 %v380, %v452
  %v457 = vadd.f32 %v381, %v448
  %v458 = vadd.f32 %v382, %v452
  %v459 = vadd.f32 %v383, %v448
  %v460 = vadd.f32 %v384, %v452
  %v461 = vadd.f32 %v385, %v448
  %v462 = vadd.f32 %v386, %v452
  %v463 = vadd.f32 %v387, %v448
  %v464 = vadd.f32 %v388, %v452
  %v465 = vadd.f32 %v389, %v448
  %v466 = vadd.f32 %v390, %v452
  %v467 = vadd.f32 %v391, %v448
  %v468 = vadd.f32 %v392, %v452
  %v469 = vadd.f32 %v393, %v448
  %v470 = vadd.f32 %v394, %v452
  %v471 = vadd.f32 %v395, %v448
  %v472 = vadd.f32 %v396, %v452
  %v473 = vadd.f32 %v397, %v448
  %v474 = vadd.f32 %v398, %v452
  %v475 = vadd.f32 %v399, %v448
  %v476 = vadd.f32 %v400, %v452
  %v477 = vadd.f32 %v401, %v448
  %v478 = vadd.f32 %v402, %v452
  %v479 = vadd.f32 %v403, %v448
  %v480 = vadd.f32 %v404, %v452
  %v481 = vadd.f32 %v405, %v448
  %v482 = vadd.f32 %v406, %v452
  %v483 = vadd.f32 %v407, %v448
  %v484 = vadd.f32 %v408, %v452
  %v485 = vadd.f32 %v409, %v448
  %v486 = vadd.f32 %v410, %v452
  %v487 = vadd.f32 %v411, %v448
  %v488 = vadd.f32 %v412, %v452
  %v489 = vadd.f32 %v413, %v448
  %v490 = vadd.f32 %v414, %v452
  %v491 = vadd.f32 %v415, %v448
  %v492 = vadd.f32 %v416, %v452
  %v493 = vadd.f32 %v417, %v448
  %v494 = vadd.f32 %v418, %v452
  %v495 = vadd.f32 %v419, %v448
  %v496 = vadd.f32 %v420, %v452
  %v497 = vadd.f32 %v421, %v448
  %v498 = vadd.f32 %v422, %v452
  %v499 = vadd.f32 %v423, %v448
  %v500 = vadd.f32 %v424, %v452
  %v501 = vadd.f32 %v425, %v448
  %v502 = vadd.f32 %v426, %v452
  %v503 = vadd.f32 %v427, %v448
  %v504 = vadd.f32 %v428, %v452
  %v505 = vadd.f32 %v429, %v448
  %v506 = vadd.f32 %v430, %v452
  %v507 = vadd.f32 %v431, %v448
  %v508 = vadd.f32 %v432, %v452
  %v509 = vadd.f32 %v433, %v448
  %v510 = vadd.f32 %v434, %v452
  %v511 = vadd.f32 %v435, %v448
  %v512 = vadd.f32 %v436, %v452
  %v513 = vadd.f32 %v437, %v448
  %v514 = vadd.f32 %v438, %v452
  %v515 = vadd.f32 %v439, %v448
  %v516 = vadd.f32 %v440, %v452
  %v517 = vadd.f32 %v441, %v448
  %v518 = vadd.f32 %v442, %v452
  %v519 = vmax.f32 %v455, 0.0
  %v520 = vmax.f32 %v456, 0.0
  %v521 = vmax.f32 %v457, 0.0
  %v522 = vmax.f32 %v458, 0.0
  %v523 = vmax.f32 %v459, 0.0
  %v524 = vmax.f32 %v460, 0.0
  %v525 = vmax.f32 %v461, 0.0
  %v526 = vmax.f32 %v462, 0.0
  %v527 = vmax.f32 %v463, 0.0
  %v528 = vmax.f32 %v464, 0.0
  %v529 = vmax.f32 %v465, 0.0
  %v530 = vmax.f32 %v466, 0.0
  %v531 = vmax.f32 %v467, 0.0
  %v532 = vmax.f32 %v468, 0.0
  %v533 = vmax.f32 %v469, 0.0
  %v534 = vmax.f32 %v470, 0.0
  %v535 = vmax.f32 %v471, 0.0
  %v536 = vmax.f32 %v472, 0.0
  %v537 = vmax.f32 %v473, 0.0
  %v538 = vmax.f32 %v474, 0.0
  %v539 = vmax.f32 %v475, 0.0
  %v540 = vmax.f32 %v476, 0.0
  %v541 = vmax.f32 %v477, 0.0
  %v542 = vmax.f32 %v478, 0.0
  %v543 = vmax.f32 %v479, 0.0
  %v544 = vmax.f32 %v480, 0.0
  %v545 = vmax.f32 %v481, 0.0
  %v546 = vmax.f32 %v482, 0.0
  %v547 = vmax.f32 %v483, 0.0
  %v548 = vmax.f32 %v484, 0.0
  %v549 = vmax.f32 %v485, 0.0
  %v550 = vmax.f32 %v486, 0.0
  %v551 = vmax.f32 %v487, 0.0
  %v552 = vmax.f32 %v488, 0.0
  %v553 = vmax.f32 %v489, 0.0
  %v554 = vmax.f32 %v490, 0.0
  %v555 = vmax.f32 %v491, 0.0
  %v556 = vmax.f32 %v492, 0.0
  %v557 = vmax.f32 %v493, 0.0
  %v558 = vmax.f32 %v494, 0.0
  %v559 = vmax.f32 %v495, 0.0
  %v560 = vmax.f32 %v496, 0.0
  %v561 = vmax.f32 %v497, 0.0
  %v562 = vmax.f32 %v498, 0.0
  %v563 = vmax.f32 %v499, 0.0
  %v564 = vmax.f32 %v500, 0.0
  %v565 = vmax.f32 %v501, 0.0
  %v566 = vmax.f32 %v502, 0.0
  %v567 = vmax.f32 %v503, 0.0
  %v568 = vmax.f32 %v504, 0.0
  %v569 = vmax.f32 %v505, 0.0
  %v570 = vmax.f32 %v506, 0.0
  %v571 = vmax.f32 %v507, 0.0
  %v572 = vmax.f32 %v508, 0.0
  %v573 = vmax.f32 %v509, 0.0
  %v574 = vmax.f32 %v510, 0.0
  %v575 = vmax.f32 %v511, 0.0
  %v576 = vmax.f32 %v512, 0.0
  %v577 = vmax.f32 %v513, 0.0
  %v578 = vmax.f32 %v514, 0.0
  %v579 = vmax.f32 %v515, 0.0
  %v580 = vmax.f32 %v516, 0.0
  %v581 = vmax.f32 %v517, 0.0
  %v582 = vmax.f32 %v518, 0.0
  %v583 = vmax.f32 %v519, %v521
  %v584 = vmax.f32 %v520, %v522
  %v585 = vmax.f32 %v523, %v525
  %v586 = vmax.f32 %v524, %v526
  %v587 = vmax.f32 %v527, %v529
  %v588 = vmax.f32 %v528, %v530
  %v589 = vmax.f32 %v531, %v533
  %v590 = vmax.f32 %v532, %v534
  %v591 = vmax.f32 %v535, %v537
  %v592 = vmax.f32 %v536, %v538
  %v593 = vmax.f32 %v539, %v541
  %v594 = vmax.f32 %v540, %v542
  %v595 = vmax.f32 %v543, %v545
  %v596 = vmax.f32 %v544, %v546
  %v597 = vmax.f32 %v547, %v549
  %v598 = vmax.f32 %v548, %v550
  %v599 = vmax.f32 %v551, %v553
  %v600 = vmax.f32 %v552, %v554
  %v601 = vmax.f32 %v555, %v557
  %v602 = vmax.f32 %v556, %v558
  %v603 = vmax.f32 %v559, %v561
  %v604 = vmax.f32 %v560, %v562
  %v605 = vmax.f32 %v563, %v565
  %v606 = vmax.f32 %v564, %v566
  %v607 = vmax.f32 %v567, %v569
  %v608 = vmax.f32 %v568, %v570
  %v609 = vmax.f32 %v571, %v573
  %v610 = vmax.f32 %v572, %v574
  %v611 = vmax.f32 %v575, %v577
  %v612 = vmax.f32 %v576, %v578
  %v613 = vmax.f32 %v579, %v581
  %v614 = vmax.f32 %v580, %v582
  %v615 = vmax.f32 %v583, %v584
  %v616 = vmax.f32 %v585, %v586
  %v617 = vmax.f32 %v587, %v588
  %v618 = vmax.f32 %v589, %v590
  %v619 = vmax.f32 %v591, %v592
  %v620 = vmax.f32 %v593, %v594
  %v621 = vmax.f32 %v595, %v596
  %v622 = vmax.f32 %v597, %v598
  %v623 = vmax.f32 %v599, %v600
  %v624 = vmax.f32 %v601, %v602
  %v625 = vmax.f32 %v603, %v604
  %v626 = vmax.f32 %v605, %v606
  %v627 = vmax.f32 %v607, %v608
  %v628 = vmax.f32 %v609, %v610
  %v629 = vmax.f32 %v611, %v612
  %v630 = vmax.f32 %v613, %v614
  %631 = vst [vmem:[%s6] sm:$0xff] %v615
  %632 = vst [vmem:[%s6 + $0x8] sm:$0xff] %v616
  %633 = vst [vmem:[%s6 + $0x10] sm:$0xff] %v617
  %634 = vst [vmem:[%s6 + $0x18] sm:$0xff] %v618
  %635 = vst [vmem:[%s6 + $0x20] sm:$0xff] %v619
  %636 = vst [vmem:[%s6 + $0x28] sm:$0xff] %v620
  %637 = vst [vmem:[%s6 + $0x30] sm:$0xff] %v621
  %638 = vst [vmem:[%s6 + $0x38] sm:$0xff] %v622
  %639 = vst [vmem:[%s6 + $0x40] sm:$0xff] %v623
  %640 = vst [vmem:[%s6 + $0x48] sm:$0xff] %v624
  %641 = vst [vmem:[%s6 + $0x50] sm:$0xff] %v625
  %642 = vst [vmem:[%s6 + $0x58] sm:$0xff] %v626
  %643 = vst [vmem:[%s6 + $0x60] sm:$0xff] %v627
  %644 = vst [vmem:[%s6 + $0x68] sm:$0xff] %v628
  %645 = vst [vmem:[%s6 + $0x70] sm:$0xff] %v629
  %646 = vst [vmem:[%s6 + $0x78] sm:$0xff] %v630
  // Predicated region
  $region26: #{basic_block_forward.7} parent=0 // pred_check
    _
  $region27: #{basic_block_forward.7} parent=0 // pred_check_branch
    %648 = sbr.rel (0) target = $region29
  $region28: #{basic_block_forward.7} parent=0 // pred_region
    _
  $region29: #{basic_block_forward.7} parent=0 // pred_fallthru
    _
  // Predicated region
  $region30: #{basic_block_forward.7} parent=0 // pred_check
    _
  $region31: #{basic_block_forward.7} parent=0 // pred_check_branch
    %650 = sbr.rel (0) target = $region33
  $region32: #{basic_block_forward.7} parent=0 // pred_region
    _
  $region33: #{basic_block_forward.7} parent=0 // pred_fallthru
    _

// kernel: basic_block_forward.6
$region0: #{basic_block_forward.6}
  #allocation0 [shape = 'u32[]', space=smem, size = 0x4, offset = 0x4, fixed_abs, tag = 'smem constant byte address 0x4 - core index']
  #allocation1 [shape = 'u32[144,128]{1,0:T(1,128)}', space=vmem, size = 0x12000, scoped, tag = 'internal scratch']
  %s0 = inlined_call_operand.vmem [shape: bf16[512,1152], index: 0, kind: input, shape index: {}]
  %s1 = inlined_call_operand.vmem [shape: bf16[1152,128], index: 1, kind: input, shape index: {}]
  %s2 = inlined_call_operand.vmem [shape: bf16[512,128], index: 2, kind: input, shape index: {}]
  %s3 = inlined_call_operand.vmem [shape: bf16[128,128], index: 3, kind: input, shape index: {}]
  %s4 = inlined_call_operand.vmem [shape: f32[512,128], index: 4, kind: output, shape index: {0}]
  %s5 = inlined_call_operand.vmem [shape: f32[512,128], index: 5, kind: output, shape index: {1}]
  %s6 = inlined_call_operand.vmem [shape: f32[2,4,128], index: 6, kind: output, shape index: {2}]
  %7 = xla_tuple %s4, %s5, %s6
  %s8 = sld [smem:[#allocation0]]
  $region65: #{basic_block_forward.6} parent=0
    _
  %s10 = ssub.s32 1, %s8
  %s11 = scalar_select 0, %s10, %s8
  loop: start=0, step=1, limit=4
  $region2: #{basic_block_forward.6} parent=0 // loop_pre_header
    _
  $region3: #{basic_block_forward.6} parent=0 // loop_header
    %s13 = sphi 0, %s17
    %p14 = scmp.ge.s32.totalorder %s13, 4
    %s23 = sphi 0, %s25
    %s26 = sphi 0, %s23
    %s27 = sphi 0, %s26
    %s43 = sphi 0, %s27
    %s47 = sphi 0, %s47
    %s49 = sphi 0, %s47
    %s50 = sphi 0, %s49
    %s64 = sphi 0, %s50
    %s70 = sphi 0, %s72
    %s73 = sphi 0, %s70
    %s74 = sphi 0, %s73
    %s90 = sphi 0, %s74
    %s94 = sphi 0, %s94
    %s96 = sphi 0, %s94
    %s97 = sphi 0, %s96
    %s111 = sphi 0, %s97
    %s117 = sphi 0, %s119
    %s120 = sphi 0, %s117
    %s121 = sphi 0, %s120
    %s137 = sphi 0, %s121
    %s143 = sphi 0, %s145
    %s146 = sphi 0, %s143
    %s147 = sphi 0, %s146
    %s163 = sphi 0, %s147
    %s169 = sphi 0, %s171
    %s172 = sphi 0, %s169
    %s173 = sphi 0, %s172
    %s189 = sphi 0, %s173
  $region4: #{basic_block_forward.6} parent=0 // loop_header_branch
    %16 = sbr.rel (%p14) target = $region8
  $region5: #{basic_block_forward.6} parent=0 // loop_body
    %s18 = ssub.s32 %s13, 1
    %s19 = ssub.s32 %s13, 2
    %s20 = sadd.s32 %s13, 1
    %s21 = ssub.s32 %s13, %s20
    %p22 = scmp.eq.s32.totalorder %s21, 0
    %s24 = sadd.s32 %s23, 1
    %s25 = scalar_select %p22, %s23, %s24
    %p28 = pneg %p22
    %p29 = scmp.eq.s32.totalorder %s13, 1
    %p30 = por %p28, %p29
    %p31 = scmp.ne.s32.totalorder %s23, %s26
    %p32 = scmp.eq.s32.totalorder %s13, 0
    %p33 = por %p31, %p32
    %p34 = scmp.ne.s32.totalorder %s23, %s26
    %p35 = scmp.eq.s32.totalorder %s18, 1
    %p36 = por %p34, %p35
    %p37 = scmp.ne.s32.totalorder %s26, %s27
    %p38 = scmp.eq.s32.totalorder %s18, 0
    %p39 = por %p37, %p38
    %p40 = scmp.ne.s32.totalorder %s26, %s27
    %p41 = scmp.eq.s32.totalorder %s19, 1
    %p42 = por %p40, %p41
    %p44 = scmp.ne.s32.totalorder %s27, %s43
    %p45 = scmp.eq.s32.totalorder %s19, 0
    %p46 = por %p44, %p45
    %s48 = sadd.s32 %s47, 1
    %p51 = scmp.eq.s32.totalorder %s13, 1
    %p52 = scmp.ne.s32.totalorder %s47, %s49
    %p53 = scmp.eq.s32.totalorder %s13, 0
    %p54 = por %p52, %p53
    %p55 = scmp.ne.s32.totalorder %s47, %s49
    %p56 = scmp.eq.s32.totalorder %s18, 1
    %p57 = por %p55, %p56
    %p58 = scmp.ne.s32.totalorder %s49, %s50
    %p59 = scmp.eq.s32.totalorder %s18, 0
    %p60 = por %p58, %p59
    %p61 = scmp.ne.s32.totalorder %s49, %s50
    %p62 = scmp.eq.s32.totalorder %s19, 1
    %p63 = por %p61, %p62
    %p65 = scmp.ne.s32.totalorder %s50, %s64
    %p66 = scmp.eq.s32.totalorder %s19, 0
    %p67 = por %p65, %p66
    %s68 = ssub.s32 %s13, %s20
    %p69 = scmp.eq.s32.totalorder %s68, 0
    %s71 = sadd.s32 %s70, 1
    %s72 = scalar_select %p69, %s70, %s71
    %p75 = pneg %p69
    %p76 = scmp.eq.s32.totalorder %s13, 1
    %p77 = por %p75, %p76
    %p78 = scmp.ne.s32.totalorder %s70, %s73
    %p79 = scmp.eq.s32.totalorder %s13, 0
    %p80 = por %p78, %p79
    %p81 = scmp.ne.s32.totalorder %s70, %s73
    %p82 = scmp.eq.s32.totalorder %s18, 1
    %p83 = por %p81, %p82
    %p84 = scmp.ne.s32.totalorder %s73, %s74
    %p85 = scmp.eq.s32.totalorder %s18, 0
    %p86 = por %p84, %p85
    %p87 = scmp.ne.s32.totalorder %s73, %s74
    %p88 = scmp.eq.s32.totalorder %s19, 1
    %p89 = por %p87, %p88
    %p91 = scmp.ne.s32.totalorder %s74, %s90
    %p92 = scmp.eq.s32.totalorder %s19, 0
    %p93 = por %p91, %p92
    %s95 = sadd.s32 %s94, 1
    %p98 = scmp.eq.s32.totalorder %s13, 1
    %p99 = scmp.ne.s32.totalorder %s94, %s96
    %p100 = scmp.eq.s32.totalorder %s13, 0
    %p101 = por %p99, %p100
    %p102 = scmp.ne.s32.totalorder %s94, %s96
    %p103 = scmp.eq.s32.totalorder %s18, 1
    %p104 = por %p102, %p103
    %p105 = scmp.ne.s32.totalorder %s96, %s97
    %p106 = scmp.eq.s32.totalorder %s18, 0
    %p107 = por %p105, %p106
    %p108 = scmp.ne.s32.totalorder %s96, %s97
    %p109 = scmp.eq.s32.totalorder %s19, 1
    %p110 = por %p108, %p109
    %p112 = scmp.ne.s32.totalorder %s97, %s111
    %p113 = scmp.eq.s32.totalorder %s19, 0
    %p114 = por %p112, %p113
    %s115 = ssub.s32 %s13, %s20
    %p116 = scmp.eq.s32.totalorder %s115, 0
    %s118 = sadd.s32 %s117, 1
    %s119 = scalar_select %p116, %s117, %s118
    %p122 = pneg %p116
    %p123 = scmp.eq.s32.totalorder %s13, 1
    %p124 = por %p122, %p123
    %p125 = scmp.ne.s32.totalorder %s117, %s120
    %p126 = scmp.eq.s32.totalorder %s13, 0
    %p127 = por %p125, %p126
    %p128 = scmp.ne.s32.totalorder %s117, %s120
    %p129 = scmp.eq.s32.totalorder %s18, 1
    %p130 = por %p128, %p129
    %p131 = scmp.ne.s32.totalorder %s120, %s121
    %p132 = scmp.eq.s32.totalorder %s18, 0
    %p133 = por %p131, %p132
    %p134 = scmp.ne.s32.totalorder %s120, %s121
    %p135 = scmp.eq.s32.totalorder %s19, 1
    %p136 = por %p134, %p135
    %p138 = scmp.ne.s32.totalorder %s121, %s137
    %p139 = scmp.eq.s32.totalorder %s19, 0
    %p140 = por %p138, %p139
    %s141 = ssub.s32 %s13, %s20
    %p142 = scmp.eq.s32.totalorder %s141, 0
    %s144 = sadd.s32 %s143, 1
    %s145 = scalar_select %p142, %s143, %s144
    %p148 = pneg %p142
    %p149 = scmp.eq.s32.totalorder %s13, 1
    %p150 = por %p148, %p149
    %p151 = scmp.ne.s32.totalorder %s143, %s146
    %p152 = scmp.eq.s32.totalorder %s13, 0
    %p153 = por %p151, %p152
    %p154 = scmp.ne.s32.totalorder %s143, %s146
    %p155 = scmp.eq.s32.totalorder %s18, 1
    %p156 = por %p154, %p155
    %p157 = scmp.ne.s32.totalorder %s146, %s147
    %p158 = scmp.eq.s32.totalorder %s18, 0
    %p159 = por %p157, %p158
    %p160 = scmp.ne.s32.totalorder %s146, %s147
    %p161 = scmp.eq.s32.totalorder %s19, 1
    %p162 = por %p160, %p161
    %p164 = scmp.ne.s32.totalorder %s147, %s163
    %p165 = scmp.eq.s32.totalorder %s19, 0
    %p166 = por %p164, %p165
    %s167 = ssub.s32 %s13, %s20
    %p168 = scmp.eq.s32.totalorder %s167, 0
    %s170 = sadd.s32 %s169, 1
    %s171 = scalar_select %p168, %s169, %s170
    %p174 = pneg %p168
    %p175 = scmp.eq.s32.totalorder %s13, 1
    %p176 = por %p174, %p175
    %p177 = scmp.ne.s32.totalorder %s169, %s172
    %p178 = scmp.eq.s32.totalorder %s13, 0
    %p179 = por %p177, %p178
    %p180 = scmp.ne.s32.totalorder %s169, %s172
    %p181 = scmp.eq.s32.totalorder %s18, 1
    %p182 = por %p180, %p181
    %p183 = scmp.ne.s32.totalorder %s172, %s173
    %p184 = scmp.eq.s32.totalorder %s18, 0
    %p185 = por %p183, %p184
    %p186 = scmp.ne.s32.totalorder %s172, %s173
    %p187 = scmp.eq.s32.totalorder %s19, 1
    %p188 = por %p186, %p187
    %p190 = scmp.ne.s32.totalorder %s173, %s189
    %p191 = scmp.eq.s32.totalorder %s19, 0
    %p192 = por %p190, %p191
    %p193 = scmp.le.s32.totalorder 1, %s13
    %p194 = scmp.lt.s32.totalorder %s13, 3
    %p195 = pnand %p193, %p194
    %p196 = pneg %p195
    // Predicated region
    $region9: #{basic_block_forward.6} parent=5 // pred_check
      _
    $region10: #{basic_block_forward.6} parent=5 // pred_check_branch
      %198 = sbr.rel (%p195) target = $region12
    $region11: #{basic_block_forward.6} parent=5 // pred_region
      %s199 = ssub.s32 %s13, 1
      // Predicated region
      $region13: #{basic_block_forward.6} parent=11 // pred_check
        %p200 = pneg %p60
      $region14: #{basic_block_forward.6} parent=11 // pred_check_branch
        %202 = sbr.rel (%p200) target = $region16
      $region15: #{basic_block_forward.6} parent=11 // pred_region
        _
      $region16: #{basic_block_forward.6} parent=11 // pred_fallthru
        _
      // Predicated region
      $region17: #{basic_block_forward.6} parent=11 // pred_check
        %p203 = pneg %p107
      $region18: #{basic_block_forward.6} parent=11 // pred_check_branch
        %205 = sbr.rel (%p203) target = $region20
      $region19: #{basic_block_forward.6} parent=11 // pred_region
        _
      $region20: #{basic_block_forward.6} parent=11 // pred_fallthru
        _
    $region12: #{basic_block_forward.6} parent=5 // pred_fallthru
      _
    %p206 = scmp.lt.s32.totalorder %s13, 2
    // Predicated region
    $region21: #{basic_block_forward.6} parent=5 // pred_check
      %p207 = pneg %p206
    $region22: #{basic_block_forward.6} parent=5 // pred_check_branch
      %209 = sbr.rel (%p207) target = $region24
    $region23: #{basic_block_forward.6} parent=5 // pred_region
      // Predicated region
      $region25: #{basic_block_forward.6} parent=23 // pred_check
        %p210 = pneg %p33
      $region26: #{basic_block_forward.6} parent=23 // pred_check_branch
        %212 = sbr.rel (%p210) target = $region28
      $region27: #{basic_block_forward.6} parent=23 // pred_region
        %s213 = smul.u32 32, %s13
        %p214 = scmp.lt.s32.totalorder %s213, 63
        %s215 = scalar_select %p214, %s213, 63
        %s216 = smul.addr %s215, 9
        %s217 = smul.addr %s216, 4
        %s218 = scalar_lea.vmem %s0, %s217
        %s219 = smul.u32 32, %s13
      $region28: #{basic_block_forward.6} parent=23 // pred_fallthru
        _
      // Predicated region
      $region29: #{basic_block_forward.6} parent=23 // pred_check
        %p220 = pneg %p80
      $region30: #{basic_block_forward.6} parent=23 // pred_check_branch
        %222 = sbr.rel (%p220) target = $region32
      $region31: #{basic_block_forward.6} parent=23 // pred_region
        %s223 = smul.u32 32, %s13
        %p224 = scmp.lt.s32.totalorder %s223, 63
        %s225 = scalar_select %p224, %s223, 63
        %s226 = smul.addr %s225, 4
        %s227 = scalar_lea.vmem %s2, %s226
        %s228 = smul.u32 32, %s13
      $region32: #{basic_block_forward.6} parent=23 // pred_fallthru
        _
    $region24: #{basic_block_forward.6} parent=5 // pred_fallthru
      _
    %p229 = scmp.le.s32.totalorder 1, %s13
    %p230 = scmp.lt.s32.totalorder %s13, 3
    %p231 = pnand %p229, %p230
    %p232 = pneg %p231
    // Predicated region
    $region33: #{basic_block_forward.6} parent=5 // pred_check
      _
    $region34: #{basic_block_forward.6} parent=5 // pred_check_branch
      %234 = sbr.rel (%p231) target = $region36
    $region35: #{basic_block_forward.6} parent=5 // pred_region
      %s235 = ssub.s32 %s13, 1
      %s236 = smul.u32 32, %s18
      %p237 = scmp.lt.s32.totalorder %s236, 63
      %s238 = scalar_select %p237, %s236, 63
      %s239 = smul.addr %s238, 9
      %s240 = smul.addr %s239, 4
      %s241 = scalar_lea.vmem %s0, %s240
      %p242 = pneg %p39
      %p243 = pneg %p36
      %p244 = pneg %p60
      %p245 = pneg %p57
      %s246 = smul.u32 32, %s18
      %p247 = scmp.lt.s32.totalorder %s246, 63
      %s248 = scalar_select %p247, %s246, 63
      %s249 = smul.addr %s248, 4
      %s250 = scalar_lea.vmem %s2, %s249
      %p251 = pneg %p86
      %p252 = pneg %p83
      %p253 = pneg %p107
      %p254 = pneg %p104
      %p255 = pneg %p133
      %p256 = pneg %p130
      %s257 = smul.u32 32, %s18
      %p258 = scmp.lt.s32.totalorder %s257, 63
      %s259 = scalar_select %p258, %s257, 63
      %s260 = smul.addr %s259, 8
      %s261 = scalar_lea.vmem %s4, %s260
      %p262 = pneg %p159
      %p263 = pneg %p156
      %s264 = smul.u32 32, %s18
      %p265 = scmp.lt.s32.totalorder %s264, 63
      %s266 = scalar_select %p265, %s264, 63
      %s267 = smul.addr %s266, 8
      %s268 = scalar_lea.vmem %s5, %s267
      %p269 = pneg %p185
      %p270 = pneg %p182
      %p271 = scmp.lt.s32.totalorder %s18, 1
      %s272 = scalar_select %p271, %s18, 1
      %s273 = smul.addr %s272, 4
      %s274 = scalar_lea.vmem %s6, %s273
      %s275 = smul.u32 32, %s18
      %p276 = scmp.lt.s32.totalorder %s275, 63
      %s277 = scalar_select %p276, %s275, 63
      %s278 = smul.addr %s277, 9
      %s279 = smul.addr %s278, 4
      %s280 = scalar_lea.vmem %s0, %s279
      %s281 = smul.u32 32, %s18
      %s282 = smul.u32 32, %s18
      %p283 = scmp.lt.s32.totalorder %s282, 63
      %s284 = scalar_select %p283, %s282, 63
      %s285 = smul.addr %s284, 4
      %s286 = scalar_lea.vmem %s2, %s285
      %s287 = smul.u32 32, %s18
      %s288 = smul.u32 32, %s18
      %p289 = scmp.lt.s32.totalorder %s288, 63
      %s290 = scalar_select %p289, %s288, 63
      %s291 = smul.addr %s290, 8
      %s292 = scalar_lea.vmem %s4, %s291
      %s293 = smul.u32 32, %s18
      %s294 = smul.u32 32, %s18
      %p295 = scmp.lt.s32.totalorder %s294, 63
      %s296 = scalar_select %p295, %s294, 63
      %s297 = smul.addr %s296, 8
      %s298 = scalar_lea.vmem %s5, %s297
      %s299 = smul.u32 32, %s18
      %p300 = scmp.lt.s32.totalorder %s18, 1
      %s301 = scalar_select %p300, %s18, 1
      %s302 = smul.addr %s301, 4
      %s303 = scalar_lea.vmem %s6, %s302
      %v305 = vld [vmem:[%s280] sm:$0xff]
      %v306 = vld [vmem:[%s280 + $0x8] sm:$0xff]
      %v307 = vld [vmem:[%s280 + $0x10] sm:$0xff]
      %v308 = vld [vmem:[%s280 + $0x18] sm:$0xff]
      %v309 = vld [vmem:[%s280 + $0x20] sm:$0xf]
      %v310 = vld [vmem:[%s280 + $0x24] sm:$0xff]
      %v311 = vld [vmem:[%s280 + $0x2c] sm:$0xff]
      %v312 = vld [vmem:[%s280 + $0x34] sm:$0xff]
      %v313 = vld [vmem:[%s280 + $0x3c] sm:$0xff]
      %v314 = vld [vmem:[%s280 + $0x44] sm:$0xf]
      %v315 = vld [vmem:[%s280 + $0x48] sm:$0xff]
      %v316 = vld [vmem:[%s280 + $0x50] sm:$0xff]
      %v317 = vld [vmem:[%s280 + $0x58] sm:$0xff]
      %v318 = vld [vmem:[%s280 + $0x60] sm:$0xff]
      %v319 = vld [vmem:[%s280 + $0x68] sm:$0xf]
      %v320 = vld [vmem:[%s280 + $0x6c] sm:$0xff]
      %v321 = vld [vmem:[%s280 + $0x74] sm:$0xff]
      %v322 = vld [vmem:[%s280 + $0x7c] sm:$0xff]
      %v323 = vld [vmem:[%s280 + $0x84] sm:$0xff]
      %v324 = vld [vmem:[%s280 + $0x8c] sm:$0xf]
      %v325 = vld [vmem:[%s280 + $0x90] sm:$0xff]
      %v326 = vld [vmem:[%s280 + $0x98] sm:$0xff]
      %v327 = vld [vmem:[%s280 + $0xa0] sm:$0xff]
      %v328 = vld [vmem:[%s280 + $0xa8] sm:$0xff]
      %v329 = vld [vmem:[%s280 + $0xb0] sm:$0xf]
      %v330 = vld [vmem:[%s280 + $0xb4] sm:$0xff]
      %v331 = vld [vmem:[%s280 + $0xbc] sm:$0xff]
      %v332 = vld [vmem:[%s280 + $0xc4] sm:$0xff]
      %v333 = vld [vmem:[%s280 + $0xcc] sm:$0xff]
      %v334 = vld [vmem:[%s280 + $0xd4] sm:$0xf]
      %v335 = vld [vmem:[%s280 + $0xd8] sm:$0xff]
      %v336 = vld [vmem:[%s280 + $0xe0] sm:$0xff]
      %v337 = vld [vmem:[%s280 + $0xe8] sm:$0xff]
      %v338 = vld [vmem:[%s280 + $0xf0] sm:$0xff]
      %v339 = vld [vmem:[%s280 + $0xf8] sm:$0xf]
      %v340 = vld [vmem:[%s280 + $0xfc] sm:$0xff]
      %v341 = vld [vmem:[%s280 + $0x104] sm:$0xff]
      %v342 = vld [vmem:[%s280 + $0x10c] sm:$0xff]
      %v343 = vld [vmem:[%s280 + $0x114] sm:$0xff]
      %v344 = vld [vmem:[%s280 + $0x11c] sm:$0xf]
      %v345 = vld [vmem:[%s280 + $0x120] sm:$0xff]
      %v346 = vld [vmem:[%s280 + $0x128] sm:$0xff]
      %v347 = vld [vmem:[%s280 + $0x130] sm:$0xff]
      %v348 = vld [vmem:[%s280 + $0x138] sm:$0xff]
      %v349 = vld [vmem:[%s280 + $0x140] sm:$0xf]
      %v350 = vld [vmem:[%s280 + $0x144] sm:$0xff]
      %v351 = vld [vmem:[%s280 + $0x14c] sm:$0xff]
      %v352 = vld [vmem:[%s280 + $0x154] sm:$0xff]
      %v353 = vld [vmem:[%s280 + $0x15c] sm:$0xff]
      %v354 = vld [vmem:[%s280 + $0x164] sm:$0xf]
      %v355 = vld [vmem:[%s280 + $0x168] sm:$0xff]
      %v356 = vld [vmem:[%s280 + $0x170] sm:$0xff]
      %v357 = vld [vmem:[%s280 + $0x178] sm:$0xff]
      %v358 = vld [vmem:[%s280 + $0x180] sm:$0xff]
      %v359 = vld [vmem:[%s280 + $0x188] sm:$0xf]
      %v360 = vld [vmem:[%s280 + $0x18c] sm:$0xff]
      %v361 = vld [vmem:[%s280 + $0x194] sm:$0xff]
      %v362 = vld [vmem:[%s280 + $0x19c] sm:$0xff]
      %v363 = vld [vmem:[%s280 + $0x1a4] sm:$0xff]
      %v364 = vld [vmem:[%s280 + $0x1ac] sm:$0xf]
      %v365 = vld [vmem:[%s280 + $0x1b0] sm:$0xff]
      %v366 = vld [vmem:[%s280 + $0x1b8] sm:$0xff]
      %v367 = vld [vmem:[%s280 + $0x1c0] sm:$0xff]
      %v368 = vld [vmem:[%s280 + $0x1c8] sm:$0xff]
      %v369 = vld [vmem:[%s280 + $0x1d0] sm:$0xf]
      %v370 = vld [vmem:[%s280 + $0x1d4] sm:$0xff]
      %v371 = vld [vmem:[%s280 + $0x1dc] sm:$0xff]
      %v372 = vld [vmem:[%s280 + $0x1e4] sm:$0xff]
      %v373 = vld [vmem:[%s280 + $0x1ec] sm:$0xff]
      %v374 = vld [vmem:[%s280 + $0x1f4] sm:$0xf]
      %v375 = vld [vmem:[%s280 + $0x1f8] sm:$0xff]
      %v376 = vld [vmem:[%s280 + $0x200] sm:$0xff]
      %v377 = vld [vmem:[%s280 + $0x208] sm:$0xff]
      %v378 = vld [vmem:[%s280 + $0x210] sm:$0xff]
      %v379 = vld [vmem:[%s280 + $0x218] sm:$0xf]
      %v380 = vld [vmem:[%s280 + $0x21c] sm:$0xff]
      %v381 = vld [vmem:[%s280 + $0x224] sm:$0xff]
      %v382 = vld [vmem:[%s280 + $0x22c] sm:$0xff]
      %v383 = vld [vmem:[%s280 + $0x234] sm:$0xff]
      %v384 = vld [vmem:[%s280 + $0x23c] sm:$0xf]
      %v385 = vld [vmem:[%s280 + $0x240] sm:$0xff]
      %v386 = vld [vmem:[%s280 + $0x248] sm:$0xff]
      %v387 = vld [vmem:[%s280 + $0x250] sm:$0xff]
      %v388 = vld [vmem:[%s280 + $0x258] sm:$0xff]
      %v389 = vld [vmem:[%s280 + $0x260] sm:$0xf]
      %v390 = vld [vmem:[%s280 + $0x264] sm:$0xff]
      %v391 = vld [vmem:[%s280 + $0x26c] sm:$0xff]
      %v392 = vld [vmem:[%s280 + $0x274] sm:$0xff]
      %v393 = vld [vmem:[%s280 + $0x27c] sm:$0xff]
      %v394 = vld [vmem:[%s280 + $0x284] sm:$0xf]
      %v395 = vld [vmem:[%s280 + $0x288] sm:$0xff]
      %v396 = vld [vmem:[%s280 + $0x290] sm:$0xff]
      %v397 = vld [vmem:[%s280 + $0x298] sm:$0xff]
      %v398 = vld [vmem:[%s280 + $0x2a0] sm:$0xff]
      %v399 = vld [vmem:[%s280 + $0x2a8] sm:$0xf]
      %v400 = vld [vmem:[%s280 + $0x2ac] sm:$0xff]
      %v401 = vld [vmem:[%s280 + $0x2b4] sm:$0xff]
      %v402 = vld [vmem:[%s280 + $0x2bc] sm:$0xff]
      %v403 = vld [vmem:[%s280 + $0x2c4] sm:$0xff]
      %v404 = vld [vmem:[%s280 + $0x2cc] sm:$0xf]
      %v405 = vld [vmem:[%s280 + $0x2d0] sm:$0xff]
      %v406 = vld [vmem:[%s280 + $0x2d8] sm:$0xff]
      %v407 = vld [vmem:[%s280 + $0x2e0] sm:$0xff]
      %v408 = vld [vmem:[%s280 + $0x2e8] sm:$0xff]
      %v409 = vld [vmem:[%s280 + $0x2f0] sm:$0xf]
      %v410 = vld [vmem:[%s280 + $0x2f4] sm:$0xff]
      %v411 = vld [vmem:[%s280 + $0x2fc] sm:$0xff]
      %v412 = vld [vmem:[%s280 + $0x304] sm:$0xff]
      %v413 = vld [vmem:[%s280 + $0x30c] sm:$0xff]
      %v414 = vld [vmem:[%s280 + $0x314] sm:$0xf]
      %v415 = vld [vmem:[%s280 + $0x318] sm:$0xff]
      %v416 = vld [vmem:[%s280 + $0x320] sm:$0xff]
      %v417 = vld [vmem:[%s280 + $0x328] sm:$0xff]
      %v418 = vld [vmem:[%s280 + $0x330] sm:$0xff]
      %v419 = vld [vmem:[%s280 + $0x338] sm:$0xf]
      %v420 = vld [vmem:[%s280 + $0x33c] sm:$0xff]
      %v421 = vld [vmem:[%s280 + $0x344] sm:$0xff]
      %v422 = vld [vmem:[%s280 + $0x34c] sm:$0xff]
      %v423 = vld [vmem:[%s280 + $0x354] sm:$0xff]
      %v424 = vld [vmem:[%s280 + $0x35c] sm:$0xf]
      %v425 = vld [vmem:[%s280 + $0x360] sm:$0xff]
      %v426 = vld [vmem:[%s280 + $0x368] sm:$0xff]
      %v427 = vld [vmem:[%s280 + $0x370] sm:$0xff]
      %v428 = vld [vmem:[%s280 + $0x378] sm:$0xff]
      %v429 = vld [vmem:[%s280 + $0x380] sm:$0xf]
      %v430 = vld [vmem:[%s280 + $0x384] sm:$0xff]
      %v431 = vld [vmem:[%s280 + $0x38c] sm:$0xff]
      %v432 = vld [vmem:[%s280 + $0x394] sm:$0xff]
      %v433 = vld [vmem:[%s280 + $0x39c] sm:$0xff]
      %v434 = vld [vmem:[%s280 + $0x3a4] sm:$0xf]
      %v435 = vld [vmem:[%s280 + $0x3a8] sm:$0xff]
      %v436 = vld [vmem:[%s280 + $0x3b0] sm:$0xff]
      %v437 = vld [vmem:[%s280 + $0x3b8] sm:$0xff]
      %v438 = vld [vmem:[%s280 + $0x3c0] sm:$0xff]
      %v439 = vld [vmem:[%s280 + $0x3c8] sm:$0xf]
      %v440 = vld [vmem:[%s280 + $0x3cc] sm:$0xff]
      %v441 = vld [vmem:[%s280 + $0x3d4] sm:$0xff]
      %v442 = vld [vmem:[%s280 + $0x3dc] sm:$0xff]
      %v443 = vld [vmem:[%s280 + $0x3e4] sm:$0xff]
      %v444 = vld [vmem:[%s280 + $0x3ec] sm:$0xf]
      %v445 = vld [vmem:[%s280 + $0x3f0] sm:$0xff]
      %v446 = vld [vmem:[%s280 + $0x3f8] sm:$0xff]
      %v447 = vld [vmem:[%s280 + $0x400] sm:$0xff]
      %v448 = vld [vmem:[%s280 + $0x408] sm:$0xff]
      %v449 = vld [vmem:[%s280 + $0x410] sm:$0xf]
      %v450 = vld [vmem:[%s280 + $0x414] sm:$0xff]
      %v451 = vld [vmem:[%s280 + $0x41c] sm:$0xff]
      %v452 = vld [vmem:[%s280 + $0x424] sm:$0xff]
      %v453 = vld [vmem:[%s280 + $0x42c] sm:$0xff]
      %v454 = vld [vmem:[%s280 + $0x434] sm:$0xf]
      %v455 = vld [vmem:[%s280 + $0x438] sm:$0xff]
      %v456 = vld [vmem:[%s280 + $0x440] sm:$0xff]
      %v457 = vld [vmem:[%s280 + $0x448] sm:$0xff]
      %v458 = vld [vmem:[%s280 + $0x450] sm:$0xff]
      %v459 = vld [vmem:[%s280 + $0x458] sm:$0xf]
      %v460 = vld [vmem:[%s280 + $0x45c] sm:$0xff]
      %v461 = vld [vmem:[%s280 + $0x464] sm:$0xff]
      %v462 = vld [vmem:[%s280 + $0x46c] sm:$0xff]
      %v463 = vld [vmem:[%s280 + $0x474] sm:$0xff]
      %v464 = vld [vmem:[%s280 + $0x47c] sm:$0xf]
      %v465 = vld [vmem:[%s1] sm:$0xf]
      %v466 = vld [vmem:[%s1 + $0x4] sm:$0xf]
      %v467 = vld [vmem:[%s1 + $0x8] sm:$0xf]
      %v468 = vld [vmem:[%s1 + $0xc] sm:$0xf]
      %v469 = vld [vmem:[%s1 + $0x10] sm:$0xf]
      %v470 = vld [vmem:[%s1 + $0x14] sm:$0xf]
      %v471 = vld [vmem:[%s1 + $0x18] sm:$0xf]
      %v472 = vld [vmem:[%s1 + $0x1c] sm:$0xf]
      %v473 = vld [vmem:[%s1 + $0x20] sm:$0xf]
      %v474 = vld [vmem:[%s1 + $0x24] sm:$0xf]
      %v475 = vld [vmem:[%s1 + $0x28] sm:$0xf]
      %v476 = vld [vmem:[%s1 + $0x2c] sm:$0xf]
      %v477 = vld [vmem:[%s1 + $0x30] sm:$0xf]
      %v478 = vld [vmem:[%s1 + $0x34] sm:$0xf]
      %v479 = vld [vmem:[%s1 + $0x38] sm:$0xf]
      %v480 = vld [vmem:[%s1 + $0x3c] sm:$0xf]
      %v481 = vld [vmem:[%s1 + $0x40] sm:$0xf]
      %v482 = vld [vmem:[%s1 + $0x44] sm:$0xf]
      %v483 = vld [vmem:[%s1 + $0x48] sm:$0xf]
      %v484 = vld [vmem:[%s1 + $0x4c] sm:$0xf]
      %v485 = vld [vmem:[%s1 + $0x50] sm:$0xf]
      %v486 = vld [vmem:[%s1 + $0x54] sm:$0xf]
      %v487 = vld [vmem:[%s1 + $0x58] sm:$0xf]
      %v488 = vld [vmem:[%s1 + $0x5c] sm:$0xf]
      %v489 = vld [vmem:[%s1 + $0x60] sm:$0xf]
      %v490 = vld [vmem:[%s1 + $0x64] sm:$0xf]
      %v491 = vld [vmem:[%s1 + $0x68] sm:$0xf]
      %v492 = vld [vmem:[%s1 + $0x6c] sm:$0xf]
      %v493 = vld [vmem:[%s1 + $0x70] sm:$0xf]
      %v494 = vld [vmem:[%s1 + $0x74] sm:$0xf]
      %v495 = vld [vmem:[%s1 + $0x78] sm:$0xf]
      %v496 = vld [vmem:[%s1 + $0x7c] sm:$0xf]
      %v497 = vld [vmem:[%s1 + $0x80] sm:$0xf]
      %v498 = vld [vmem:[%s1 + $0x84] sm:$0xf]
      %v499 = vld [vmem:[%s1 + $0x88] sm:$0xf]
      %v500 = vld [vmem:[%s1 + $0x8c] sm:$0xf]
      %v501 = vld [vmem:[%s1 + $0x90] sm:$0xf]
      %v502 = vld [vmem:[%s1 + $0x94] sm:$0xf]
      %v503 = vld [vmem:[%s1 + $0x98] sm:$0xf]
      %v504 = vld [vmem:[%s1 + $0x9c] sm:$0xf]
      %v505 = vld [vmem:[%s1 + $0xa0] sm:$0xf]
      %v506 = vld [vmem:[%s1 + $0xa4] sm:$0xf]
      %v507 = vld [vmem:[%s1 + $0xa8] sm:$0xf]
      %v508 = vld [vmem:[%s1 + $0xac] sm:$0xf]
      %v509 = vld [vmem:[%s1 + $0xb0] sm:$0xf]
      %v510 = vld [vmem:[%s1 + $0xb4] sm:$0xf]
      %v511 = vld [vmem:[%s1 + $0xb8] sm:$0xf]
      %v512 = vld [vmem:[%s1 + $0xbc] sm:$0xf]
      %v513 = vld [vmem:[%s1 + $0xc0] sm:$0xf]
      %v514 = vld [vmem:[%s1 + $0xc4] sm:$0xf]
      %v515 = vld [vmem:[%s1 + $0xc8] sm:$0xf]
      %v516 = vld [vmem:[%s1 + $0xcc] sm:$0xf]
      %v517 = vld [vmem:[%s1 + $0xd0] sm:$0xf]
      %v518 = vld [vmem:[%s1 + $0xd4] sm:$0xf]
      %v519 = vld [vmem:[%s1 + $0xd8] sm:$0xf]
      %v520 = vld [vmem:[%s1 + $0xdc] sm:$0xf]
      %v521 = vld [vmem:[%s1 + $0xe0] sm:$0xf]
      %v522 = vld [vmem:[%s1 + $0xe4] sm:$0xf]
      %v523 = vld [vmem:[%s1 + $0xe8] sm:$0xf]
      %v524 = vld [vmem:[%s1 + $0xec] sm:$0xf]
      %v525 = vld [vmem:[%s1 + $0xf0] sm:$0xf]
      %v526 = vld [vmem:[%s1 + $0xf4] sm:$0xf]
      %v527 = vld [vmem:[%s1 + $0xf8] sm:$0xf]
      %v528 = vld [vmem:[%s1 + $0xfc] sm:$0xf]
      %v529 = vld [vmem:[%s1 + $0x100] sm:$0xf]
      %v530 = vld [vmem:[%s1 + $0x104] sm:$0xf]
      %v531 = vld [vmem:[%s1 + $0x108] sm:$0xf]
      %v532 = vld [vmem:[%s1 + $0x10c] sm:$0xf]
      %v533 = vld [vmem:[%s1 + $0x110] sm:$0xf]
      %v534 = vld [vmem:[%s1 + $0x114] sm:$0xf]
      %v535 = vld [vmem:[%s1 + $0x118] sm:$0xf]
      %v536 = vld [vmem:[%s1 + $0x11c] sm:$0xf]
      %v537 = vld [vmem:[%s1 + $0x120] sm:$0xf]
      %v538 = vld [vmem:[%s1 + $0x124] sm:$0xf]
      %v539 = vld [vmem:[%s1 + $0x128] sm:$0xf]
      %v540 = vld [vmem:[%s1 + $0x12c] sm:$0xf]
      %v541 = vld [vmem:[%s1 + $0x130] sm:$0xf]
      %v542 = vld [vmem:[%s1 + $0x134] sm:$0xf]
      %v543 = vld [vmem:[%s1 + $0x138] sm:$0xf]
      %v544 = vld [vmem:[%s1 + $0x13c] sm:$0xf]
      %v545 = vld [vmem:[%s1 + $0x140] sm:$0xf]
      %v546 = vld [vmem:[%s1 + $0x144] sm:$0xf]
      %v547 = vld [vmem:[%s1 + $0x148] sm:$0xf]
      %v548 = vld [vmem:[%s1 + $0x14c] sm:$0xf]
      %v549 = vld [vmem:[%s1 + $0x150] sm:$0xf]
      %v550 = vld [vmem:[%s1 + $0x154] sm:$0xf]
      %v551 = vld [vmem:[%s1 + $0x158] sm:$0xf]
      %v552 = vld [vmem:[%s1 + $0x15c] sm:$0xf]
      %v553 = vld [vmem:[%s1 + $0x160] sm:$0xf]
      %v554 = vld [vmem:[%s1 + $0x164] sm:$0xf]
      %v555 = vld [vmem:[%s1 + $0x168] sm:$0xf]
      %v556 = vld [vmem:[%s1 + $0x16c] sm:$0xf]
      %v557 = vld [vmem:[%s1 + $0x170] sm:$0xf]
      %v558 = vld [vmem:[%s1 + $0x174] sm:$0xf]
      %v559 = vld [vmem:[%s1 + $0x178] sm:$0xf]
      %v560 = vld [vmem:[%s1 + $0x17c] sm:$0xf]
      %v561 = vld [vmem:[%s1 + $0x180] sm:$0xf]
      %v562 = vld [vmem:[%s1 + $0x184] sm:$0xf]
      %v563 = vld [vmem:[%s1 + $0x188] sm:$0xf]
      %v564 = vld [vmem:[%s1 + $0x18c] sm:$0xf]
      %v565 = vld [vmem:[%s1 + $0x190] sm:$0xf]
      %v566 = vld [vmem:[%s1 + $0x194] sm:$0xf]
      %v567 = vld [vmem:[%s1 + $0x198] sm:$0xf]
      %v568 = vld [vmem:[%s1 + $0x19c] sm:$0xf]
      %v569 = vld [vmem:[%s1 + $0x1a0] sm:$0xf]
      %v570 = vld [vmem:[%s1 + $0x1a4] sm:$0xf]
      %v571 = vld [vmem:[%s1 + $0x1a8] sm:$0xf]
      %v572 = vld [vmem:[%s1 + $0x1ac] sm:$0xf]
      %v573 = vld [vmem:[%s1 + $0x1b0] sm:$0xf]
      %v574 = vld [vmem:[%s1 + $0x1b4] sm:$0xf]
      %v575 = vld [vmem:[%s1 + $0x1b8] sm:$0xf]
      %v576 = vld [vmem:[%s1 + $0x1bc] sm:$0xf]
      %v577 = vld [vmem:[%s1 + $0x1c0] sm:$0xf]
      %v578 = vld [vmem:[%s1 + $0x1c4] sm:$0xf]
      %v579 = vld [vmem:[%s1 + $0x1c8] sm:$0xf]
      %v580 = vld [vmem:[%s1 + $0x1cc] sm:$0xf]
      %v581 = vld [vmem:[%s1 + $0x1d0] sm:$0xf]
      %v582 = vld [vmem:[%s1 + $0x1d4] sm:$0xf]
      %v583 = vld [vmem:[%s1 + $0x1d8] sm:$0xf]
      %v584 = vld [vmem:[%s1 + $0x1dc] sm:$0xf]
      %v585 = vld [vmem:[%s1 + $0x1e0] sm:$0xf]
      %v586 = vld [vmem:[%s1 + $0x1e4] sm:$0xf]
      %v587 = vld [vmem:[%s1 + $0x1e8] sm:$0xf]
      %v588 = vld [vmem:[%s1 + $0x1ec] sm:$0xf]
      %v589 = vld [vmem:[%s1 + $0x1f0] sm:$0xf]
      %v590 = vld [vmem:[%s1 + $0x1f4] sm:$0xf]
      %v591 = vld [vmem:[%s1 + $0x1f8] sm:$0xf]
      %v592 = vld [vmem:[%s1 + $0x1fc] sm:$0xf]
      %v593 = vld [vmem:[%s1 + $0x200] sm:$0xf]
      %v594 = vld [vmem:[%s1 + $0x204] sm:$0xf]
      %v595 = vld [vmem:[%s1 + $0x208] sm:$0xf]
      %v596 = vld [vmem:[%s1 + $0x20c] sm:$0xf]
      %v597 = vld [vmem:[%s1 + $0x210] sm:$0xf]
      %v598 = vld [vmem:[%s1 + $0x214] sm:$0xf]
      %v599 = vld [vmem:[%s1 + $0x218] sm:$0xf]
      %v600 = vld [vmem:[%s1 + $0x21c] sm:$0xf]
      %v601 = vld [vmem:[%s1 + $0x220] sm:$0xf]
      %v602 = vld [vmem:[%s1 + $0x224] sm:$0xf]
      %v603 = vld [vmem:[%s1 + $0x228] sm:$0xf]
      %v604 = vld [vmem:[%s1 + $0x22c] sm:$0xf]
      %v605 = vld [vmem:[%s1 + $0x230] sm:$0xf]
      %v606 = vld [vmem:[%s1 + $0x234] sm:$0xf]
      %v607 = vld [vmem:[%s1 + $0x238] sm:$0xf]
      %v608 = vld [vmem:[%s1 + $0x23c] sm:$0xf]
      %v769 = vunpack.c.l.b16 %v305
      %v770 = vunpack.c.h.b16 %v305
      %v771 = vunpack.c.l.b16 %v306
      %v772 = vunpack.c.h.b16 %v306
      %v773 = vunpack.c.l.b16 %v307
      %v774 = vunpack.c.h.b16 %v307
      %v775 = vunpack.c.l.b16 %v308
      %v776 = vunpack.c.h.b16 %v308
      %v777 = vunpack.c.l.b16 %v309
      %v778 = vunpack.c.l.b16 %v310
      %v779 = vunpack.c.h.b16 %v310
      %v780 = vunpack.c.l.b16 %v311
      %v781 = vunpack.c.h.b16 %v311
      %v782 = vunpack.c.l.b16 %v312
      %v783 = vunpack.c.h.b16 %v312
      %v784 = vunpack.c.l.b16 %v313
      %v785 = vunpack.c.h.b16 %v313
      %v786 = vunpack.c.l.b16 %v314
      %v787 = vunpack.c.l.b16 %v315
      %v788 = vunpack.c.h.b16 %v315
      %v789 = vunpack.c.l.b16 %v316
      %v790 = vunpack.c.h.b16 %v316
      %v791 = vunpack.c.l.b16 %v317
      %v792 = vunpack.c.h.b16 %v317
      %v793 = vunpack.c.l.b16 %v318
      %v794 = vunpack.c.h.b16 %v318
      %v795 = vunpack.c.l.b16 %v319
      %v796 = vunpack.c.l.b16 %v320
      %v797 = vunpack.c.h.b16 %v320
      %v798 = vunpack.c.l.b16 %v321
      %v799 = vunpack.c.h.b16 %v321
      %v800 = vunpack.c.l.b16 %v322
      %v801 = vunpack.c.h.b16 %v322
      %v802 = vunpack.c.l.b16 %v323
      %v803 = vunpack.c.h.b16 %v323
      %v804 = vunpack.c.l.b16 %v324
      %v805 = vunpack.c.l.b16 %v325
      %v806 = vunpack.c.h.b16 %v325
      %v807 = vunpack.c.l.b16 %v326
      %v808 = vunpack.c.h.b16 %v326
      %v809 = vunpack.c.l.b16 %v327
      %v810 = vunpack.c.h.b16 %v327
      %v811 = vunpack.c.l.b16 %v328
      %v812 = vunpack.c.h.b16 %v328
      %v813 = vunpack.c.l.b16 %v329
      %v814 = vunpack.c.l.b16 %v330
      %v815 = vunpack.c.h.b16 %v330
      %v816 = vunpack.c.l.b16 %v331
      %v817 = vunpack.c.h.b16 %v331
      %v818 = vunpack.c.l.b16 %v332
      %v819 = vunpack.c.h.b16 %v332
      %v820 = vunpack.c.l.b16 %v333
      %v821 = vunpack.c.h.b16 %v333
      %v822 = vunpack.c.l.b16 %v334
      %v823 = vunpack.c.l.b16 %v335
      %v824 = vunpack.c.h.b16 %v335
      %v825 = vunpack.c.l.b16 %v336
      %v826 = vunpack.c.h.b16 %v336
      %v827 = vunpack.c.l.b16 %v337
      %v828 = vunpack.c.h.b16 %v337
      %v829 = vunpack.c.l.b16 %v338
      %v830 = vunpack.c.h.b16 %v338
      %v831 = vunpack.c.l.b16 %v339
      %v832 = vunpack.c.l.b16 %v340
      %v833 = vunpack.c.h.b16 %v340
      %v834 = vunpack.c.l.b16 %v341
      %v835 = vunpack.c.h.b16 %v341
      %v836 = vunpack.c.l.b16 %v342
      %v837 = vunpack.c.h.b16 %v342
      %v838 = vunpack.c.l.b16 %v343
      %v839 = vunpack.c.h.b16 %v343
      %v840 = vunpack.c.l.b16 %v344
      %v841 = vunpack.c.l.b16 %v345
      %v842 = vunpack.c.h.b16 %v345
      %v843 = vunpack.c.l.b16 %v346
      %v844 = vunpack.c.h.b16 %v346
      %v845 = vunpack.c.l.b16 %v347
      %v846 = vunpack.c.h.b16 %v347
      %v847 = vunpack.c.l.b16 %v348
      %v848 = vunpack.c.h.b16 %v348
      %v849 = vunpack.c.l.b16 %v349
      %v850 = vunpack.c.l.b16 %v350
      %v851 = vunpack.c.h.b16 %v350
      %v852 = vunpack.c.l.b16 %v351
      %v853 = vunpack.c.h.b16 %v351
      %v854 = vunpack.c.l.b16 %v352
      %v855 = vunpack.c.h.b16 %v352
      %v856 = vunpack.c.l.b16 %v353
      %v857 = vunpack.c.h.b16 %v353
      %v858 = vunpack.c.l.b16 %v354
      %v859 = vunpack.c.l.b16 %v355
      %v860 = vunpack.c.h.b16 %v355
      %v861 = vunpack.c.l.b16 %v356
      %v862 = vunpack.c.h.b16 %v356
      %v863 = vunpack.c.l.b16 %v357
      %v864 = vunpack.c.h.b16 %v357
      %v865 = vunpack.c.l.b16 %v358
      %v866 = vunpack.c.h.b16 %v358
      %v867 = vunpack.c.l.b16 %v359
      %v868 = vunpack.c.l.b16 %v360
      %v869 = vunpack.c.h.b16 %v360
      %v870 = vunpack.c.l.b16 %v361
      %v871 = vunpack.c.h.b16 %v361
      %v872 = vunpack.c.l.b16 %v362
      %v873 = vunpack.c.h.b16 %v362
      %v874 = vunpack.c.l.b16 %v363
      %v875 = vunpack.c.h.b16 %v363
      %v876 = vunpack.c.l.b16 %v364
      %v877 = vunpack.c.l.b16 %v365
      %v878 = vunpack.c.h.b16 %v365
      %v879 = vunpack.c.l.b16 %v366
      %v880 = vunpack.c.h.b16 %v366
      %v881 = vunpack.c.l.b16 %v367
      %v882 = vunpack.c.h.b16 %v367
      %v883 = vunpack.c.l.b16 %v368
      %v884 = vunpack.c.h.b16 %v368
      %v885 = vunpack.c.l.b16 %v369
      %v886 = vunpack.c.l.b16 %v370
      %v887 = vunpack.c.h.b16 %v370
      %v888 = vunpack.c.l.b16 %v371
      %v889 = vunpack.c.h.b16 %v371
      %v890 = vunpack.c.l.b16 %v372
      %v891 = vunpack.c.h.b16 %v372
      %v892 = vunpack.c.l.b16 %v373
      %v893 = vunpack.c.h.b16 %v373
      %v894 = vunpack.c.l.b16 %v374
      %v895 = vunpack.c.l.b16 %v375
      %v896 = vunpack.c.h.b16 %v375
      %v897 = vunpack.c.l.b16 %v376
      %v898 = vunpack.c.h.b16 %v376
      %v899 = vunpack.c.l.b16 %v377
      %v900 = vunpack.c.h.b16 %v377
      %v901 = vunpack.c.l.b16 %v378
      %v902 = vunpack.c.h.b16 %v378
      %v903 = vunpack.c.l.b16 %v379
      %v904 = vunpack.c.l.b16 %v380
      %v905 = vunpack.c.h.b16 %v380
      %v906 = vunpack.c.l.b16 %v381
      %v907 = vunpack.c.h.b16 %v381
      %v908 = vunpack.c.l.b16 %v382
      %v909 = vunpack.c.h.b16 %v382
      %v910 = vunpack.c.l.b16 %v383
      %v911 = vunpack.c.h.b16 %v383
      %v912 = vunpack.c.l.b16 %v384
      %v913 = vunpack.c.l.b16 %v385
      %v914 = vunpack.c.h.b16 %v385
      %v915 = vunpack.c.l.b16 %v386
      %v916 = vunpack.c.h.b16 %v386
      %v917 = vunpack.c.l.b16 %v387
      %v918 = vunpack.c.h.b16 %v387
      %v919 = vunpack.c.l.b16 %v388
      %v920 = vunpack.c.h.b16 %v388
      %v921 = vunpack.c.l.b16 %v389
      %v922 = vunpack.c.l.b16 %v390
      %v923 = vunpack.c.h.b16 %v390
      %v924 = vunpack.c.l.b16 %v391
      %v925 = vunpack.c.h.b16 %v391
      %v926 = vunpack.c.l.b16 %v392
      %v927 = vunpack.c.h.b16 %v392
      %v928 = vunpack.c.l.b16 %v393
      %v929 = vunpack.c.h.b16 %v393
      %v930 = vunpack.c.l.b16 %v394
      %v931 = vunpack.c.l.b16 %v395
      %v932 = vunpack.c.h.b16 %v395
      %v933 = vunpack.c.l.b16 %v396
      %v934 = vunpack.c.h.b16 %v396
      %v935 = vunpack.c.l.b16 %v397
      %v936 = vunpack.c.h.b16 %v397
      %v937 = vunpack.c.l.b16 %v398
      %v938 = vunpack.c.h.b16 %v398
      %v939 = vunpack.c.l.b16 %v399
      %v940 = vunpack.c.l.b16 %v400
      %v941 = vunpack.c.h.b16 %v400
      %v942 = vunpack.c.l.b16 %v401
      %v943 = vunpack.c.h.b16 %v401
      %v944 = vunpack.c.l.b16 %v402
      %v945 = vunpack.c.h.b16 %v402
      %v946 = vunpack.c.l.b16 %v403
      %v947 = vunpack.c.h.b16 %v403
      %v948 = vunpack.c.l.b16 %v404
      %v949 = vunpack.c.l.b16 %v405
      %v950 = vunpack.c.h.b16 %v405
      %v951 = vunpack.c.l.b16 %v406
      %v952 = vunpack.c.h.b16 %v406
      %v953 = vunpack.c.l.b16 %v407
      %v954 = vunpack.c.h.b16 %v407
      %v955 = vunpack.c.l.b16 %v408
      %v956 = vunpack.c.h.b16 %v408
      %v957 = vunpack.c.l.b16 %v409
      %v958 = vunpack.c.l.b16 %v410
      %v959 = vunpack.c.h.b16 %v410
      %v960 = vunpack.c.l.b16 %v411
      %v961 = vunpack.c.h.b16 %v411
      %v962 = vunpack.c.l.b16 %v412
      %v963 = vunpack.c.h.b16 %v412
      %v964 = vunpack.c.l.b16 %v413
      %v965 = vunpack.c.h.b16 %v413
      %v966 = vunpack.c.l.b16 %v414
      %v967 = vunpack.c.l.b16 %v415
      %v968 = vunpack.c.h.b16 %v415
      %v969 = vunpack.c.l.b16 %v416
      %v970 = vunpack.c.h.b16 %v416
      %v971 = vunpack.c.l.b16 %v417
      %v972 = vunpack.c.h.b16 %v417
      %v973 = vunpack.c.l.b16 %v418
      %v974 = vunpack.c.h.b16 %v418
      %v975 = vunpack.c.l.b16 %v419
      %v976 = vunpack.c.l.b16 %v420
      %v977 = vunpack.c.h.b16 %v420
      %v978 = vunpack.c.l.b16 %v421
      %v979 = vunpack.c.h.b16 %v421
      %v980 = vunpack.c.l.b16 %v422
      %v981 = vunpack.c.h.b16 %v422
      %v982 = vunpack.c.l.b16 %v423
      %v983 = vunpack.c.h.b16 %v423
      %v984 = vunpack.c.l.b16 %v424
      %v985 = vunpack.c.l.b16 %v425
      %v986 = vunpack.c.h.b16 %v425
      %v987 = vunpack.c.l.b16 %v426
      %v988 = vunpack.c.h.b16 %v426
      %v989 = vunpack.c.l.b16 %v427
      %v990 = vunpack.c.h.b16 %v427
      %v991 = vunpack.c.l.b16 %v428
      %v992 = vunpack.c.h.b16 %v428
      %v993 = vunpack.c.l.b16 %v429
      %v994 = vunpack.c.l.b16 %v430
      %v995 = vunpack.c.h.b16 %v430
      %v996 = vunpack.c.l.b16 %v431
      %v997 = vunpack.c.h.b16 %v431
      %v998 = vunpack.c.l.b16 %v432
      %v999 = vunpack.c.h.b16 %v432
      %v1000 = vunpack.c.l.b16 %v433
      %v1001 = vunpack.c.h.b16 %v433
      %v1002 = vunpack.c.l.b16 %v434
      %v1003 = vunpack.c.l.b16 %v435
      %v1004 = vunpack.c.h.b16 %v435
      %v1005 = vunpack.c.l.b16 %v436
      %v1006 = vunpack.c.h.b16 %v436
      %v1007 = vunpack.c.l.b16 %v437
      %v1008 = vunpack.c.h.b16 %v437
      %v1009 = vunpack.c.l.b16 %v438
      %v1010 = vunpack.c.h.b16 %v438
      %v1011 = vunpack.c.l.b16 %v439
      %v1012 = vunpack.c.l.b16 %v440
      %v1013 = vunpack.c.h.b16 %v440
      %v1014 = vunpack.c.l.b16 %v441
      %v1015 = vunpack.c.h.b16 %v441
      %v1016 = vunpack.c.l.b16 %v442
      %v1017 = vunpack.c.h.b16 %v442
      %v1018 = vunpack.c.l.b16 %v443
      %v1019 = vunpack.c.h.b16 %v443
      %v1020 = vunpack.c.l.b16 %v444
      %v1021 = vunpack.c.l.b16 %v445
      %v1022 = vunpack.c.h.b16 %v445
      %v1023 = vunpack.c.l.b16 %v446
      %v1024 = vunpack.c.h.b16 %v446
      %v1025 = vunpack.c.l.b16 %v447
      %v1026 = vunpack.c.h.b16 %v447
      %v1027 = vunpack.c.l.b16 %v448
      %v1028 = vunpack.c.h.b16 %v448
      %v1029 = vunpack.c.l.b16 %v449
      %v1030 = vunpack.c.l.b16 %v450
      %v1031 = vunpack.c.h.b16 %v450
      %v1032 = vunpack.c.l.b16 %v451
      %v1033 = vunpack.c.h.b16 %v451
      %v1034 = vunpack.c.l.b16 %v452
      %v1035 = vunpack.c.h.b16 %v452
      %v1036 = vunpack.c.l.b16 %v453
      %v1037 = vunpack.c.h.b16 %v453
      %v1038 = vunpack.c.l.b16 %v454
      %v1039 = vunpack.c.l.b16 %v455
      %v1040 = vunpack.c.h.b16 %v455
      %v1041 = vunpack.c.l.b16 %v456
      %v1042 = vunpack.c.h.b16 %v456
      %v1043 = vunpack.c.l.b16 %v457
      %v1044 = vunpack.c.h.b16 %v457
      %v1045 = vunpack.c.l.b16 %v458
      %v1046 = vunpack.c.h.b16 %v458
      %v1047 = vunpack.c.l.b16 %v459
      %v1048 = vunpack.c.l.b16 %v460
      %v1049 = vunpack.c.h.b16 %v460
      %v1050 = vunpack.c.l.b16 %v461
      %v1051 = vunpack.c.h.b16 %v461
      %v1052 = vunpack.c.l.b16 %v462
      %v1053 = vunpack.c.h.b16 %v462
      %v1054 = vunpack.c.l.b16 %v463
      %v1055 = vunpack.c.h.b16 %v463
      %v1056 = vunpack.c.l.b16 %v464
      %v1057 = vpack.c.b16 %v778, %v769
      %v1058 = vpack.c.b16 %v779, %v770
      %v1059 = vpack.c.b16 %v780, %v771
      %v1060 = vpack.c.b16 %v781, %v772
      %v1061 = vpack.c.b16 %v782, %v773
      %v1062 = vpack.c.b16 %v783, %v774
      %v1063 = vpack.c.b16 %v784, %v775
      %v1064 = vpack.c.b16 %v785, %v776
      %v1065 = vpack.c.b16 %v786, %v777
      %v1066 = vpack.c.b16 %v796, %v787
      %v1067 = vpack.c.b16 %v797, %v788
      %v1068 = vpack.c.b16 %v798, %v789
      %v1069 = vpack.c.b16 %v799, %v790
      %v1070 = vpack.c.b16 %v800, %v791
      %v1071 = vpack.c.b16 %v801, %v792
      %v1072 = vpack.c.b16 %v802, %v793
      %v1073 = vpack.c.b16 %v803, %v794
      %v1074 = vpack.c.b16 %v804, %v795
      %v1075 = vpack.c.b16 %v814, %v805
      %v1076 = vpack.c.b16 %v815, %v806
      %v1077 = vpack.c.b16 %v816, %v807
      %v1078 = vpack.c.b16 %v817, %v808
      %v1079 = vpack.c.b16 %v818, %v809
      %v1080 = vpack.c.b16 %v819, %v810
      %v1081 = vpack.c.b16 %v820, %v811
      %v1082 = vpack.c.b16 %v821, %v812
      %v1083 = vpack.c.b16 %v822, %v813
      %v1084 = vpack.c.b16 %v832, %v823
      %v1085 = vpack.c.b16 %v833, %v824
      %v1086 = vpack.c.b16 %v834, %v825
      %v1087 = vpack.c.b16 %v835, %v826
      %v1088 = vpack.c.b16 %v836, %v827
      %v1089 = vpack.c.b16 %v837, %v828
      %v1090 = vpack.c.b16 %v838, %v829
      %v1091 = vpack.c.b16 %v839, %v830
      %v1092 = vpack.c.b16 %v840, %v831
      %v1093 = vpack.c.b16 %v850, %v841
      %v1094 = vpack.c.b16 %v851, %v842
      %v1095 = vpack.c.b16 %v852, %v843
      %v1096 = vpack.c.b16 %v853, %v844
      %v1097 = vpack.c.b16 %v854, %v845
      %v1098 = vpack.c.b16 %v855, %v846
      %v1099 = vpack.c.b16 %v856, %v847
      %v1100 = vpack.c.b16 %v857, %v848
      %v1101 = vpack.c.b16 %v858, %v849
      %v1102 = vpack.c.b16 %v868, %v859
      %v1103 = vpack.c.b16 %v869, %v860
      %v1104 = vpack.c.b16 %v870, %v861
      %v1105 = vpack.c.b16 %v871, %v862
      %v1106 = vpack.c.b16 %v872, %v863
      %v1107 = vpack.c.b16 %v873, %v864
      %v1108 = vpack.c.b16 %v874, %v865
      %v1109 = vpack.c.b16 %v875, %v866
      %v1110 = vpack.c.b16 %v876, %v867
      %v1111 = vpack.c.b16 %v886, %v877
      %v1112 = vpack.c.b16 %v887, %v878
      %v1113 = vpack.c.b16 %v888, %v879
      %v1114 = vpack.c.b16 %v889, %v880
      %v1115 = vpack.c.b16 %v890, %v881
      %v1116 = vpack.c.b16 %v891, %v882
      %v1117 = vpack.c.b16 %v892, %v883
      %v1118 = vpack.c.b16 %v893, %v884
      %v1119 = vpack.c.b16 %v894, %v885
      %v1120 = vpack.c.b16 %v904, %v895
      %v1121 = vpack.c.b16 %v905, %v896
      %v1122 = vpack.c.b16 %v906, %v897
      %v1123 = vpack.c.b16 %v907, %v898
      %v1124 = vpack.c.b16 %v908, %v899
      %v1125 = vpack.c.b16 %v909, %v900
      %v1126 = vpack.c.b16 %v910, %v901
      %v1127 = vpack.c.b16 %v911, %v902
      %v1128 = vpack.c.b16 %v912, %v903
      %v1129 = vpack.c.b16 %v922, %v913
      %v1130 = vpack.c.b16 %v923, %v914
      %v1131 = vpack.c.b16 %v924, %v915
      %v1132 = vpack.c.b16 %v925, %v916
      %v1133 = vpack.c.b16 %v926, %v917
      %v1134 = vpack.c.b16 %v927, %v918
      %v1135 = vpack.c.b16 %v928, %v919
      %v1136 = vpack.c.b16 %v929, %v920
      %v1137 = vpack.c.b16 %v930, %v921
      %v1138 = vpack.c.b16 %v940, %v931
      %v1139 = vpack.c.b16 %v941, %v932
      %v1140 = vpack.c.b16 %v942, %v933
      %v1141 = vpack.c.b16 %v943, %v934
      %v1142 = vpack.c.b16 %v944, %v935
      %v1143 = vpack.c.b16 %v945, %v936
      %v1144 = vpack.c.b16 %v946, %v937
      %v1145 = vpack.c.b16 %v947, %v938
      %v1146 = vpack.c.b16 %v948, %v939
      %v1147 = vpack.c.b16 %v958, %v949
      %v1148 = vpack.c.b16 %v959, %v950
      %v1149 = vpack.c.b16 %v960, %v951
      %v1150 = vpack.c.b16 %v961, %v952
      %v1151 = vpack.c.b16 %v962, %v953
      %v1152 = vpack.c.b16 %v963, %v954
      %v1153 = vpack.c.b16 %v964, %v955
      %v1154 = vpack.c.b16 %v965, %v956
      %v1155 = vpack.c.b16 %v966, %v957
      %v1156 = vpack.c.b16 %v976, %v967
      %v1157 = vpack.c.b16 %v977, %v968
      %v1158 = vpack.c.b16 %v978, %v969
      %v1159 = vpack.c.b16 %v979, %v970
      %v1160 = vpack.c.b16 %v980, %v971
      %v1161 = vpack.c.b16 %v981, %v972
      %v1162 = vpack.c.b16 %v982, %v973
      %v1163 = vpack.c.b16 %v983, %v974
      %v1164 = vpack.c.b16 %v984, %v975
      %v1165 = vpack.c.b16 %v994, %v985
      %v1166 = vpack.c.b16 %v995, %v986
      %v1167 = vpack.c.b16 %v996, %v987
      %v1168 = vpack.c.b16 %v997, %v988
      %v1169 = vpack.c.b16 %v998, %v989
      %v1170 = vpack.c.b16 %v999, %v990
      %v1171 = vpack.c.b16 %v1000, %v991
      %v1172 = vpack.c.b16 %v1001, %v992
      %v1173 = vpack.c.b16 %v1002, %v993
      %v1174 = vpack.c.b16 %v1012, %v1003
      %v1175 = vpack.c.b16 %v1013, %v1004
      %v1176 = vpack.c.b16 %v1014, %v1005
      %v1177 = vpack.c.b16 %v1015, %v1006
      %v1178 = vpack.c.b16 %v1016, %v1007
      %v1179 = vpack.c.b16 %v1017, %v1008
      %v1180 = vpack.c.b16 %v1018, %v1009
      %v1181 = vpack.c.b16 %v1019, %v1010
      %v1182 = vpack.c.b16 %v1020, %v1011
      %v1183 = vpack.c.b16 %v1030, %v1021
      %v1184 = vpack.c.b16 %v1031, %v1022
      %v1185 = vpack.c.b16 %v1032, %v1023
      %v1186 = vpack.c.b16 %v1033, %v1024
      %v1187 = vpack.c.b16 %v1034, %v1025
      %v1188 = vpack.c.b16 %v1035, %v1026
      %v1189 = vpack.c.b16 %v1036, %v1027
      %v1190 = vpack.c.b16 %v1037, %v1028
      %v1191 = vpack.c.b16 %v1038, %v1029
      %v1192 = vpack.c.b16 %v1048, %v1039
      %v1193 = vpack.c.b16 %v1049, %v1040
      %v1194 = vpack.c.b16 %v1050, %v1041
      %v1195 = vpack.c.b16 %v1051, %v1042
      %v1196 = vpack.c.b16 %v1052, %v1043
      %v1197 = vpack.c.b16 %v1053, %v1044
      %v1198 = vpack.c.b16 %v1054, %v1045
      %v1199 = vpack.c.b16 %v1055, %v1046
      %v1200 = vpack.c.b16 %v1056, %v1047
      %v1489 = vunpack.c.l.b16 %v465
      %v1490 = vunpack.c.l.b16 %v466
      %v1491 = vunpack.c.l.b16 %v467
      %v1492 = vunpack.c.l.b16 %v468
      %v1493 = vunpack.c.l.b16 %v469
      %v1494 = vunpack.c.l.b16 %v470
      %v1495 = vunpack.c.l.b16 %v471
      %v1496 = vunpack.c.l.b16 %v472
      %v1497 = vunpack.c.l.b16 %v473
      %v1498 = vunpack.c.l.b16 %v474
      %v1499 = vunpack.c.l.b16 %v475
      %v1500 = vunpack.c.l.b16 %v476
      %v1501 = vunpack.c.l.b16 %v477
      %v1502 = vunpack.c.l.b16 %v478
      %v1503 = vunpack.c.l.b16 %v479
      %v1504 = vunpack.c.l.b16 %v480
      %v1505 = vunpack.c.l.b16 %v481
      %v1506 = vunpack.c.l.b16 %v482
      %v1507 = vunpack.c.l.b16 %v483
      %v1508 = vunpack.c.l.b16 %v484
      %v1509 = vunpack.c.l.b16 %v485
      %v1510 = vunpack.c.l.b16 %v486
      %v1511 = vunpack.c.l.b16 %v487
      %v1512 = vunpack.c.l.b16 %v488
      %v1513 = vunpack.c.l.b16 %v489
      %v1514 = vunpack.c.l.b16 %v490
      %v1515 = vunpack.c.l.b16 %v491
      %v1516 = vunpack.c.l.b16 %v492
      %v1517 = vunpack.c.l.b16 %v493
      %v1518 = vunpack.c.l.b16 %v494
      %v1519 = vunpack.c.l.b16 %v495
      %v1520 = vunpack.c.l.b16 %v496
      %v1521 = vunpack.c.l.b16 %v497
      %v1522 = vunpack.c.l.b16 %v498
      %v1523 = vunpack.c.l.b16 %v499
      %v1524 = vunpack.c.l.b16 %v500
      %v1525 = vunpack.c.l.b16 %v501
      %v1526 = vunpack.c.l.b16 %v502
      %v1527 = vunpack.c.l.b16 %v503
      %v1528 = vunpack.c.l.b16 %v504
      %v1529 = vunpack.c.l.b16 %v505
      %v1530 = vunpack.c.l.b16 %v506
      %v1531 = vunpack.c.l.b16 %v507
      %v1532 = vunpack.c.l.b16 %v508
      %v1533 = vunpack.c.l.b16 %v509
      %v1534 = vunpack.c.l.b16 %v510
      %v1535 = vunpack.c.l.b16 %v511
      %v1536 = vunpack.c.l.b16 %v512
      %v1537 = vunpack.c.l.b16 %v513
      %v1538 = vunpack.c.l.b16 %v514
      %v1539 = vunpack.c.l.b16 %v515
      %v1540 = vunpack.c.l.b16 %v516
      %v1541 = vunpack.c.l.b16 %v517
      %v1542 = vunpack.c.l.b16 %v518
      %v1543 = vunpack.c.l.b16 %v519
      %v1544 = vunpack.c.l.b16 %v520
      %v1545 = vunpack.c.l.b16 %v521
      %v1546 = vunpack.c.l.b16 %v522
      %v1547 = vunpack.c.l.b16 %v523
      %v1548 = vunpack.c.l.b16 %v524
      %v1549 = vunpack.c.l.b16 %v525
      %v1550 = vunpack.c.l.b16 %v526
      %v1551 = vunpack.c.l.b16 %v527
      %v1552 = vunpack.c.l.b16 %v528
      %v1553 = vunpack.c.l.b16 %v529
      %v1554 = vunpack.c.l.b16 %v530
      %v1555 = vunpack.c.l.b16 %v531
      %v1556 = vunpack.c.l.b16 %v532
      %v1557 = vunpack.c.l.b16 %v533
      %v1558 = vunpack.c.l.b16 %v534
      %v1559 = vunpack.c.l.b16 %v535
      %v1560 = vunpack.c.l.b16 %v536
      %v1561 = vunpack.c.l.b16 %v537
      %v1562 = vunpack.c.l.b16 %v538
      %v1563 = vunpack.c.l.b16 %v539
      %v1564 = vunpack.c.l.b16 %v540
      %v1565 = vunpack.c.l.b16 %v541
      %v1566 = vunpack.c.l.b16 %v542
      %v1567 = vunpack.c.l.b16 %v543
      %v1568 = vunpack.c.l.b16 %v544
      %v1569 = vunpack.c.l.b16 %v545
      %v1570 = vunpack.c.l.b16 %v546
      %v1571 = vunpack.c.l.b16 %v547
      %v1572 = vunpack.c.l.b16 %v548
      %v1573 = vunpack.c.l.b16 %v549
      %v1574 = vunpack.c.l.b16 %v550
      %v1575 = vunpack.c.l.b16 %v551
      %v1576 = vunpack.c.l.b16 %v552
      %v1577 = vunpack.c.l.b16 %v553
      %v1578 = vunpack.c.l.b16 %v554
      %v1579 = vunpack.c.l.b16 %v555
      %v1580 = vunpack.c.l.b16 %v556
      %v1581 = vunpack.c.l.b16 %v557
      %v1582 = vunpack.c.l.b16 %v558
      %v1583 = vunpack.c.l.b16 %v559
      %v1584 = vunpack.c.l.b16 %v560
      %v1585 = vunpack.c.l.b16 %v561
      %v1586 = vunpack.c.l.b16 %v562
      %v1587 = vunpack.c.l.b16 %v563
      %v1588 = vunpack.c.l.b16 %v564
      %v1589 = vunpack.c.l.b16 %v565
      %v1590 = vunpack.c.l.b16 %v566
      %v1591 = vunpack.c.l.b16 %v567
      %v1592 = vunpack.c.l.b16 %v568
      %v1593 = vunpack.c.l.b16 %v569
      %v1594 = vunpack.c.l.b16 %v570
      %v1595 = vunpack.c.l.b16 %v571
      %v1596 = vunpack.c.l.b16 %v572
      %v1597 = vunpack.c.l.b16 %v573
      %v1598 = vunpack.c.l.b16 %v574
      %v1599 = vunpack.c.l.b16 %v575
      %v1600 = vunpack.c.l.b16 %v576
      %v1601 = vunpack.c.l.b16 %v577
      %v1602 = vunpack.c.l.b16 %v578
      %v1603 = vunpack.c.l.b16 %v579
      %v1604 = vunpack.c.l.b16 %v580
      %v1605 = vunpack.c.l.b16 %v581
      %v1606 = vunpack.c.l.b16 %v582
      %v1607 = vunpack.c.l.b16 %v583
      %v1608 = vunpack.c.l.b16 %v584
      %v1609 = vunpack.c.l.b16 %v585
      %v1610 = vunpack.c.l.b16 %v586
      %v1611 = vunpack.c.l.b16 %v587
      %v1612 = vunpack.c.l.b16 %v588
      %v1613 = vunpack.c.l.b16 %v589
      %v1614 = vunpack.c.l.b16 %v590
      %v1615 = vunpack.c.l.b16 %v591
      %v1616 = vunpack.c.l.b16 %v592
      %v1617 = vunpack.c.l.b16 %v593
      %v1618 = vunpack.c.l.b16 %v594
      %v1619 = vunpack.c.l.b16 %v595
      %v1620 = vunpack.c.l.b16 %v596
      %v1621 = vunpack.c.l.b16 %v597
      %v1622 = vunpack.c.l.b16 %v598
      %v1623 = vunpack.c.l.b16 %v599
      %v1624 = vunpack.c.l.b16 %v600
      %v1625 = vunpack.c.l.b16 %v601
      %v1626 = vunpack.c.l.b16 %v602
      %v1627 = vunpack.c.l.b16 %v603
      %v1628 = vunpack.c.l.b16 %v604
      %v1629 = vunpack.c.l.b16 %v605
      %v1630 = vunpack.c.l.b16 %v606
      %v1631 = vunpack.c.l.b16 %v607
      %v1632 = vunpack.c.l.b16 %v608
      %v1633 = vpack.c.b16 %v1490, %v1489
      %v1634 = vpack.c.b16 %v1492, %v1491
      %v1635 = vpack.c.b16 %v1494, %v1493
      %v1636 = vpack.c.b16 %v1496, %v1495
      %v1637 = vpack.c.b16 %v1498, %v1497
      %v1638 = vpack.c.b16 %v1500, %v1499
      %v1639 = vpack.c.b16 %v1502, %v1501
      %v1640 = vpack.c.b16 %v1504, %v1503
      %v1641 = vpack.c.b16 %v1506, %v1505
      %v1642 = vpack.c.b16 %v1508, %v1507
      %v1643 = vpack.c.b16 %v1510, %v1509
      %v1644 = vpack.c.b16 %v1512, %v1511
      %v1645 = vpack.c.b16 %v1514, %v1513
      %v1646 = vpack.c.b16 %v1516, %v1515
      %v1647 = vpack.c.b16 %v1518, %v1517
      %v1648 = vpack.c.b16 %v1520, %v1519
      %v1649 = vpack.c.b16 %v1522, %v1521
      %v1650 = vpack.c.b16 %v1524, %v1523
      %v1651 = vpack.c.b16 %v1526, %v1525
      %v1652 = vpack.c.b16 %v1528, %v1527
      %v1653 = vpack.c.b16 %v1530, %v1529
      %v1654 = vpack.c.b16 %v1532, %v1531
      %v1655 = vpack.c.b16 %v1534, %v1533
      %v1656 = vpack.c.b16 %v1536, %v1535
      %v1657 = vpack.c.b16 %v1538, %v1537
      %v1658 = vpack.c.b16 %v1540, %v1539
      %v1659 = vpack.c.b16 %v1542, %v1541
      %v1660 = vpack.c.b16 %v1544, %v1543
      %v1661 = vpack.c.b16 %v1546, %v1545
      %v1662 = vpack.c.b16 %v1548, %v1547
      %v1663 = vpack.c.b16 %v1550, %v1549
      %v1664 = vpack.c.b16 %v1552, %v1551
      %v1665 = vpack.c.b16 %v1554, %v1553
      %v1666 = vpack.c.b16 %v1556, %v1555
      %v1667 = vpack.c.b16 %v1558, %v1557
      %v1668 = vpack.c.b16 %v1560, %v1559
      %v1669 = vpack.c.b16 %v1562, %v1561
      %v1670 = vpack.c.b16 %v1564, %v1563
      %v1671 = vpack.c.b16 %v1566, %v1565
      %v1672 = vpack.c.b16 %v1568, %v1567
      %v1673 = vpack.c.b16 %v1570, %v1569
      %v1674 = vpack.c.b16 %v1572, %v1571
      %v1675 = vpack.c.b16 %v1574, %v1573
      %v1676 = vpack.c.b16 %v1576, %v1575
      %v1677 = vpack.c.b16 %v1578, %v1577
      %v1678 = vpack.c.b16 %v1580, %v1579
      %v1679 = vpack.c.b16 %v1582, %v1581
      %v1680 = vpack.c.b16 %v1584, %v1583
      %v1681 = vpack.c.b16 %v1586, %v1585
      %v1682 = vpack.c.b16 %v1588, %v1587
      %v1683 = vpack.c.b16 %v1590, %v1589
      %v1684 = vpack.c.b16 %v1592, %v1591
      %v1685 = vpack.c.b16 %v1594, %v1593
      %v1686 = vpack.c.b16 %v1596, %v1595
      %v1687 = vpack.c.b16 %v1598, %v1597
      %v1688 = vpack.c.b16 %v1600, %v1599
      %v1689 = vpack.c.b16 %v1602, %v1601
      %v1690 = vpack.c.b16 %v1604, %v1603
      %v1691 = vpack.c.b16 %v1606, %v1605
      %v1692 = vpack.c.b16 %v1608, %v1607
      %v1693 = vpack.c.b16 %v1610, %v1609
      %v1694 = vpack.c.b16 %v1612, %v1611
      %v1695 = vpack.c.b16 %v1614, %v1613
      %v1696 = vpack.c.b16 %v1616, %v1615
      %v1697 = vpack.c.b16 %v1618, %v1617
      %v1698 = vpack.c.b16 %v1620, %v1619
      %v1699 = vpack.c.b16 %v1622, %v1621
      %v1700 = vpack.c.b16 %v1624, %v1623
      %v1701 = vpack.c.b16 %v1626, %v1625
      %v1702 = vpack.c.b16 %v1628, %v1627
      %v1703 = vpack.c.b16 %v1630, %v1629
      %v1704 = vpack.c.b16 %v1632, %v1631
      %1777 = vmatprep.subr.bf16.mxu0 0
      %1778 = vmatpush1.bf16.msra.mxu0 %v1640
      %1779 = vmatprep.subr.bf16.mxu0 0
      %1780 = vmatpush1.bf16.msra.mxu0 %v1639
      %1781 = vmatprep.subr.bf16.mxu0 0
      %1782 = vmatpush1.bf16.msra.mxu0 %v1638
      %1783 = vmatprep.subr.bf16.mxu0 0
      %1784 = vmatpush1.bf16.msra.mxu0 %v1637
      %1785 = vmatprep.subr.bf16.mxu0 0
      %1786 = vmatpush1.bf16.msra.mxu0 %v1636
      %1787 = vmatprep.subr.bf16.mxu0 0
      %1788 = vmatpush1.bf16.msra.mxu0 %v1635
      %1789 = vmatprep.subr.bf16.mxu0 0
      %1790 = vmatpush1.bf16.msra.mxu0 %v1634
      %1791 = vmatprep.subr.bf16.mxu0 0
      %1792 = vmatpush1.bf16.msra.mxu0 %v1633
      %1793 = vmatprep.subr.bf16.mxu0 0
      %1794 = vmatpush2.bf16.msra.mxu0 %v1648
      %1795 = vmatprep.subr.bf16.mxu0 0
      %1796 = vmatpush2.bf16.msra.mxu0 %v1647
      %1797 = vmatprep.subr.bf16.mxu0 0
      %1798 = vmatpush2.bf16.msra.mxu0 %v1646
      %1799 = vmatprep.subr.bf16.mxu0 0
      %1800 = vmatpush2.bf16.msra.mxu0 %v1645
      %1801 = vmatprep.subr.bf16.mxu0 0
      %1802 = vmatpush2.bf16.msra.mxu0 %v1644
      %1803 = vmatprep.subr.bf16.mxu0 0
      %1804 = vmatpush2.bf16.msra.mxu0 %v1643
      %1805 = vmatprep.subr.bf16.mxu0 0
      %1806 = vmatpush2.bf16.msra.mxu0 %v1642
      %1807 = vmatprep.subr.bf16.mxu0 0
      %1808 = vmatpush2.bf16.msra.mxu0 %v1641
      %1809 = vmatprep.mubr.bf16.mxu0 %v1058
      %1810 = vmatmul.mubr.bf16.gmra.mxu0 %v1057
      %v1811 = vpop.f32.mrf.mxu0
      %v1812 = vadd.f32 0.0, %v1811
      %v1813 = vpop.f32.mrf.mxu0
      %v1814 = vpop.f32.mrf.mxu0
      %v1815 = vadd.f32 0.0, %v1814
      %v1816 = vpop.f32.mrf.mxu0
      %1817 = vmatprep.mubr.bf16.mxu0 %v1067
      %1818 = vmatmul.mubr.bf16.gmra.mxu0 %v1066
      %v1819 = vpop.f32.mrf.mxu0
      %v1820 = vadd.f32 0.0, %v1819
      %v1821 = vpop.f32.mrf.mxu0
      %v1822 = vpop.f32.mrf.mxu0
      %v1823 = vadd.f32 0.0, %v1822
      %v1824 = vpop.f32.mrf.mxu0
      %1825 = vmatprep.mubr.bf16.mxu0 %v1076
      %1826 = vmatmul.mubr.bf16.gmra.mxu0 %v1075
      %v1827 = vpop.f32.mrf.mxu0
      %v1828 = vadd.f32 0.0, %v1827
      %v1829 = vpop.f32.mrf.mxu0
      %v1830 = vpop.f32.mrf.mxu0
      %v1831 = vadd.f32 0.0, %v1830
      %v1832 = vpop.f32.mrf.mxu0
      %1833 = vmatprep.mubr.bf16.mxu0 %v1085
      %1834 = vmatmul.mubr.bf16.gmra.mxu0 %v1084
      %v1835 = vpop.f32.mrf.mxu0
      %v1836 = vadd.f32 0.0, %v1835
      %v1837 = vpop.f32.mrf.mxu0
      %v1838 = vpop.f32.mrf.mxu0
      %v1839 = vadd.f32 0.0, %v1838
      %v1840 = vpop.f32.mrf.mxu0
      %1841 = vmatprep.mubr.bf16.mxu0 %v1094
      %1842 = vmatmul.mubr.bf16.gmra.mxu0 %v1093
      %v1843 = vpop.f32.mrf.mxu0
      %v1844 = vadd.f32 0.0, %v1843
      %v1845 = vpop.f32.mrf.mxu0
      %v1846 = vpop.f32.mrf.mxu0
      %v1847 = vadd.f32 0.0, %v1846
      %v1848 = vpop.f32.mrf.mxu0
      %1849 = vmatprep.mubr.bf16.mxu0 %v1103
      %1850 = vmatmul.mubr.bf16.gmra.mxu0 %v1102
      %v1851 = vpop.f32.mrf.mxu0
      %v1852 = vadd.f32 0.0, %v1851
      %v1853 = vpop.f32.mrf.mxu0
      %v1854 = vpop.f32.mrf.mxu0
      %v1855 = vadd.f32 0.0, %v1854
      %v1856 = vpop.f32.mrf.mxu0
      %1857 = vmatprep.mubr.bf16.mxu0 %v1112
      %1858 = vmatmul.mubr.bf16.gmra.mxu0 %v1111
      %v1859 = vpop.f32.mrf.mxu0
      %v1860 = vadd.f32 0.0, %v1859
      %v1861 = vpop.f32.mrf.mxu0
      %v1862 = vpop.f32.mrf.mxu0
      %v1863 = vadd.f32 0.0, %v1862
      %v1864 = vpop.f32.mrf.mxu0
      %1865 = vmatprep.mubr.bf16.mxu0 %v1121
      %1866 = vmatmul.mubr.bf16.gmra.mxu0 %v1120
      %v1867 = vpop.f32.mrf.mxu0
      %v1868 = vadd.f32 0.0, %v1867
      %v1869 = vpop.f32.mrf.mxu0
      %v1870 = vpop.f32.mrf.mxu0
      %v1871 = vadd.f32 0.0, %v1870
      %v1872 = vpop.f32.mrf.mxu0
      %1873 = vmatprep.mubr.bf16.mxu0 %v1130
      %1874 = vmatmul.mubr.bf16.gmra.mxu0 %v1129
      %v1875 = vpop.f32.mrf.mxu0
      %v1876 = vadd.f32 0.0, %v1875
      %v1877 = vpop.f32.mrf.mxu0
      %v1878 = vpop.f32.mrf.mxu0
      %v1879 = vadd.f32 0.0, %v1878
      %v1880 = vpop.f32.mrf.mxu0
      %1881 = vmatprep.mubr.bf16.mxu0 %v1139
      %1882 = vmatmul.mubr.bf16.gmra.mxu0 %v1138
      %v1883 = vpop.f32.mrf.mxu0
      %v1884 = vadd.f32 0.0, %v1883
      %v1885 = vpop.f32.mrf.mxu0
      %v1886 = vpop.f32.mrf.mxu0
      %v1887 = vadd.f32 0.0, %v1886
      %v1888 = vpop.f32.mrf.mxu0
      %1889 = vmatprep.mubr.bf16.mxu0 %v1148
      %1890 = vmatmul.mubr.bf16.gmra.mxu0 %v1147
      %v1891 = vpop.f32.mrf.mxu0
      %v1892 = vadd.f32 0.0, %v1891
      %v1893 = vpop.f32.mrf.mxu0
      %v1894 = vpop.f32.mrf.mxu0
      %v1895 = vadd.f32 0.0, %v1894
      %v1896 = vpop.f32.mrf.mxu0
      %1897 = vmatprep.mubr.bf16.mxu0 %v1157
      %1898 = vmatmul.mubr.bf16.gmra.mxu0 %v1156
      %v1899 = vpop.f32.mrf.mxu0
      %v1900 = vadd.f32 0.0, %v1899
      %v1901 = vpop.f32.mrf.mxu0
      %v1902 = vpop.f32.mrf.mxu0
      %v1903 = vadd.f32 0.0, %v1902
      %v1904 = vpop.f32.mrf.mxu0
      %1905 = vmatprep.mubr.bf16.mxu0 %v1166
      %1906 = vmatmul.mubr.bf16.gmra.mxu0 %v1165
      %v1907 = vpop.f32.mrf.mxu0
      %v1908 = vadd.f32 0.0, %v1907
      %v1909 = vpop.f32.mrf.mxu0
      %v1910 = vpop.f32.mrf.mxu0
      %v1911 = vadd.f32 0.0, %v1910
      %v1912 = vpop.f32.mrf.mxu0
      %1913 = vmatprep.mubr.bf16.mxu0 %v1175
      %1914 = vmatmul.mubr.bf16.gmra.mxu0 %v1174
      %v1915 = vpop.f32.mrf.mxu0
      %v1916 = vadd.f32 0.0, %v1915
      %v1917 = vpop.f32.mrf.mxu0
      %v1918 = vpop.f32.mrf.mxu0
      %v1919 = vadd.f32 0.0, %v1918
      %v1920 = vpop.f32.mrf.mxu0
      %1921 = vmatprep.mubr.bf16.mxu0 %v1184
      %1922 = vmatmul.mubr.bf16.gmra.mxu0 %v1183
      %v1923 = vpop.f32.mrf.mxu0
      %v1924 = vadd.f32 0.0, %v1923
      %v1925 = vpop.f32.mrf.mxu0
      %v1926 = vpop.f32.mrf.mxu0
      %v1927 = vadd.f32 0.0, %v1926
      %v1928 = vpop.f32.mrf.mxu0
      %1929 = vmatprep.mubr.bf16.mxu0 %v1193
      %1930 = vmatmul.mubr.bf16.gmra.mxu0 %v1192
      %v1931 = vpop.f32.mrf.mxu0
      %v1932 = vadd.f32 0.0, %v1931
      %v1933 = vpop.f32.mrf.mxu0
      %v1934 = vpop.f32.mrf.mxu0
      %v1935 = vadd.f32 0.0, %v1934
      %v1936 = vpop.f32.mrf.mxu0
      %1937 = vdwg.mxu0
      %1938 = vmatprep.subr.bf16.mxu0 0
      %1939 = vmatpush1.bf16.msra.mxu0 %v1656
      %1940 = vmatprep.subr.bf16.mxu0 0
      %1941 = vmatpush1.bf16.msra.mxu0 %v1655
      %1942 = vmatprep.subr.bf16.mxu0 0
      %1943 = vmatpush1.bf16.msra.mxu0 %v1654
      %1944 = vmatprep.subr.bf16.mxu0 0
      %1945 = vmatpush1.bf16.msra.mxu0 %v1653
      %1946 = vmatprep.subr.bf16.mxu0 0
      %1947 = vmatpush1.bf16.msra.mxu0 %v1652
      %1948 = vmatprep.subr.bf16.mxu0 0
      %1949 = vmatpush1.bf16.msra.mxu0 %v1651
      %1950 = vmatprep.subr.bf16.mxu0 0
      %1951 = vmatpush1.bf16.msra.mxu0 %v1650
      %1952 = vmatprep.subr.bf16.mxu0 0
      %1953 = vmatpush1.bf16.msra.mxu0 %v1649
      %1954 = vmatprep.subr.bf16.mxu0 0
      %1955 = vmatpush2.bf16.msra.mxu0 %v1664
      %1956 = vmatprep.subr.bf16.mxu0 0
      %1957 = vmatpush2.bf16.msra.mxu0 %v1663
      %1958 = vmatprep.subr.bf16.mxu0 0
      %1959 = vmatpush2.bf16.msra.mxu0 %v1662
      %1960 = vmatprep.subr.bf16.mxu0 0
      %1961 = vmatpush2.bf16.msra.mxu0 %v1661
      %1962 = vmatprep.subr.bf16.mxu0 0
      %1963 = vmatpush2.bf16.msra.mxu0 %v1660
      %1964 = vmatprep.subr.bf16.mxu0 0
      %1965 = vmatpush2.bf16.msra.mxu0 %v1659
      %1966 = vmatprep.subr.bf16.mxu0 0
      %1967 = vmatpush2.bf16.msra.mxu0 %v1658
      %1968 = vmatprep.subr.bf16.mxu0 0
      %1969 = vmatpush2.bf16.msra.mxu0 %v1657
      %1970 = vmatprep.mubr.bf16.mxu0 %v1060
      %1971 = vmatmul.mubr.bf16.gmra.mxu0 %v1059
      %v1972 = vpop.f32.mrf.mxu0
      %v1973 = vadd.f32 %v1812, %v1972
      %v1974 = vpop.f32.mrf.mxu0
      %v1975 = vpop.f32.mrf.mxu0
      %v1976 = vadd.f32 %v1815, %v1975
      %v1977 = vpop.f32.mrf.mxu0
      %1978 = vmatprep.mubr.bf16.mxu0 %v1069
      %1979 = vmatmul.mubr.bf16.gmra.mxu0 %v1068
      %v1980 = vpop.f32.mrf.mxu0
      %v1981 = vadd.f32 %v1820, %v1980
      %v1982 = vpop.f32.mrf.mxu0
      %v1983 = vpop.f32.mrf.mxu0
      %v1984 = vadd.f32 %v1823, %v1983
      %v1985 = vpop.f32.mrf.mxu0
      %1986 = vmatprep.mubr.bf16.mxu0 %v1078
      %1987 = vmatmul.mubr.bf16.gmra.mxu0 %v1077
      %v1988 = vpop.f32.mrf.mxu0
      %v1989 = vadd.f32 %v1828, %v1988
      %v1990 = vpop.f32.mrf.mxu0
      %v1991 = vpop.f32.mrf.mxu0
      %v1992 = vadd.f32 %v1831, %v1991
      %v1993 = vpop.f32.mrf.mxu0
      %1994 = vmatprep.mubr.bf16.mxu0 %v1087
      %1995 = vmatmul.mubr.bf16.gmra.mxu0 %v1086
      %v1996 = vpop.f32.mrf.mxu0
      %v1997 = vadd.f32 %v1836, %v1996
      %v1998 = vpop.f32.mrf.mxu0
      %v1999 = vpop.f32.mrf.mxu0
      %v2000 = vadd.f32 %v1839, %v1999
      %v2001 = vpop.f32.mrf.mxu0
      %2002 = vmatprep.mubr.bf16.mxu0 %v1096
      %2003 = vmatmul.mubr.bf16.gmra.mxu0 %v1095
      %v2004 = vpop.f32.mrf.mxu0
      %v2005 = vadd.f32 %v1844, %v2004
      %v2006 = vpop.f32.mrf.mxu0
      %v2007 = vpop.f32.mrf.mxu0
      %v2008 = vadd.f32 %v1847, %v2007
      %v2009 = vpop.f32.mrf.mxu0
      %2010 = vmatprep.mubr.bf16.mxu0 %v1105
      %2011 = vmatmul.mubr.bf16.gmra.mxu0 %v1104
      %v2012 = vpop.f32.mrf.mxu0
      %v2013 = vadd.f32 %v1852, %v2012
      %v2014 = vpop.f32.mrf.mxu0
      %v2015 = vpop.f32.mrf.mxu0
      %v2016 = vadd.f32 %v1855, %v2015
      %v2017 = vpop.f32.mrf.mxu0
      %2018 = vmatprep.mubr.bf16.mxu0 %v1114
      %2019 = vmatmul.mubr.bf16.gmra.mxu0 %v1113
      %v2020 = vpop.f32.mrf.mxu0
      %v2021 = vadd.f32 %v1860, %v2020
      %v2022 = vpop.f32.mrf.mxu0
      %v2023 = vpop.f32.mrf.mxu0
      %v2024 = vadd.f32 %v1863, %v2023
      %v2025 = vpop.f32.mrf.mxu0
      %2026 = vmatprep.mubr.bf16.mxu0 %v1123
      %2027 = vmatmul.mubr.bf16.gmra.mxu0 %v1122
      %v2028 = vpop.f32.mrf.mxu0
      %v2029 = vadd.f32 %v1868, %v2028
      %v2030 = vpop.f32.mrf.mxu0
      %v2031 = vpop.f32.mrf.mxu0
      %v2032 = vadd.f32 %v1871, %v2031
      %v2033 = vpop.f32.mrf.mxu0
      %2034 = vmatprep.mubr.bf16.mxu0 %v1132
      %2035 = vmatmul.mubr.bf16.gmra.mxu0 %v1131
      %v2036 = vpop.f32.mrf.mxu0
      %v2037 = vadd.f32 %v1876, %v2036
      %v2038 = vpop.f32.mrf.mxu0
      %v2039 = vpop.f32.mrf.mxu0
      %v2040 = vadd.f32 %v1879, %v2039
      %v2041 = vpop.f32.mrf.mxu0
      %2042 = vmatprep.mubr.bf16.mxu0 %v1141
      %2043 = vmatmul.mubr.bf16.gmra.mxu0 %v1140
      %v2044 = vpop.f32.mrf.mxu0
      %v2045 = vadd.f32 %v1884, %v2044
      %v2046 = vpop.f32.mrf.mxu0
      %v2047 = vpop.f32.mrf.mxu0
      %v2048 = vadd.f32 %v1887, %v2047
      %v2049 = vpop.f32.mrf.mxu0
      %2050 = vmatprep.mubr.bf16.mxu0 %v1150
      %2051 = vmatmul.mubr.bf16.gmra.mxu0 %v1149
      %v2052 = vpop.f32.mrf.mxu0
      %v2053 = vadd.f32 %v1892, %v2052
      %v2054 = vpop.f32.mrf.mxu0
      %v2055 = vpop.f32.mrf.mxu0
      %v2056 = vadd.f32 %v1895, %v2055
      %v2057 = vpop.f32.mrf.mxu0
      %2058 = vmatprep.mubr.bf16.mxu0 %v1159
      %2059 = vmatmul.mubr.bf16.gmra.mxu0 %v1158
      %v2060 = vpop.f32.mrf.mxu0
      %v2061 = vadd.f32 %v1900, %v2060
      %v2062 = vpop.f32.mrf.mxu0
      %v2063 = vpop.f32.mrf.mxu0
      %v2064 = vadd.f32 %v1903, %v2063
      %v2065 = vpop.f32.mrf.mxu0
      %2066 = vmatprep.mubr.bf16.mxu0 %v1168
      %2067 = vmatmul.mubr.bf16.gmra.mxu0 %v1167
      %v2068 = vpop.f32.mrf.mxu0
      %v2069 = vadd.f32 %v1908, %v2068
      %v2070 = vpop.f32.mrf.mxu0
      %v2071 = vpop.f32.mrf.mxu0
      %v2072 = vadd.f32 %v1911, %v2071
      %v2073 = vpop.f32.mrf.mxu0
      %2074 = vmatprep.mubr.bf16.mxu0 %v1177
      %2075 = vmatmul.mubr.bf16.gmra.mxu0 %v1176
      %v2076 = vpop.f32.mrf.mxu0
      %v2077 = vadd.f32 %v1916, %v2076
      %v2078 = vpop.f32.mrf.mxu0
      %v2079 = vpop.f32.mrf.mxu0
      %v2080 = vadd.f32 %v1919, %v2079
      %v2081 = vpop.f32.mrf.mxu0
      %2082 = vmatprep.mubr.bf16.mxu0 %v1186
      %2083 = vmatmul.mubr.bf16.gmra.mxu0 %v1185
      %v2084 = vpop.f32.mrf.mxu0
      %v2085 = vadd.f32 %v1924, %v2084
      %v2086 = vpop.f32.mrf.mxu0
      %v2087 = vpop.f32.mrf.mxu0
      %v2088 = vadd.f32 %v1927, %v2087
      %v2089 = vpop.f32.mrf.mxu0
      %2090 = vmatprep.mubr.bf16.mxu0 %v1195
      %2091 = vmatmul.mubr.bf16.gmra.mxu0 %v1194
      %v2092 = vpop.f32.mrf.mxu0
      %v2093 = vadd.f32 %v1932, %v2092
      %v2094 = vpop.f32.mrf.mxu0
      %v2095 = vpop.f32.mrf.mxu0
      %v2096 = vadd.f32 %v1935, %v2095
      %v2097 = vpop.f32.mrf.mxu0
      %2098 = vdwg.mxu0
      %2099 = vmatprep.subr.bf16.mxu0 0
      %2100 = vmatpush1.bf16.msra.mxu0 %v1672
      %2101 = vmatprep.subr.bf16.mxu0 0
      %2102 = vmatpush1.bf16.msra.mxu0 %v1671
      %2103 = vmatprep.subr.bf16.mxu0 0
      %2104 = vmatpush1.bf16.msra.mxu0 %v1670
      %2105 = vmatprep.subr.bf16.mxu0 0
      %2106 = vmatpush1.bf16.msra.mxu0 %v1669
      %2107 = vmatprep.subr.bf16.mxu0 0
      %2108 = vmatpush1.bf16.msra.mxu0 %v1668
      %2109 = vmatprep.subr.bf16.mxu0 0
      %2110 = vmatpush1.bf16.msra.mxu0 %v1667
      %2111 = vmatprep.subr.bf16.mxu0 0
      %2112 = vmatpush1.bf16.msra.mxu0 %v1666
      %2113 = vmatprep.subr.bf16.mxu0 0
      %2114 = vmatpush1.bf16.msra.mxu0 %v1665
      %2115 = vmatprep.subr.bf16.mxu0 0
      %2116 = vmatpush2.bf16.msra.mxu0 %v1680
      %2117 = vmatprep.subr.bf16.mxu0 0
      %2118 = vmatpush2.bf16.msra.mxu0 %v1679
      %2119 = vmatprep.subr.bf16.mxu0 0
      %2120 = vmatpush2.bf16.msra.mxu0 %v1678
      %2121 = vmatprep.subr.bf16.mxu0 0
      %2122 = vmatpush2.bf16.msra.mxu0 %v1677
      %2123 = vmatprep.subr.bf16.mxu0 0
      %2124 = vmatpush2.bf16.msra.mxu0 %v1676
      %2125 = vmatprep.subr.bf16.mxu0 0
      %2126 = vmatpush2.bf16.msra.mxu0 %v1675
      %2127 = vmatprep.subr.bf16.mxu0 0
      %2128 = vmatpush2.bf16.msra.mxu0 %v1674
      %2129 = vmatprep.subr.bf16.mxu0 0
      %2130 = vmatpush2.bf16.msra.mxu0 %v1673
      %2131 = vmatprep.mubr.bf16.mxu0 %v1062
      %2132 = vmatmul.mubr.bf16.gmra.mxu0 %v1061
      %v2133 = vpop.f32.mrf.mxu0
      %v2134 = vadd.f32 %v1973, %v2133
      %v2135 = vpop.f32.mrf.mxu0
      %v2136 = vpop.f32.mrf.mxu0
      %v2137 = vadd.f32 %v1976, %v2136
      %v2138 = vpop.f32.mrf.mxu0
      %2139 = vmatprep.mubr.bf16.mxu0 %v1071
      %2140 = vmatmul.mubr.bf16.gmra.mxu0 %v1070
      %v2141 = vpop.f32.mrf.mxu0
      %v2142 = vadd.f32 %v1981, %v2141
      %v2143 = vpop.f32.mrf.mxu0
      %v2144 = vpop.f32.mrf.mxu0
      %v2145 = vadd.f32 %v1984, %v2144
      %v2146 = vpop.f32.mrf.mxu0
      %2147 = vmatprep.mubr.bf16.mxu0 %v1080
      %2148 = vmatmul.mubr.bf16.gmra.mxu0 %v1079
      %v2149 = vpop.f32.mrf.mxu0
      %v2150 = vadd.f32 %v1989, %v2149
      %v2151 = vpop.f32.mrf.mxu0
      %v2152 = vpop.f32.mrf.mxu0
      %v2153 = vadd.f32 %v1992, %v2152
      %v2154 = vpop.f32.mrf.mxu0
      %2155 = vmatprep.mubr.bf16.mxu0 %v1089
      %2156 = vmatmul.mubr.bf16.gmra.mxu0 %v1088
      %v2157 = vpop.f32.mrf.mxu0
      %v2158 = vadd.f32 %v1997, %v2157
      %v2159 = vpop.f32.mrf.mxu0
      %v2160 = vpop.f32.mrf.mxu0
      %v2161 = vadd.f32 %v2000, %v2160
      %v2162 = vpop.f32.mrf.mxu0
      %2163 = vmatprep.mubr.bf16.mxu0 %v1098
      %2164 = vmatmul.mubr.bf16.gmra.mxu0 %v1097
      %v2165 = vpop.f32.mrf.mxu0
      %v2166 = vadd.f32 %v2005, %v2165
      %v2167 = vpop.f32.mrf.mxu0
      %v2168 = vpop.f32.mrf.mxu0
      %v2169 = vadd.f32 %v2008, %v2168
      %v2170 = vpop.f32.mrf.mxu0
      %2171 = vmatprep.mubr.bf16.mxu0 %v1107
      %2172 = vmatmul.mubr.bf16.gmra.mxu0 %v1106
      %v2173 = vpop.f32.mrf.mxu0
      %v2174 = vadd.f32 %v2013, %v2173
      %v2175 = vpop.f32.mrf.mxu0
      %v2176 = vpop.f32.mrf.mxu0
      %v2177 = vadd.f32 %v2016, %v2176
      %v2178 = vpop.f32.mrf.mxu0
      %2179 = vmatprep.mubr.bf16.mxu0 %v1116
      %2180 = vmatmul.mubr.bf16.gmra.mxu0 %v1115
      %v2181 = vpop.f32.mrf.mxu0
      %v2182 = vadd.f32 %v2021, %v2181
      %v2183 = vpop.f32.mrf.mxu0
      %v2184 = vpop.f32.mrf.mxu0
      %v2185 = vadd.f32 %v2024, %v2184
      %v2186 = vpop.f32.mrf.mxu0
      %2187 = vmatprep.mubr.bf16.mxu0 %v1125
      %2188 = vmatmul.mubr.bf16.gmra.mxu0 %v1124
      %v2189 = vpop.f32.mrf.mxu0
      %v2190 = vadd.f32 %v2029, %v2189
      %v2191 = vpop.f32.mrf.mxu0
      %v2192 = vpop.f32.mrf.mxu0
      %v2193 = vadd.f32 %v2032, %v2192
      %v2194 = vpop.f32.mrf.mxu0
      %2195 = vmatprep.mubr.bf16.mxu0 %v1134
      %2196 = vmatmul.mubr.bf16.gmra.mxu0 %v1133
      %v2197 = vpop.f32.mrf.mxu0
      %v2198 = vadd.f32 %v2037, %v2197
      %v2199 = vpop.f32.mrf.mxu0
      %v2200 = vpop.f32.mrf.mxu0
      %v2201 = vadd.f32 %v2040, %v2200
      %v2202 = vpop.f32.mrf.mxu0
      %2203 = vmatprep.mubr.bf16.mxu0 %v1143
      %2204 = vmatmul.mubr.bf16.gmra.mxu0 %v1142
      %v2205 = vpop.f32.mrf.mxu0
      %v2206 = vadd.f32 %v2045, %v2205
      %v2207 = vpop.f32.mrf.mxu0
      %v2208 = vpop.f32.mrf.mxu0
      %v2209 = vadd.f32 %v2048, %v2208
      %v2210 = vpop.f32.mrf.mxu0
      %2211 = vmatprep.mubr.bf16.mxu0 %v1152
      %2212 = vmatmul.mubr.bf16.gmra.mxu0 %v1151
      %v2213 = vpop.f32.mrf.mxu0
      %v2214 = vadd.f32 %v2053, %v2213
      %v2215 = vpop.f32.mrf.mxu0
      %v2216 = vpop.f32.mrf.mxu0
      %v2217 = vadd.f32 %v2056, %v2216
      %v2218 = vpop.f32.mrf.mxu0
      %2219 = vmatprep.mubr.bf16.mxu0 %v1161
      %2220 = vmatmul.mubr.bf16.gmra.mxu0 %v1160
      %v2221 = vpop.f32.mrf.mxu0
      %v2222 = vadd.f32 %v2061, %v2221
      %v2223 = vpop.f32.mrf.mxu0
      %v2224 = vpop.f32.mrf.mxu0
      %v2225 = vadd.f32 %v2064, %v2224
      %v2226 = vpop.f32.mrf.mxu0
      %2227 = vmatprep.mubr.bf16.mxu0 %v1170
      %2228 = vmatmul.mubr.bf16.gmra.mxu0 %v1169
      %v2229 = vpop.f32.mrf.mxu0
      %v2230 = vadd.f32 %v2069, %v2229
      %v2231 = vpop.f32.mrf.mxu0
      %v2232 = vpop.f32.mrf.mxu0
      %v2233 = vadd.f32 %v2072, %v2232
      %v2234 = vpop.f32.mrf.mxu0
      %2235 = vmatprep.mubr.bf16.mxu0 %v1179
      %2236 = vmatmul.mubr.bf16.gmra.mxu0 %v1178
      %v2237 = vpop.f32.mrf.mxu0
      %v2238 = vadd.f32 %v2077, %v2237
      %v2239 = vpop.f32.mrf.mxu0
      %v2240 = vpop.f32.mrf.mxu0
      %v2241 = vadd.f32 %v2080, %v2240
      %v2242 = vpop.f32.mrf.mxu0
      %2243 = vmatprep.mubr.bf16.mxu0 %v1188
      %2244 = vmatmul.mubr.bf16.gmra.mxu0 %v1187
      %v2245 = vpop.f32.mrf.mxu0
      %v2246 = vadd.f32 %v2085, %v2245
      %v2247 = vpop.f32.mrf.mxu0
      %v2248 = vpop.f32.mrf.mxu0
      %v2249 = vadd.f32 %v2088, %v2248
      %v2250 = vpop.f32.mrf.mxu0
      %2251 = vmatprep.mubr.bf16.mxu0 %v1197
      %2252 = vmatmul.mubr.bf16.gmra.mxu0 %v1196
      %v2253 = vpop.f32.mrf.mxu0
      %v2254 = vadd.f32 %v2093, %v2253
      %v2255 = vpop.f32.mrf.mxu0
      %v2256 = vpop.f32.mrf.mxu0
      %v2257 = vadd.f32 %v2096, %v2256
      %v2258 = vpop.f32.mrf.mxu0
      %2259 = vdwg.mxu0
      %2260 = vmatprep.subr.bf16.mxu0 0
      %2261 = vmatpush1.bf16.msra.mxu0 %v1688
      %2262 = vmatprep.subr.bf16.mxu0 0
      %2263 = vmatpush1.bf16.msra.mxu0 %v1687
      %2264 = vmatprep.subr.bf16.mxu0 0
      %2265 = vmatpush1.bf16.msra.mxu0 %v1686
      %2266 = vmatprep.subr.bf16.mxu0 0
      %2267 = vmatpush1.bf16.msra.mxu0 %v1685
      %2268 = vmatprep.subr.bf16.mxu0 0
      %2269 = vmatpush1.bf16.msra.mxu0 %v1684
      %2270 = vmatprep.subr.bf16.mxu0 0
      %2271 = vmatpush1.bf16.msra.mxu0 %v1683
      %2272 = vmatprep.subr.bf16.mxu0 0
      %2273 = vmatpush1.bf16.msra.mxu0 %v1682
      %2274 = vmatprep.subr.bf16.mxu0 0
      %2275 = vmatpush1.bf16.msra.mxu0 %v1681
      %2276 = vmatprep.subr.bf16.mxu0 0
      %2277 = vmatpush2.bf16.msra.mxu0 %v1696
      %2278 = vmatprep.subr.bf16.mxu0 0
      %2279 = vmatpush2.bf16.msra.mxu0 %v1695
      %2280 = vmatprep.subr.bf16.mxu0 0
      %2281 = vmatpush2.bf16.msra.mxu0 %v1694
      %2282 = vmatprep.subr.bf16.mxu0 0
      %2283 = vmatpush2.bf16.msra.mxu0 %v1693
      %2284 = vmatprep.subr.bf16.mxu0 0
      %2285 = vmatpush2.bf16.msra.mxu0 %v1692
      %2286 = vmatprep.subr.bf16.mxu0 0
      %2287 = vmatpush2.bf16.msra.mxu0 %v1691
      %2288 = vmatprep.subr.bf16.mxu0 0
      %2289 = vmatpush2.bf16.msra.mxu0 %v1690
      %2290 = vmatprep.subr.bf16.mxu0 0
      %2291 = vmatpush2.bf16.msra.mxu0 %v1689
      %2292 = vmatprep.mubr.bf16.mxu0 %v1064
      %2293 = vmatmul.mubr.bf16.gmra.mxu0 %v1063
      %v2294 = vpop.f32.mrf.mxu0
      %v2295 = vadd.f32 %v2134, %v2294
      %v2296 = vpop.f32.mrf.mxu0
      %v2297 = vpop.f32.mrf.mxu0
      %v2298 = vadd.f32 %v2137, %v2297
      %v2299 = vpop.f32.mrf.mxu0
      %2300 = vmatprep.mubr.bf16.mxu0 %v1073
      %2301 = vmatmul.mubr.bf16.gmra.mxu0 %v1072
      %v2302 = vpop.f32.mrf.mxu0
      %v2303 = vadd.f32 %v2142, %v2302
      %v2304 = vpop.f32.mrf.mxu0
      %v2305 = vpop.f32.mrf.mxu0
      %v2306 = vadd.f32 %v2145, %v2305
      %v2307 = vpop.f32.mrf.mxu0
      %2308 = vmatprep.mubr.bf16.mxu0 %v1082
      %2309 = vmatmul.mubr.bf16.gmra.mxu0 %v1081
      %v2310 = vpop.f32.mrf.mxu0
      %v2311 = vadd.f32 %v2150, %v2310
      %v2312 = vpop.f32.mrf.mxu0
      %v2313 = vpop.f32.mrf.mxu0
      %v2314 = vadd.f32 %v2153, %v2313
      %v2315 = vpop.f32.mrf.mxu0
      %2316 = vmatprep.mubr.bf16.mxu0 %v1091
      %2317 = vmatmul.mubr.bf16.gmra.mxu0 %v1090
      %v2318 = vpop.f32.mrf.mxu0
      %v2319 = vadd.f32 %v2158, %v2318
      %v2320 = vpop.f32.mrf.mxu0
      %v2321 = vpop.f32.mrf.mxu0
      %v2322 = vadd.f32 %v2161, %v2321
      %v2323 = vpop.f32.mrf.mxu0
      %2324 = vmatprep.mubr.bf16.mxu0 %v1100
      %2325 = vmatmul.mubr.bf16.gmra.mxu0 %v1099
      %v2326 = vpop.f32.mrf.mxu0
      %v2327 = vadd.f32 %v2166, %v2326
      %v2328 = vpop.f32.mrf.mxu0
      %v2329 = vpop.f32.mrf.mxu0
      %v2330 = vadd.f32 %v2169, %v2329
      %v2331 = vpop.f32.mrf.mxu0
      %2332 = vmatprep.mubr.bf16.mxu0 %v1109
      %2333 = vmatmul.mubr.bf16.gmra.mxu0 %v1108
      %v2334 = vpop.f32.mrf.mxu0
      %v2335 = vadd.f32 %v2174, %v2334
      %v2336 = vpop.f32.mrf.mxu0
      %v2337 = vpop.f32.mrf.mxu0
      %v2338 = vadd.f32 %v2177, %v2337
      %v2339 = vpop.f32.mrf.mxu0
      %2340 = vmatprep.mubr.bf16.mxu0 %v1118
      %2341 = vmatmul.mubr.bf16.gmra.mxu0 %v1117
      %v2342 = vpop.f32.mrf.mxu0
      %v2343 = vadd.f32 %v2182, %v2342
      %v2344 = vpop.f32.mrf.mxu0
      %v2345 = vpop.f32.mrf.mxu0
      %v2346 = vadd.f32 %v2185, %v2345
      %v2347 = vpop.f32.mrf.mxu0
      %2348 = vmatprep.mubr.bf16.mxu0 %v1127
      %2349 = vmatmul.mubr.bf16.gmra.mxu0 %v1126
      %v2350 = vpop.f32.mrf.mxu0
      %v2351 = vadd.f32 %v2190, %v2350
      %v2352 = vpop.f32.mrf.mxu0
      %v2353 = vpop.f32.mrf.mxu0
      %v2354 = vadd.f32 %v2193, %v2353
      %v2355 = vpop.f32.mrf.mxu0
      %2356 = vmatprep.mubr.bf16.mxu0 %v1136
      %2357 = vmatmul.mubr.bf16.gmra.mxu0 %v1135
      %v2358 = vpop.f32.mrf.mxu0
      %v2359 = vadd.f32 %v2198, %v2358
      %v2360 = vpop.f32.mrf.mxu0
      %v2361 = vpop.f32.mrf.mxu0
      %v2362 = vadd.f32 %v2201, %v2361
      %v2363 = vpop.f32.mrf.mxu0
      %2364 = vmatprep.mubr.bf16.mxu0 %v1145
      %2365 = vmatmul.mubr.bf16.gmra.mxu0 %v1144
      %v2366 = vpop.f32.mrf.mxu0
      %v2367 = vadd.f32 %v2206, %v2366
      %v2368 = vpop.f32.mrf.mxu0
      %v2369 = vpop.f32.mrf.mxu0
      %v2370 = vadd.f32 %v2209, %v2369
      %v2371 = vpop.f32.mrf.mxu0
      %2372 = vmatprep.mubr.bf16.mxu0 %v1154
      %2373 = vmatmul.mubr.bf16.gmra.mxu0 %v1153
      %v2374 = vpop.f32.mrf.mxu0
      %v2375 = vadd.f32 %v2214, %v2374
      %v2376 = vpop.f32.mrf.mxu0
      %v2377 = vpop.f32.mrf.mxu0
      %v2378 = vadd.f32 %v2217, %v2377
      %v2379 = vpop.f32.mrf.mxu0
      %2380 = vmatprep.mubr.bf16.mxu0 %v1163
      %2381 = vmatmul.mubr.bf16.gmra.mxu0 %v1162
      %v2382 = vpop.f32.mrf.mxu0
      %v2383 = vadd.f32 %v2222, %v2382
      %v2384 = vpop.f32.mrf.mxu0
      %v2385 = vpop.f32.mrf.mxu0
      %v2386 = vadd.f32 %v2225, %v2385
      %v2387 = vpop.f32.mrf.mxu0
      %2388 = vmatprep.mubr.bf16.mxu0 %v1172
      %2389 = vmatmul.mubr.bf16.gmra.mxu0 %v1171
      %v2390 = vpop.f32.mrf.mxu0
      %v2391 = vadd.f32 %v2230, %v2390
      %v2392 = vpop.f32.mrf.mxu0
      %v2393 = vpop.f32.mrf.mxu0
      %v2394 = vadd.f32 %v2233, %v2393
      %v2395 = vpop.f32.mrf.mxu0
      %2396 = vmatprep.mubr.bf16.mxu0 %v1181
      %2397 = vmatmul.mubr.bf16.gmra.mxu0 %v1180
      %v2398 = vpop.f32.mrf.mxu0
      %v2399 = vadd.f32 %v2238, %v2398
      %v2400 = vpop.f32.mrf.mxu0
      %v2401 = vpop.f32.mrf.mxu0
      %v2402 = vadd.f32 %v2241, %v2401
      %v2403 = vpop.f32.mrf.mxu0
      %2404 = vmatprep.mubr.bf16.mxu0 %v1190
      %2405 = vmatmul.mubr.bf16.gmra.mxu0 %v1189
      %v2406 = vpop.f32.mrf.mxu0
      %v2407 = vadd.f32 %v2246, %v2406
      %v2408 = vpop.f32.mrf.mxu0
      %v2409 = vpop.f32.mrf.mxu0
      %v2410 = vadd.f32 %v2249, %v2409
      %v2411 = vpop.f32.mrf.mxu0
      %2412 = vmatprep.mubr.bf16.mxu0 %v1199
      %2413 = vmatmul.mubr.bf16.gmra.mxu0 %v1198
      %v2414 = vpop.f32.mrf.mxu0
      %v2415 = vadd.f32 %v2254, %v2414
      %v2416 = vpop.f32.mrf.mxu0
      %v2417 = vpop.f32.mrf.mxu0
      %v2418 = vadd.f32 %v2257, %v2417
      %v2419 = vpop.f32.mrf.mxu0
      %2420 = vdwg.mxu0
      %2421 = vmatprep.subr.bf16.mxu0 0
      %2422 = vmatpush1.bf16.msra.mxu0 %v1704
      %2423 = vmatprep.subr.bf16.mxu0 0
      %2424 = vmatpush1.bf16.msra.mxu0 %v1703
      %2425 = vmatprep.subr.bf16.mxu0 0
      %2426 = vmatpush1.bf16.msra.mxu0 %v1702
      %2427 = vmatprep.subr.bf16.mxu0 0
      %2428 = vmatpush1.bf16.msra.mxu0 %v1701
      %2429 = vmatprep.subr.bf16.mxu0 0
      %2430 = vmatpush1.bf16.msra.mxu0 %v1700
      %2431 = vmatprep.subr.bf16.mxu0 0
      %2432 = vmatpush1.bf16.msra.mxu0 %v1699
      %2433 = vmatprep.subr.bf16.mxu0 0
      %2434 = vmatpush1.bf16.msra.mxu0 %v1698
      %2435 = vmatprep.subr.bf16.mxu0 0
      %2436 = vmatpush1.bf16.msra.mxu0 %v1697
      %2437 = vmatprep.subr.bf16.mxu0 0
      %2438 = vmatpush2.bf16.msra.mxu0 0
      %2439 = vmatprep.subr.bf16.mxu0 0
      %2440 = vmatpush2.bf16.msra.mxu0 0
      %2441 = vmatprep.subr.bf16.mxu0 0
      %2442 = vmatpush2.bf16.msra.mxu0 0
      %2443 = vmatprep.subr.bf16.mxu0 0
      %2444 = vmatpush2.bf16.msra.mxu0 0
      %2445 = vmatprep.subr.bf16.mxu0 0
      %2446 = vmatpush2.bf16.msra.mxu0 0
      %2447 = vmatprep.subr.bf16.mxu0 0
      %2448 = vmatpush2.bf16.msra.mxu0 0
      %2449 = vmatprep.subr.bf16.mxu0 0
      %2450 = vmatpush2.bf16.msra.mxu0 0
      %2451 = vmatprep.subr.bf16.mxu0 0
      %2452 = vmatpush2.bf16.msra.mxu0 0
      %2453 = vmatprep.mubr.bf16.mxu0 0
      %2454 = vmatmul.mubr.bf16.gmra.mxu0 %v1065
      %v2455 = vpop.f32.mrf.mxu0
      %v2456 = vadd.f32 %v2295, %v2455
      %v2457 = vpop.f32.mrf.mxu0
      %v2458 = vpop.f32.mrf.mxu0
      %v2459 = vadd.f32 %v2298, %v2458
      %v2460 = vpop.f32.mrf.mxu0
      %2461 = vmatprep.mubr.bf16.mxu0 0
      %2462 = vmatmul.mubr.bf16.gmra.mxu0 %v1074
      %v2463 = vpop.f32.mrf.mxu0
      %v2464 = vadd.f32 %v2303, %v2463
      %v2465 = vpop.f32.mrf.mxu0
      %v2466 = vpop.f32.mrf.mxu0
      %v2467 = vadd.f32 %v2306, %v2466
      %v2468 = vpop.f32.mrf.mxu0
      %2469 = vmatprep.mubr.bf16.mxu0 0
      %2470 = vmatmul.mubr.bf16.gmra.mxu0 %v1083
      %v2471 = vpop.f32.mrf.mxu0
      %v2472 = vadd.f32 %v2311, %v2471
      %v2473 = vpop.f32.mrf.mxu0
      %v2474 = vpop.f32.mrf.mxu0
      %v2475 = vadd.f32 %v2314, %v2474
      %v2476 = vpop.f32.mrf.mxu0
      %2477 = vmatprep.mubr.bf16.mxu0 0
      %2478 = vmatmul.mubr.bf16.gmra.mxu0 %v1092
      %v2479 = vpop.f32.mrf.mxu0
      %v2480 = vadd.f32 %v2319, %v2479
      %v2481 = vpop.f32.mrf.mxu0
      %v2482 = vpop.f32.mrf.mxu0
      %v2483 = vadd.f32 %v2322, %v2482
      %v2484 = vpop.f32.mrf.mxu0
      %2485 = vmatprep.mubr.bf16.mxu0 0
      %2486 = vmatmul.mubr.bf16.gmra.mxu0 %v1101
      %v2487 = vpop.f32.mrf.mxu0
      %v2488 = vadd.f32 %v2327, %v2487
      %v2489 = vpop.f32.mrf.mxu0
      %v2490 = vpop.f32.mrf.mxu0
      %v2491 = vadd.f32 %v2330, %v2490
      %v2492 = vpop.f32.mrf.mxu0
      %2493 = vmatprep.mubr.bf16.mxu0 0
      %2494 = vmatmul.mubr.bf16.gmra.mxu0 %v1110
      %v2495 = vpop.f32.mrf.mxu0
      %v2496 = vadd.f32 %v2335, %v2495
      %v2497 = vpop.f32.mrf.mxu0
      %v2498 = vpop.f32.mrf.mxu0
      %v2499 = vadd.f32 %v2338, %v2498
      %v2500 = vpop.f32.mrf.mxu0
      %2501 = vmatprep.mubr.bf16.mxu0 0
      %2502 = vmatmul.mubr.bf16.gmra.mxu0 %v1119
      %v2503 = vpop.f32.mrf.mxu0
      %v2504 = vadd.f32 %v2343, %v2503
      %v2505 = vpop.f32.mrf.mxu0
      %v2506 = vpop.f32.mrf.mxu0
      %v2507 = vadd.f32 %v2346, %v2506
      %v2508 = vpop.f32.mrf.mxu0
      %2509 = vmatprep.mubr.bf16.mxu0 0
      %2510 = vmatmul.mubr.bf16.gmra.mxu0 %v1128
      %v2511 = vpop.f32.mrf.mxu0
      %v2512 = vadd.f32 %v2351, %v2511
      %v2513 = vpop.f32.mrf.mxu0
      %v2514 = vpop.f32.mrf.mxu0
      %v2515 = vadd.f32 %v2354, %v2514
      %v2516 = vpop.f32.mrf.mxu0
      %2517 = vmatprep.mubr.bf16.mxu0 0
      %2518 = vmatmul.mubr.bf16.gmra.mxu0 %v1137
      %v2519 = vpop.f32.mrf.mxu0
      %v2520 = vadd.f32 %v2359, %v2519
      %v2521 = vpop.f32.mrf.mxu0
      %v2522 = vpop.f32.mrf.mxu0
      %v2523 = vadd.f32 %v2362, %v2522
      %v2524 = vpop.f32.mrf.mxu0
      %2525 = vmatprep.mubr.bf16.mxu0 0
      %2526 = vmatmul.mubr.bf16.gmra.mxu0 %v1146
      %v2527 = vpop.f32.mrf.mxu0
      %v2528 = vadd.f32 %v2367, %v2527
      %v2529 = vpop.f32.mrf.mxu0
      %v2530 = vpop.f32.mrf.mxu0
      %v2531 = vadd.f32 %v2370, %v2530
      %v2532 = vpop.f32.mrf.mxu0
      %2533 = vmatprep.mubr.bf16.mxu0 0
      %2534 = vmatmul.mubr.bf16.gmra.mxu0 %v1155
      %v2535 = vpop.f32.mrf.mxu0
      %v2536 = vadd.f32 %v2375, %v2535
      %v2537 = vpop.f32.mrf.mxu0
      %v2538 = vpop.f32.mrf.mxu0
      %v2539 = vadd.f32 %v2378, %v2538
      %v2540 = vpop.f32.mrf.mxu0
      %2541 = vmatprep.mubr.bf16.mxu0 0
      %2542 = vmatmul.mubr.bf16.gmra.mxu0 %v1164
      %v2543 = vpop.f32.mrf.mxu0
      %v2544 = vadd.f32 %v2383, %v2543
      %v2545 = vpop.f32.mrf.mxu0
      %v2546 = vpop.f32.mrf.mxu0
      %v2547 = vadd.f32 %v2386, %v2546
      %v2548 = vpop.f32.mrf.mxu0
      %2549 = vmatprep.mubr.bf16.mxu0 0
      %2550 = vmatmul.mubr.bf16.gmra.mxu0 %v1173
      %v2551 = vpop.f32.mrf.mxu0
      %v2552 = vadd.f32 %v2391, %v2551
      %v2553 = vpop.f32.mrf.mxu0
      %v2554 = vpop.f32.mrf.mxu0
      %v2555 = vadd.f32 %v2394, %v2554
      %v2556 = vpop.f32.mrf.mxu0
      %2557 = vmatprep.mubr.bf16.mxu0 0
      %2558 = vmatmul.mubr.bf16.gmra.mxu0 %v1182
      %v2559 = vpop.f32.mrf.mxu0
      %v2560 = vadd.f32 %v2399, %v2559
      %v2561 = vpop.f32.mrf.mxu0
      %v2562 = vpop.f32.mrf.mxu0
      %v2563 = vadd.f32 %v2402, %v2562
      %v2564 = vpop.f32.mrf.mxu0
      %2565 = vmatprep.mubr.bf16.mxu0 0
      %2566 = vmatmul.mubr.bf16.gmra.mxu0 %v1191
      %v2567 = vpop.f32.mrf.mxu0
      %v2568 = vadd.f32 %v2407, %v2567
      %v2569 = vpop.f32.mrf.mxu0
      %v2570 = vpop.f32.mrf.mxu0
      %v2571 = vadd.f32 %v2410, %v2570
      %v2572 = vpop.f32.mrf.mxu0
      %2573 = vmatprep.mubr.bf16.mxu0 0
      %2574 = vmatmul.mubr.bf16.gmra.mxu0 %v1200
      %v2575 = vpop.f32.mrf.mxu0
      %v2576 = vadd.f32 %v2415, %v2575
      %v2577 = vpop.f32.mrf.mxu0
      %v2578 = vpop.f32.mrf.mxu0
      %v2579 = vadd.f32 %v2418, %v2578
      %v2580 = vpop.f32.mrf.mxu0
      %2581 = vdwg.mxu0
      %v2582 = vld [vmem:[%s286] sm:$0xf]
      %v2583 = vld [vmem:[%s286 + $0x4] sm:$0xf]
      %v2584 = vld [vmem:[%s286 + $0x8] sm:$0xf]
      %v2585 = vld [vmem:[%s286 + $0xc] sm:$0xf]
      %v2586 = vld [vmem:[%s286 + $0x10] sm:$0xf]
      %v2587 = vld [vmem:[%s286 + $0x14] sm:$0xf]
      %v2588 = vld [vmem:[%s286 + $0x18] sm:$0xf]
      %v2589 = vld [vmem:[%s286 + $0x1c] sm:$0xf]
      %v2590 = vld [vmem:[%s286 + $0x20] sm:$0xf]
      %v2591 = vld [vmem:[%s286 + $0x24] sm:$0xf]
      %v2592 = vld [vmem:[%s286 + $0x28] sm:$0xf]
      %v2593 = vld [vmem:[%s286 + $0x2c] sm:$0xf]
      %v2594 = vld [vmem:[%s286 + $0x30] sm:$0xf]
      %v2595 = vld [vmem:[%s286 + $0x34] sm:$0xf]
      %v2596 = vld [vmem:[%s286 + $0x38] sm:$0xf]
      %v2597 = vld [vmem:[%s286 + $0x3c] sm:$0xf]
      %v2598 = vld [vmem:[%s286 + $0x40] sm:$0xf]
      %v2599 = vld [vmem:[%s286 + $0x44] sm:$0xf]
      %v2600 = vld [vmem:[%s286 + $0x48] sm:$0xf]
      %v2601 = vld [vmem:[%s286 + $0x4c] sm:$0xf]
      %v2602 = vld [vmem:[%s286 + $0x50] sm:$0xf]
      %v2603 = vld [vmem:[%s286 + $0x54] sm:$0xf]
      %v2604 = vld [vmem:[%s286 + $0x58] sm:$0xf]
      %v2605 = vld [vmem:[%s286 + $0x5c] sm:$0xf]
      %v2606 = vld [vmem:[%s286 + $0x60] sm:$0xf]
      %v2607 = vld [vmem:[%s286 + $0x64] sm:$0xf]
      %v2608 = vld [vmem:[%s286 + $0x68] sm:$0xf]
      %v2609 = vld [vmem:[%s286 + $0x6c] sm:$0xf]
      %v2610 = vld [vmem:[%s286 + $0x70] sm:$0xf]
      %v2611 = vld [vmem:[%s286 + $0x74] sm:$0xf]
      %v2612 = vld [vmem:[%s286 + $0x78] sm:$0xf]
      %v2613 = vld [vmem:[%s286 + $0x7c] sm:$0xf]
      %v2614 = vld [vmem:[%s3] sm:$0xf]
      %v2615 = vld [vmem:[%s3 + $0x4] sm:$0xf]
      %v2616 = vld [vmem:[%s3 + $0x8] sm:$0xf]
      %v2617 = vld [vmem:[%s3 + $0xc] sm:$0xf]
      %v2618 = vld [vmem:[%s3 + $0x10] sm:$0xf]
      %v2619 = vld [vmem:[%s3 + $0x14] sm:$0xf]
      %v2620 = vld [vmem:[%s3 + $0x18] sm:$0xf]
      %v2621 = vld [vmem:[%s3 + $0x1c] sm:$0xf]
      %v2622 = vld [vmem:[%s3 + $0x20] sm:$0xf]
      %v2623 = vld [vmem:[%s3 + $0x24] sm:$0xf]
      %v2624 = vld [vmem:[%s3 + $0x28] sm:$0xf]
      %v2625 = vld [vmem:[%s3 + $0x2c] sm:$0xf]
      %v2626 = vld [vmem:[%s3 + $0x30] sm:$0xf]
      %v2627 = vld [vmem:[%s3 + $0x34] sm:$0xf]
      %v2628 = vld [vmem:[%s3 + $0x38] sm:$0xf]
      %v2629 = vld [vmem:[%s3 + $0x3c] sm:$0xf]
      %v2662 = vunpack.c.l.b16 %v2582
      %v2663 = vunpack.c.l.b16 %v2583
      %v2664 = vunpack.c.l.b16 %v2584
      %v2665 = vunpack.c.l.b16 %v2585
      %v2666 = vunpack.c.l.b16 %v2586
      %v2667 = vunpack.c.l.b16 %v2587
      %v2668 = vunpack.c.l.b16 %v2588
      %v2669 = vunpack.c.l.b16 %v2589
      %v2670 = vunpack.c.l.b16 %v2590
      %v2671 = vunpack.c.l.b16 %v2591
      %v2672 = vunpack.c.l.b16 %v2592
      %v2673 = vunpack.c.l.b16 %v2593
      %v2674 = vunpack.c.l.b16 %v2594
      %v2675 = vunpack.c.l.b16 %v2595
      %v2676 = vunpack.c.l.b16 %v2596
      %v2677 = vunpack.c.l.b16 %v2597
      %v2678 = vunpack.c.l.b16 %v2598
      %v2679 = vunpack.c.l.b16 %v2599
      %v2680 = vunpack.c.l.b16 %v2600
      %v2681 = vunpack.c.l.b16 %v2601
      %v2682 = vunpack.c.l.b16 %v2602
      %v2683 = vunpack.c.l.b16 %v2603
      %v2684 = vunpack.c.l.b16 %v2604
      %v2685 = vunpack.c.l.b16 %v2605
      %v2686 = vunpack.c.l.b16 %v2606
      %v2687 = vunpack.c.l.b16 %v2607
      %v2688 = vunpack.c.l.b16 %v2608
      %v2689 = vunpack.c.l.b16 %v2609
      %v2690 = vunpack.c.l.b16 %v2610
      %v2691 = vunpack.c.l.b16 %v2611
      %v2692 = vunpack.c.l.b16 %v2612
      %v2693 = vunpack.c.l.b16 %v2613
      %v2694 = vpack.c.b16 %v2663, %v2662
      %v2695 = vpack.c.b16 %v2665, %v2664
      %v2696 = vpack.c.b16 %v2667, %v2666
      %v2697 = vpack.c.b16 %v2669, %v2668
      %v2698 = vpack.c.b16 %v2671, %v2670
      %v2699 = vpack.c.b16 %v2673, %v2672
      %v2700 = vpack.c.b16 %v2675, %v2674
      %v2701 = vpack.c.b16 %v2677, %v2676
      %v2702 = vpack.c.b16 %v2679, %v2678
      %v2703 = vpack.c.b16 %v2681, %v2680
      %v2704 = vpack.c.b16 %v2683, %v2682
      %v2705 = vpack.c.b16 %v2685, %v2684
      %v2706 = vpack.c.b16 %v2687, %v2686
      %v2707 = vpack.c.b16 %v2689, %v2688
      %v2708 = vpack.c.b16 %v2691, %v2690
      %v2709 = vpack.c.b16 %v2693, %v2692
      %v2742 = vunpack.c.l.b16 %v2614
      %v2743 = vunpack.c.l.b16 %v2615
      %v2744 = vunpack.c.l.b16 %v2616
      %v2745 = vunpack.c.l.b16 %v2617
      %v2746 = vunpack.c.l.b16 %v2618
      %v2747 = vunpack.c.l.b16 %v2619
      %v2748 = vunpack.c.l.b16 %v2620
      %v2749 = vunpack.c.l.b16 %v2621
      %v2750 = vunpack.c.l.b16 %v2622
      %v2751 = vunpack.c.l.b16 %v2623
      %v2752 = vunpack.c.l.b16 %v2624
      %v2753 = vunpack.c.l.b16 %v2625
      %v2754 = vunpack.c.l.b16 %v2626
      %v2755 = vunpack.c.l.b16 %v2627
      %v2756 = vunpack.c.l.b16 %v2628
      %v2757 = vunpack.c.l.b16 %v2629
      %v2758 = vpack.c.b16 %v2743, %v2742
      %v2759 = vpack.c.b16 %v2745, %v2744
      %v2760 = vpack.c.b16 %v2747, %v2746
      %v2761 = vpack.c.b16 %v2749, %v2748
      %v2762 = vpack.c.b16 %v2751, %v2750
      %v2763 = vpack.c.b16 %v2753, %v2752
      %v2764 = vpack.c.b16 %v2755, %v2754
      %v2765 = vpack.c.b16 %v2757, %v2756
      %2774 = vmatprep.subr.bf16.mxu0 0
      %2775 = vmatpush1.bf16.msra.mxu0 %v2765
      %2776 = vmatprep.subr.bf16.mxu0 0
      %2777 = vmatpush1.bf16.msra.mxu0 %v2764
      %2778 = vmatprep.subr.bf16.mxu0 0
      %2779 = vmatpush1.bf16.msra.mxu0 %v2763
      %2780 = vmatprep.subr.bf16.mxu0 0
      %2781 = vmatpush1.bf16.msra.mxu0 %v2762
      %2782 = vmatprep.subr.bf16.mxu0 0
      %2783 = vmatpush1.bf16.msra.mxu0 %v2761
      %2784 = vmatprep.subr.bf16.mxu0 0
      %2785 = vmatpush1.bf16.msra.mxu0 %v2760
      %2786 = vmatprep.subr.bf16.mxu0 0
      %2787 = vmatpush1.bf16.msra.mxu0 %v2759
      %2788 = vmatprep.subr.bf16.mxu0 0
      %2789 = vmatpush1.bf16.msra.mxu0 %v2758
      %2790 = vmatprep.subr.bf16.mxu0 0
      %2791 = vmatpush2.bf16.msra.mxu0 0
      %2792 = vmatprep.subr.bf16.mxu0 0
      %2793 = vmatpush2.bf16.msra.mxu0 0
      %2794 = vmatprep.subr.bf16.mxu0 0
      %2795 = vmatpush2.bf16.msra.mxu0 0
      %2796 = vmatprep.subr.bf16.mxu0 0
      %2797 = vmatpush2.bf16.msra.mxu0 0
      %2798 = vmatprep.subr.bf16.mxu0 0
      %2799 = vmatpush2.bf16.msra.mxu0 0
      %2800 = vmatprep.subr.bf16.mxu0 0
      %2801 = vmatpush2.bf16.msra.mxu0 0
      %2802 = vmatprep.subr.bf16.mxu0 0
      %2803 = vmatpush2.bf16.msra.mxu0 0
      %2804 = vmatprep.subr.bf16.mxu0 0
      %2805 = vmatpush2.bf16.msra.mxu0 0
      %2806 = vmatprep.mubr.bf16.mxu0 0
      %2807 = vmatmul.mubr.bf16.gmra.mxu0 %v2694
      %v2808 = vpop.f32.mrf.mxu0
      %v2809 = vadd.f32 0.0, %v2808
      %v2810 = vpop.f32.mrf.mxu0
      %v2811 = vpop.f32.mrf.mxu0
      %v2812 = vadd.f32 0.0, %v2811
      %v2813 = vpop.f32.mrf.mxu0
      %2814 = vmatprep.mubr.bf16.mxu0 0
      %2815 = vmatmul.mubr.bf16.gmra.mxu0 %v2695
      %v2816 = vpop.f32.mrf.mxu0
      %v2817 = vadd.f32 0.0, %v2816
      %v2818 = vpop.f32.mrf.mxu0
      %v2819 = vpop.f32.mrf.mxu0
      %v2820 = vadd.f32 0.0, %v2819
      %v2821 = vpop.f32.mrf.mxu0
      %2822 = vmatprep.mubr.bf16.mxu0 0
      %2823 = vmatmul.mubr.bf16.gmra.mxu0 %v2696
      %v2824 = vpop.f32.mrf.mxu0
      %v2825 = vadd.f32 0.0, %v2824
      %v2826 = vpop.f32.mrf.mxu0
      %v2827 = vpop.f32.mrf.mxu0
      %v2828 = vadd.f32 0.0, %v2827
      %v2829 = vpop.f32.mrf.mxu0
      %2830 = vmatprep.mubr.bf16.mxu0 0
      %2831 = vmatmul.mubr.bf16.gmra.mxu0 %v2697
      %v2832 = vpop.f32.mrf.mxu0
      %v2833 = vadd.f32 0.0, %v2832
      %v2834 = vpop.f32.mrf.mxu0
      %v2835 = vpop.f32.mrf.mxu0
      %v2836 = vadd.f32 0.0, %v2835
      %v2837 = vpop.f32.mrf.mxu0
      %2838 = vmatprep.mubr.bf16.mxu0 0
      %2839 = vmatmul.mubr.bf16.gmra.mxu0 %v2698
      %v2840 = vpop.f32.mrf.mxu0
      %v2841 = vadd.f32 0.0, %v2840
      %v2842 = vpop.f32.mrf.mxu0
      %v2843 = vpop.f32.mrf.mxu0
      %v2844 = vadd.f32 0.0, %v2843
      %v2845 = vpop.f32.mrf.mxu0
      %2846 = vmatprep.mubr.bf16.mxu0 0
      %2847 = vmatmul.mubr.bf16.gmra.mxu0 %v2699
      %v2848 = vpop.f32.mrf.mxu0
      %v2849 = vadd.f32 0.0, %v2848
      %v2850 = vpop.f32.mrf.mxu0
      %v2851 = vpop.f32.mrf.mxu0
      %v2852 = vadd.f32 0.0, %v2851
      %v2853 = vpop.f32.mrf.mxu0
      %2854 = vmatprep.mubr.bf16.mxu0 0
      %2855 = vmatmul.mubr.bf16.gmra.mxu0 %v2700
      %v2856 = vpop.f32.mrf.mxu0
      %v2857 = vadd.f32 0.0, %v2856
      %v2858 = vpop.f32.mrf.mxu0
      %v2859 = vpop.f32.mrf.mxu0
      %v2860 = vadd.f32 0.0, %v2859
      %v2861 = vpop.f32.mrf.mxu0
      %2862 = vmatprep.mubr.bf16.mxu0 0
      %2863 = vmatmul.mubr.bf16.gmra.mxu0 %v2701
      %v2864 = vpop.f32.mrf.mxu0
      %v2865 = vadd.f32 0.0, %v2864
      %v2866 = vpop.f32.mrf.mxu0
      %v2867 = vpop.f32.mrf.mxu0
      %v2868 = vadd.f32 0.0, %v2867
      %v2869 = vpop.f32.mrf.mxu0
      %2870 = vmatprep.mubr.bf16.mxu0 0
      %2871 = vmatmul.mubr.bf16.gmra.mxu0 %v2702
      %v2872 = vpop.f32.mrf.mxu0
      %v2873 = vadd.f32 0.0, %v2872
      %v2874 = vpop.f32.mrf.mxu0
      %v2875 = vpop.f32.mrf.mxu0
      %v2876 = vadd.f32 0.0, %v2875
      %v2877 = vpop.f32.mrf.mxu0
      %2878 = vmatprep.mubr.bf16.mxu0 0
      %2879 = vmatmul.mubr.bf16.gmra.mxu0 %v2703
      %v2880 = vpop.f32.mrf.mxu0
      %v2881 = vadd.f32 0.0, %v2880
      %v2882 = vpop.f32.mrf.mxu0
      %v2883 = vpop.f32.mrf.mxu0
      %v2884 = vadd.f32 0.0, %v2883
      %v2885 = vpop.f32.mrf.mxu0
      %2886 = vmatprep.mubr.bf16.mxu0 0
      %2887 = vmatmul.mubr.bf16.gmra.mxu0 %v2704
      %v2888 = vpop.f32.mrf.mxu0
      %v2889 = vadd.f32 0.0, %v2888
      %v2890 = vpop.f32.mrf.mxu0
      %v2891 = vpop.f32.mrf.mxu0
      %v2892 = vadd.f32 0.0, %v2891
      %v2893 = vpop.f32.mrf.mxu0
      %2894 = vmatprep.mubr.bf16.mxu0 0
      %2895 = vmatmul.mubr.bf16.gmra.mxu0 %v2705
      %v2896 = vpop.f32.mrf.mxu0
      %v2897 = vadd.f32 0.0, %v2896
      %v2898 = vpop.f32.mrf.mxu0
      %v2899 = vpop.f32.mrf.mxu0
      %v2900 = vadd.f32 0.0, %v2899
      %v2901 = vpop.f32.mrf.mxu0
      %2902 = vmatprep.mubr.bf16.mxu0 0
      %2903 = vmatmul.mubr.bf16.gmra.mxu0 %v2706
      %v2904 = vpop.f32.mrf.mxu0
      %v2905 = vadd.f32 0.0, %v2904
      %v2906 = vpop.f32.mrf.mxu0
      %v2907 = vpop.f32.mrf.mxu0
      %v2908 = vadd.f32 0.0, %v2907
      %v2909 = vpop.f32.mrf.mxu0
      %2910 = vmatprep.mubr.bf16.mxu0 0
      %2911 = vmatmul.mubr.bf16.gmra.mxu0 %v2707
      %v2912 = vpop.f32.mrf.mxu0
      %v2913 = vadd.f32 0.0, %v2912
      %v2914 = vpop.f32.mrf.mxu0
      %v2915 = vpop.f32.mrf.mxu0
      %v2916 = vadd.f32 0.0, %v2915
      %v2917 = vpop.f32.mrf.mxu0
      %2918 = vmatprep.mubr.bf16.mxu0 0
      %2919 = vmatmul.mubr.bf16.gmra.mxu0 %v2708
      %v2920 = vpop.f32.mrf.mxu0
      %v2921 = vadd.f32 0.0, %v2920
      %v2922 = vpop.f32.mrf.mxu0
      %v2923 = vpop.f32.mrf.mxu0
      %v2924 = vadd.f32 0.0, %v2923
      %v2925 = vpop.f32.mrf.mxu0
      %2926 = vmatprep.mubr.bf16.mxu0 0
      %2927 = vmatmul.mubr.bf16.gmra.mxu0 %v2709
      %v2928 = vpop.f32.mrf.mxu0
      %v2929 = vadd.f32 0.0, %v2928
      %v2930 = vpop.f32.mrf.mxu0
      %v2931 = vpop.f32.mrf.mxu0
      %v2932 = vadd.f32 0.0, %v2931
      %v2933 = vpop.f32.mrf.mxu0
      %2934 = vdwg.mxu0
      %2935 = vst [vmem:[%s292] sm:$0xff] %v2456
      %2936 = vst [vmem:[%s292 + $0x8] sm:$0xff] %v2459
      %2937 = vst [vmem:[%s292 + $0x10] sm:$0xff] %v2464
      %2938 = vst [vmem:[%s292 + $0x18] sm:$0xff] %v2467
      %2939 = vst [vmem:[%s292 + $0x20] sm:$0xff] %v2472
      %2940 = vst [vmem:[%s292 + $0x28] sm:$0xff] %v2475
      %2941 = vst [vmem:[%s292 + $0x30] sm:$0xff] %v2480
      %2942 = vst [vmem:[%s292 + $0x38] sm:$0xff] %v2483
      %2943 = vst [vmem:[%s292 + $0x40] sm:$0xff] %v2488
      %2944 = vst [vmem:[%s292 + $0x48] sm:$0xff] %v2491
      %2945 = vst [vmem:[%s292 + $0x50] sm:$0xff] %v2496
      %2946 = vst [vmem:[%s292 + $0x58] sm:$0xff] %v2499
      %2947 = vst [vmem:[%s292 + $0x60] sm:$0xff] %v2504
      %2948 = vst [vmem:[%s292 + $0x68] sm:$0xff] %v2507
      %2949 = vst [vmem:[%s292 + $0x70] sm:$0xff] %v2512
      %2950 = vst [vmem:[%s292 + $0x78] sm:$0xff] %v2515
      %2951 = vst [vmem:[%s292 + $0x80] sm:$0xff] %v2520
      %2952 = vst [vmem:[%s292 + $0x88] sm:$0xff] %v2523
      %2953 = vst [vmem:[%s292 + $0x90] sm:$0xff] %v2528
      %2954 = vst [vmem:[%s292 + $0x98] sm:$0xff] %v2531
      %2955 = vst [vmem:[%s292 + $0xa0] sm:$0xff] %v2536
      %2956 = vst [vmem:[%s292 + $0xa8] sm:$0xff] %v2539
      %2957 = vst [vmem:[%s292 + $0xb0] sm:$0xff] %v2544
      %2958 = vst [vmem:[%s292 + $0xb8] sm:$0xff] %v2547
      %2959 = vst [vmem:[%s292 + $0xc0] sm:$0xff] %v2552
      %2960 = vst [vmem:[%s292 + $0xc8] sm:$0xff] %v2555
      %2961 = vst [vmem:[%s292 + $0xd0] sm:$0xff] %v2560
      %2962 = vst [vmem:[%s292 + $0xd8] sm:$0xff] %v2563
      %2963 = vst [vmem:[%s292 + $0xe0] sm:$0xff] %v2568
      %2964 = vst [vmem:[%s292 + $0xe8] sm:$0xff] %v2571
      %2965 = vst [vmem:[%s292 + $0xf0] sm:$0xff] %v2576
      %2966 = vst [vmem:[%s292 + $0xf8] sm:$0xff] %v2579
      %2967 = vst [vmem:[%s298] sm:$0xff] %v2809
      %2968 = vst [vmem:[%s298 + $0x8] sm:$0xff] %v2812
      %2969 = vst [vmem:[%s298 + $0x10] sm:$0xff] %v2817
      %2970 = vst [vmem:[%s298 + $0x18] sm:$0xff] %v2820
      %2971 = vst [vmem:[%s298 + $0x20] sm:$0xff] %v2825
      %2972 = vst [vmem:[%s298 + $0x28] sm:$0xff] %v2828
      %2973 = vst [vmem:[%s298 + $0x30] sm:$0xff] %v2833
      %2974 = vst [vmem:[%s298 + $0x38] sm:$0xff] %v2836
      %2975 = vst [vmem:[%s298 + $0x40] sm:$0xff] %v2841
      %2976 = vst [vmem:[%s298 + $0x48] sm:$0xff] %v2844
      %2977 = vst [vmem:[%s298 + $0x50] sm:$0xff] %v2849
      %2978 = vst [vmem:[%s298 + $0x58] sm:$0xff] %v2852
      %2979 = vst [vmem:[%s298 + $0x60] sm:$0xff] %v2857
      %2980 = vst [vmem:[%s298 + $0x68] sm:$0xff] %v2860
      %2981 = vst [vmem:[%s298 + $0x70] sm:$0xff] %v2865
      %2982 = vst [vmem:[%s298 + $0x78] sm:$0xff] %v2868
      %2983 = vst [vmem:[%s298 + $0x80] sm:$0xff] %v2873
      %2984 = vst [vmem:[%s298 + $0x88] sm:$0xff] %v2876
      %2985 = vst [vmem:[%s298 + $0x90] sm:$0xff] %v2881
      %2986 = vst [vmem:[%s298 + $0x98] sm:$0xff] %v2884
      %2987 = vst [vmem:[%s298 + $0xa0] sm:$0xff] %v2889
      %2988 = vst [vmem:[%s298 + $0xa8] sm:$0xff] %v2892
      %2989 = vst [vmem:[%s298 + $0xb0] sm:$0xff] %v2897
      %2990 = vst [vmem:[%s298 + $0xb8] sm:$0xff] %v2900
      %2991 = vst [vmem:[%s298 + $0xc0] sm:$0xff] %v2905
      %2992 = vst [vmem:[%s298 + $0xc8] sm:$0xff] %v2908
      %2993 = vst [vmem:[%s298 + $0xd0] sm:$0xff] %v2913
      %2994 = vst [vmem:[%s298 + $0xd8] sm:$0xff] %v2916
      %2995 = vst [vmem:[%s298 + $0xe0] sm:$0xff] %v2921
      %2996 = vst [vmem:[%s298 + $0xe8] sm:$0xff] %v2924
      %2997 = vst [vmem:[%s298 + $0xf0] sm:$0xff] %v2929
      %2998 = vst [vmem:[%s298 + $0xf8] sm:$0xff] %v2932
      %v2999 = vadd.f32 %v2456, %v2459
      %v3000 = vadd.f32 %v2999, %v2464
      %v3001 = vadd.f32 %v3000, %v2467
      %v3002 = vadd.f32 %v3001, %v2472
      %v3003 = vadd.f32 %v3002, %v2475
      %v3004 = vadd.f32 %v3003, %v2480
      %v3005 = vadd.f32 %v3004, %v2483
      %v3006 = vadd.f32 %v3005, %v2488
      %v3007 = vadd.f32 %v3006, %v2491
      %v3008 = vadd.f32 %v3007, %v2496
      %v3009 = vadd.f32 %v3008, %v2499
      %v3010 = vadd.f32 %v3009, %v2504
      %v3011 = vadd.f32 %v3010, %v2507
      %v3012 = vadd.f32 %v3011, %v2512
      %v3013 = vadd.f32 %v3012, %v2515
      %v3014 = vadd.f32 %v3013, %v2520
      %v3015 = vadd.f32 %v3014, %v2523
      %v3016 = vadd.f32 %v3015, %v2528
      %v3017 = vadd.f32 %v3016, %v2531
      %v3018 = vadd.f32 %v3017, %v2536
      %v3019 = vadd.f32 %v3018, %v2539
      %v3020 = vadd.f32 %v3019, %v2544
      %v3021 = vadd.f32 %v3020, %v2547
      %v3022 = vadd.f32 %v3021, %v2552
      %v3023 = vadd.f32 %v3022, %v2555
      %v3024 = vadd.f32 %v3023, %v2560
      %v3025 = vadd.f32 %v3024, %v2563
      %v3026 = vadd.f32 %v3025, %v2568
      %v3027 = vadd.f32 %v3026, %v2571
      %v3028 = vadd.f32 %v3027, %v2576
      %v3029 = vadd.f32 %v3028, %v2579
      %v3030 = vrot.slane %v3029, 4
      %v3031 = vadd.f32 %v3029, %v3030
      %v3032 = vrot.slane %v3031, 2
      %v3033 = vadd.f32 %v3031, %v3032
      %v3034 = vrot.slane %v3033, 1
      %v3035 = vadd.f32 %v3033, %v3034
      %v3036 = vmul.f32 %v2456, %v2456
      %v3037 = vmul.f32 %v2459, %v2459
      %v3038 = vmul.f32 %v2464, %v2464
      %v3039 = vmul.f32 %v2467, %v2467
      %v3040 = vmul.f32 %v2472, %v2472
      %v3041 = vmul.f32 %v2475, %v2475
      %v3042 = vmul.f32 %v2480, %v2480
      %v3043 = vmul.f32 %v2483, %v2483
      %v3044 = vmul.f32 %v2488, %v2488
      %v3045 = vmul.f32 %v2491, %v2491
      %v3046 = vmul.f32 %v2496, %v2496
      %v3047 = vmul.f32 %v2499, %v2499
      %v3048 = vmul.f32 %v2504, %v2504
      %v3049 = vmul.f32 %v2507, %v2507
      %v3050 = vmul.f32 %v2512, %v2512
      %v3051 = vmul.f32 %v2515, %v2515
      %v3052 = vmul.f32 %v2520, %v2520
      %v3053 = vmul.f32 %v2523, %v2523
      %v3054 = vmul.f32 %v2528, %v2528
      %v3055 = vmul.f32 %v2531, %v2531
      %v3056 = vmul.f32 %v2536, %v2536
      %v3057 = vmul.f32 %v2539, %v2539
      %v3058 = vmul.f32 %v2544, %v2544
      %v3059 = vmul.f32 %v2547, %v2547
      %v3060 = vmul.f32 %v2552, %v2552
      %v3061 = vmul.f32 %v2555, %v2555
      %v3062 = vmul.f32 %v2560, %v2560
      %v3063 = vmul.f32 %v2563, %v2563
      %v3064 = vmul.f32 %v2568, %v2568
      %v3065 = vmul.f32 %v2571, %v2571
      %v3066 = vmul.f32 %v2576, %v2576
      %v3067 = vmul.f32 %v2579, %v2579
      %v3068 = vadd.f32 %v3036, %v3037
      %v3069 = vadd.f32 %v3068, %v3038
      %v3070 = vadd.f32 %v3069, %v3039
      %v3071 = vadd.f32 %v3070, %v3040
      %v3072 = vadd.f32 %v3071, %v3041
      %v3073 = vadd.f32 %v3072, %v3042
      %v3074 = vadd.f32 %v3073, %v3043
      %v3075 = vadd.f32 %v3074, %v3044
      %v3076 = vadd.f32 %v3075, %v3045
      %v3077 = vadd.f32 %v3076, %v3046
      %v3078 = vadd.f32 %v3077, %v3047
      %v3079 = vadd.f32 %v3078, %v3048
      %v3080 = vadd.f32 %v3079, %v3049
      %v3081 = vadd.f32 %v3080, %v3050
      %v3082 = vadd.f32 %v3081, %v3051
      %v3083 = vadd.f32 %v3082, %v3052
      %v3084 = vadd.f32 %v3083, %v3053
      %v3085 = vadd.f32 %v3084, %v3054
      %v3086 = vadd.f32 %v3085, %v3055
      %v3087 = vadd.f32 %v3086, %v3056
      %v3088 = vadd.f32 %v3087, %v3057
      %v3089 = vadd.f32 %v3088, %v3058
      %v3090 = vadd.f32 %v3089, %v3059
      %v3091 = vadd.f32 %v3090, %v3060
      %v3092 = vadd.f32 %v3091, %v3061
      %v3093 = vadd.f32 %v3092, %v3062
      %v3094 = vadd.f32 %v3093, %v3063
      %v3095 = vadd.f32 %v3094, %v3064
      %v3096 = vadd.f32 %v3095, %v3065
      %v3097 = vadd.f32 %v3096, %v3066
      %v3098 = vadd.f32 %v3097, %v3067
      %v3099 = vrot.slane %v3098, 4
      %v3100 = vadd.f32 %v3098, %v3099
      %v3101 = vrot.slane %v3100, 2
      %v3102 = vadd.f32 %v3100, %v3101
      %v3103 = vrot.slane %v3102, 1
      %v3104 = vadd.f32 %v3102, %v3103
      %v3105 = vadd.f32 %v2809, %v2812
      %v3106 = vadd.f32 %v3105, %v2817
      %v3107 = vadd.f32 %v3106, %v2820
      %v3108 = vadd.f32 %v3107, %v2825
      %v3109 = vadd.f32 %v3108, %v2828
      %v3110 = vadd.f32 %v3109, %v2833
      %v3111 = vadd.f32 %v3110, %v2836
      %v3112 = vadd.f32 %v3111, %v2841
      %v3113 = vadd.f32 %v3112, %v2844
      %v3114 = vadd.f32 %v3113, %v2849
      %v3115 = vadd.f32 %v3114, %v2852
      %v3116 = vadd.f32 %v3115, %v2857
      %v3117 = vadd.f32 %v3116, %v2860
      %v3118 = vadd.f32 %v3117, %v2865
      %v3119 = vadd.f32 %v3118, %v2868
      %v3120 = vadd.f32 %v3119, %v2873
      %v3121 = vadd.f32 %v3120, %v2876
      %v3122 = vadd.f32 %v3121, %v2881
      %v3123 = vadd.f32 %v3122, %v2884
      %v3124 = vadd.f32 %v3123, %v2889
      %v3125 = vadd.f32 %v3124, %v2892
      %v3126 = vadd.f32 %v3125, %v2897
      %v3127 = vadd.f32 %v3126, %v2900
      %v3128 = vadd.f32 %v3127, %v2905
      %v3129 = vadd.f32 %v3128, %v2908
      %v3130 = vadd.f32 %v3129, %v2913
      %v3131 = vadd.f32 %v3130, %v2916
      %v3132 = vadd.f32 %v3131, %v2921
      %v3133 = vadd.f32 %v3132, %v2924
      %v3134 = vadd.f32 %v3133, %v2929
      %v3135 = vadd.f32 %v3134, %v2932
      %v3136 = vrot.slane %v3135, 4
      %v3137 = vadd.f32 %v3135, %v3136
      %v3138 = vrot.slane %v3137, 2
      %v3139 = vadd.f32 %v3137, %v3138
      %v3140 = vrot.slane %v3139, 1
      %v3141 = vadd.f32 %v3139, %v3140
      %v3142 = vmul.f32 %v2809, %v2809
      %v3143 = vmul.f32 %v2812, %v2812
      %v3144 = vmul.f32 %v2817, %v2817
      %v3145 = vmul.f32 %v2820, %v2820
      %v3146 = vmul.f32 %v2825, %v2825
      %v3147 = vmul.f32 %v2828, %v2828
      %v3148 = vmul.f32 %v2833, %v2833
      %v3149 = vmul.f32 %v2836, %v2836
      %v3150 = vmul.f32 %v2841, %v2841
      %v3151 = vmul.f32 %v2844, %v2844
      %v3152 = vmul.f32 %v2849, %v2849
      %v3153 = vmul.f32 %v2852, %v2852
      %v3154 = vmul.f32 %v2857, %v2857
      %v3155 = vmul.f32 %v2860, %v2860
      %v3156 = vmul.f32 %v2865, %v2865
      %v3157 = vmul.f32 %v2868, %v2868
      %v3158 = vmul.f32 %v2873, %v2873
      %v3159 = vmul.f32 %v2876, %v2876
      %v3160 = vmul.f32 %v2881, %v2881
      %v3161 = vmul.f32 %v2884, %v2884
      %v3162 = vmul.f32 %v2889, %v2889
      %v3163 = vmul.f32 %v2892, %v2892
      %v3164 = vmul.f32 %v2897, %v2897
      %v3165 = vmul.f32 %v2900, %v2900
      %v3166 = vmul.f32 %v2905, %v2905
      %v3167 = vmul.f32 %v2908, %v2908
      %v3168 = vmul.f32 %v2913, %v2913
      %v3169 = vmul.f32 %v2916, %v2916
      %v3170 = vmul.f32 %v2921, %v2921
      %v3171 = vmul.f32 %v2924, %v2924
      %v3172 = vmul.f32 %v2929, %v2929
      %v3173 = vmul.f32 %v2932, %v2932
      %v3174 = vadd.f32 %v3142, %v3143
      %v3175 = vadd.f32 %v3174, %v3144
      %v3176 = vadd.f32 %v3175, %v3145
      %v3177 = vadd.f32 %v3176, %v3146
      %v3178 = vadd.f32 %v3177, %v3147
      %v3179 = vadd.f32 %v3178, %v3148
      %v3180 = vadd.f32 %v3179, %v3149
      %v3181 = vadd.f32 %v3180, %v3150
      %v3182 = vadd.f32 %v3181, %v3151
      %v3183 = vadd.f32 %v3182, %v3152
      %v3184 = vadd.f32 %v3183, %v3153
      %v3185 = vadd.f32 %v3184, %v3154
      %v3186 = vadd.f32 %v3185, %v3155
      %v3187 = vadd.f32 %v3186, %v3156
      %v3188 = vadd.f32 %v3187, %v3157
      %v3189 = vadd.f32 %v3188, %v3158
      %v3190 = vadd.f32 %v3189, %v3159
      %v3191 = vadd.f32 %v3190, %v3160
      %v3192 = vadd.f32 %v3191, %v3161
      %v3193 = vadd.f32 %v3192, %v3162
      %v3194 = vadd.f32 %v3193, %v3163
      %v3195 = vadd.f32 %v3194, %v3164
      %v3196 = vadd.f32 %v3195, %v3165
      %v3197 = vadd.f32 %v3196, %v3166
      %v3198 = vadd.f32 %v3197, %v3167
      %v3199 = vadd.f32 %v3198, %v3168
      %v3200 = vadd.f32 %v3199, %v3169
      %v3201 = vadd.f32 %v3200, %v3170
      %v3202 = vadd.f32 %v3201, %v3171
      %v3203 = vadd.f32 %v3202, %v3172
      %v3204 = vadd.f32 %v3203, %v3173
      %v3205 = vrot.slane %v3204, 4
      %v3206 = vadd.f32 %v3204, %v3205
      %v3207 = vrot.slane %v3206, 2
      %v3208 = vadd.f32 %v3206, %v3207
      %v3209 = vrot.slane %v3208, 1
      %v3210 = vadd.f32 %v3208, %v3209
      %vm3211 = vcmask 1040384
      %v3212 = vsel %vm3211, %v3035, %v3104
      %vm3213 = vcmask 1041408
      %v3214 = vsel %vm3213, %v3212, %v3141
      %vm3215 = vcmask 1042432
      %v3216 = vsel %vm3215, %v3214, %v3210
      %3217 = vst [vmem:[%s303] sm:$0xf] %v3216
      %s3218 = smul.u32 32, %s18
      %p3219 = scmp.lt.s32.totalorder %s3218, 63
      %s3220 = scalar_select %p3219, %s3218, 63
      %s3221 = smul.addr %s3220, 8
      %s3222 = scalar_lea.vmem %s4, %s3221
      %s3223 = smul.u32 32, %s18
      %p3224 = scmp.lt.s32.totalorder %s3223, 63
      %s3225 = scalar_select %p3224, %s3223, 63
      %s3226 = smul.addr %s3225, 8
      %s3227 = scalar_lea.vmem %s5, %s3226
      %p3228 = scmp.lt.s32.totalorder %s18, 1
      %s3229 = scalar_select %p3228, %s18, 1
      %s3230 = smul.addr %s3229, 4
      %s3231 = scalar_lea.vmem %s6, %s3230
      // Predicated region
      $region37: #{basic_block_forward.6} parent=35 // pred_check
        %p3232 = pneg %p130
      $region38: #{basic_block_forward.6} parent=35 // pred_check_branch
        %3234 = sbr.rel (%p3232) target = $region40
      $region39: #{basic_block_forward.6} parent=35 // pred_region
        %s3235 = smul.u32 32, %s18
      $region40: #{basic_block_forward.6} parent=35 // pred_fallthru
        _
      // Predicated region
      $region41: #{basic_block_forward.6} parent=35 // pred_check
        %p3236 = pneg %p156
      $region42: #{basic_block_forward.6} parent=35 // pred_check_branch
        %3238 = sbr.rel (%p3236) target = $region44
      $region43: #{basic_block_forward.6} parent=35 // pred_region
        %s3239 = smul.u32 32, %s18
      $region44: #{basic_block_forward.6} parent=35 // pred_fallthru
        _
      // Predicated region
      $region45: #{basic_block_forward.6} parent=35 // pred_check
        %p3240 = pneg %p182
      $region46: #{basic_block_forward.6} parent=35 // pred_check_branch
        %3242 = sbr.rel (%p3240) target = $region48
      $region47: #{basic_block_forward.6} parent=35 // pred_region
        _
      $region48: #{basic_block_forward.6} parent=35 // pred_fallthru
        _
    $region36: #{basic_block_forward.6} parent=5 // pred_fallthru
      _
    %p3243 = scmp.le.s32.totalorder 2, %s13
    // Predicated region
    $region49: #{basic_block_forward.6} parent=5 // pred_check
      %p3244 = pneg %p3243
    $region50: #{basic_block_forward.6} parent=5 // pred_check_branch
      %3246 = sbr.rel (%p3244) target = $region52
    $region51: #{basic_block_forward.6} parent=5 // pred_region
      %s3247 = ssub.s32 %s13, 2
      // Predicated region
      $region53: #{basic_block_forward.6} parent=51 // pred_check
        %p3248 = pneg %p136
      $region54: #{basic_block_forward.6} parent=51 // pred_check_branch
        %3250 = sbr.rel (%p3248) target = $region56
      $region55: #{basic_block_forward.6} parent=51 // pred_region
        %s3251 = smul.u32 32, %s19
        %p3252 = scmp.lt.s32.totalorder %s3251, 63
        %s3253 = scalar_select %p3252, %s3251, 63
        %s3254 = smul.addr %s3253, 8
        %s3255 = scalar_lea.vmem %s4, %s3254
      $region56: #{basic_block_forward.6} parent=51 // pred_fallthru
        _
      // Predicated region
      $region57: #{basic_block_forward.6} parent=51 // pred_check
        %p3256 = pneg %p162
      $region58: #{basic_block_forward.6} parent=51 // pred_check_branch
        %3258 = sbr.rel (%p3256) target = $region60
      $region59: #{basic_block_forward.6} parent=51 // pred_region
        %s3259 = smul.u32 32, %s19
        %p3260 = scmp.lt.s32.totalorder %s3259, 63
        %s3261 = scalar_select %p3260, %s3259, 63
        %s3262 = smul.addr %s3261, 8
        %s3263 = scalar_lea.vmem %s5, %s3262
      $region60: #{basic_block_forward.6} parent=51 // pred_fallthru
        _
      // Predicated region
      $region61: #{basic_block_forward.6} parent=51 // pred_check
        %p3264 = pneg %p188
      $region62: #{basic_block_forward.6} parent=51 // pred_check_branch
        %3266 = sbr.rel (%p3264) target = $region64
      $region63: #{basic_block_forward.6} parent=51 // pred_region
        %p3267 = scmp.lt.s32.totalorder %s19, 1
        %s3268 = scalar_select %p3267, %s19, 1
        %s3269 = smul.addr %s3268, 4
        %s3270 = scalar_lea.vmem %s6, %s3269
      $region64: #{basic_block_forward.6} parent=51 // pred_fallthru
        _
    $region52: #{basic_block_forward.6} parent=5 // pred_fallthru
      _
  $region6: #{basic_block_forward.6} parent=0 // loop_footer
    %s17 = sadd.s32 1, %s13
  $region7: #{basic_block_forward.6} parent=0 // loop_footer_branch
    %12 = sbr.rel target = $region3
  $region8: #{basic_block_forward.6} parent=0 // loop_exit
    _

</llo_original>
